<compile_context>
chip_gen: v5e
topology: v5e:2x2
jax: 0.10.0
libtpu: 0.0.40
codegen_flags: <defaults>
</compile_context>

<pallas_src>
import functools

import numpy as np
import jax
import jax.numpy as jnp
from jax.experimental import pallas as pl
from jax.experimental.pallas import tpu as pltpu

# ----------------------------- hyper-parameters -----------------------------
VOCAB = 40        # text token vocabulary
D_EMB = 32        # text embedding / conv channels
D_TEXT = 32       # text encoder output dim
MFCC_DIM = 20     # speech (MFCC) feature dim
MFCC_PAD = 32     # MFCC channels zero-padded to a 32-lane multiple
D_SPEECH = 32     # speech encoder output dim
ATT_DIM = 16      # attention dim
CONV_K = 5        # encoder conv kernel size
DEC_H = 32        # decoder hidden

B = 2             # batch
T_TEXT = 8        # padded text length (before the appended "null" row)
T_MFCC = 16       # padded mfcc length (before the appended "null" row)
T1P = T_TEXT + 1
T2P = T_MFCC + 1

# -------------------------- packed slab geometry ----------------------------
SLAB_W = 128                     # lane-dense output width
ROWS_G1 = 16                     # rows 0..15  : (T1P, ...) group
ROW_G2 = ROWS_G1                 # rows 16..39 : (T2P, ...) group
ROWS_G2 = 24
SLAB_ROWS = ROWS_G1 + ROWS_G2    # 40

# lane offsets inside the encoder slab (kernel-1 output / kernel-2 input)
ENC_MEP_LANE = D_TEXT            # 32 : MeP cumulative positions column
ENC_PLEN_LANE = D_TEXT + 1       # 33 : predicted mfcc length (broadcast column)
ENC_K2_LANE = D_SPEECH           # 32 : speech attention keys (group 2)

# lane offsets inside the kernel-2 output slab
OUT_W2_LANE = VOCAB              # 40
OUT_BND_LANE = VOCAB + T2P       # 57
OUT_W1_LANE = MFCC_DIM           # 20

# ----------------------- packed weight-slab layouts --------------------------
W1_WIDTH = 32
W1_SHAPES = [
    ("emb",     (VOCAB, D_EMB)),
    ("tc1_w",   (CONV_K * D_EMB, D_EMB)),
    ("tc2_w",   (CONV_K * D_EMB, D_EMB)),
    ("tc3_w",   (CONV_K * D_EMB, D_EMB)),
    ("sc1_w",   (CONV_K * MFCC_PAD, D_SPEECH)),
    ("sc2_w",   (CONV_K * D_SPEECH, D_SPEECH)),
    ("tproj_w", (D_EMB, D_TEXT)),
    ("sproj_w", (D_SPEECH, D_SPEECH)),
    ("wk2",     (D_SPEECH, ATT_DIM)),
    ("mep_wT",  (1, D_TEXT)),
    ("tc1_b",   (1, D_EMB)),
    ("tc2_b",   (1, D_EMB)),
    ("tc3_b",   (1, D_EMB)),
    ("sc1_b",   (1, D_SPEECH)),
    ("sc2_b",   (1, D_SPEECH)),
    ("tproj_b", (1, D_TEXT)),
    ("sproj_b", (1, D_SPEECH)),
    ("bk2",     (1, ATT_DIM)),
    ("mep_b",   (1, 1)),
    ("pe_m",    (T2P, D_SPEECH)),
]

W2_WIDTH = 64
W2_SHAPES = [
    ("wk1",   (D_TEXT, ATT_DIM)),
    ("bk1",   (1, ATT_DIM)),
    ("td1_w", (D_SPEECH, DEC_H)),
    ("td1_b", (1, DEC_H)),
    ("td2_w", (DEC_H, VOCAB)),
    ("td2_b", (1, VOCAB)),
    ("sd1_w", (D_TEXT, DEC_H)),
    ("sd1_b", (1, DEC_H)),
    ("sd2_w", (DEC_H, MFCC_DIM)),
    ("sd2_b", (1, MFCC_DIM)),
    ("al_w",  (D_TEXT, 2)),
    ("al_b",  (1, 2)),
    ("L01",   (T2P, 2 * T_MFCC)),
]


def _pack_layout(shapes):
    """Row offsets (multiples of 8) for a list of (name, (rows, cols))."""
    offs, cur = {}, 0
    for name, (r, _c) in shapes:
        offs[name] = cur
        cur += r + ((-r) % 8)
    return offs, cur


W1_OFF, W1_ROWS = _pack_layout(W1_SHAPES)
W2_OFF, W2_ROWS = _pack_layout(W2_SHAPES)


def _build_slab(arrays, shapes, offs, total_rows, width):
    slab = jnp.zeros((total_rows, width), jnp.float32)
    for name, (r, c) in shapes:
        a = jnp.asarray(arrays[name], jnp.float32).reshape(r, c)
        slab = slab.at[offs[name]:offs[name] + r, 0:c].set(a)
    return slab


# ============================ kernel 1: encoders ============================

def _encoder_kernel(tlen_ref, ids_ref, mfcc_ref, w_ref, out_ref, *, off):
    b = pl.program_id(0)

    def wrow(name, r, c):
        o = off[name]
        return w_ref[o:o + r, 0:c]

    # ---- embedding lookup as a one-hot matmul (gather-free) ----
    ids = ids_ref[0]                                             # (T_TEXT, 1) i32
    oh = (jax.lax.broadcasted_iota(jnp.int32, (T_TEXT, VOCAB), 1)
          == ids).astype(jnp.float32)                            # (T_TEXT, VOCAB)
    x = jnp.dot(oh, wrow("emb", VOCAB, D_EMB),
                preferred_element_type=jnp.float32)              # (T_TEXT, D_EMB)

    # conv1d("same") as K edge-masked XLU rolls concatenated on the lane axis
    # followed by ONE deep-contraction matmul against the (K*Cin, Cout) weight.
    def conv_relu(xin, wname, bname, cin, cout):
        T = xin.shape[0]
        t_idx = jax.lax.broadcasted_iota(jnp.int32, (T, cin), 0)
        cols = []
        for k in range(CONV_K):
            d = k - (CONV_K - 1) // 2
            r = xin if d == 0 else pltpu.roll(xin, (-d) % T, 0)
            valid = (t_idx + d >= 0) & (t_idx + d < T)
            cols.append(jnp.where(valid, r, 0.0))
        im = jnp.concatenate(cols, axis=-1)                      # (T, K*cin)
        y = jnp.dot(im, wrow(wname, CONV_K * cin, cout),
                    preferred_element_type=jnp.float32)
        return jnp.maximum(y + wrow(bname, 1, cout), 0.0)

    x = conv_relu(x, "tc1_w", "tc1_b", D_EMB, D_EMB)
    x = conv_relu(x, "tc2_w", "tc2_b", D_EMB, D_EMB)
    x = conv_relu(x, "tc3_w", "tc3_b", D_EMB, D_EMB)
    # TODO(synk): Tacotron2Encoder BatchNorm + BiLSTM -> tanh linear projection.
    texts = jnp.tanh(jnp.dot(x, wrow("tproj_w", D_EMB, D_TEXT),
                             preferred_element_type=jnp.float32)
                     + wrow("tproj_b", 1, D_TEXT))               # (T_TEXT, 32)
    texts_pad = jnp.concatenate(
        [texts, jnp.zeros((1, D_TEXT), jnp.float32)], axis=0)    # (T1P, 32)

    y = mfcc_ref[0]                                              # (T_MFCC, 32)
    y = conv_relu(y, "sc1_w", "sc1_b", MFCC_PAD, D_SPEECH)
    y = conv_relu(y, "sc2_w", "sc2_b", D_SPEECH, D_SPEECH)
    # TODO(synk): ContentEncoder recurrent layers -> tanh linear projection.
    mf = jnp.tanh(jnp.dot(y, wrow("sproj_w", D_SPEECH, D_SPEECH),
                          preferred_element_type=jnp.float32)
                  + wrow("sproj_b", 1, D_SPEECH))                # (T_MFCC, 32)
    mfccs_pad = jnp.concatenate(
        [mf, jnp.zeros((1, D_SPEECH), jnp.float32)], axis=0)     # (T2P, 32)

    # speech attention keys (constant PE folded in here so kernel 2 never
    # needs pe_m / wk2 / bk2 as operands)
    pe_m = wrow("pe_m", T2P, D_SPEECH)
    k2 = (jnp.dot(mfccs_pad + pe_m, wrow("wk2", D_SPEECH, ATT_DIM),
                  preferred_element_type=jnp.float32)
          + wrow("bk2", 1, ATT_DIM))                             # (T2P, 16)

    # MeP head: relu(texts_pad @ mep_w + b), cumsum via triangular matmul.
    mep_w = wrow("mep_wT", 1, D_TEXT)                            # (1, 32)
    mep_b = wrow("mep_b", 1, 1)                                  # (1, 1)
    mep_raw = jnp.maximum(
        jnp.sum(texts_pad * mep_w, axis=1, keepdims=True) + mep_b, 0.0)  # (T1P,1)
    ri = jax.lax.broadcasted_iota(jnp.int32, (T1P, T1P), 0)
    ci = jax.lax.broadcasted_iota(jnp.int32, (T1P, T1P), 1)
    tri = (ci <= ri).astype(jnp.float32)
    mep = jnp.dot(tri, mep_raw, preferred_element_type=jnp.float32)      # (T1P,1)

    # p_mfcc_length = mep[text_length - 1]   (one-hot pick, no dynamic slice)
    tl = tlen_ref[b]
    sel = (jax.lax.broadcasted_iota(jnp.int32, (T1P, 1), 0)
           == (tl - 1)).astype(jnp.float32)
    plen = jnp.sum(mep * sel)
    plen_col = plen * jnp.ones((T1P, 1), jnp.float32)

    # ---- one lane-dense unmasked store of everything ----
    g1 = jnp.concatenate(
        [texts_pad, mep, plen_col,
         jnp.zeros((T1P, SLAB_W - D_TEXT - 2), jnp.float32)], axis=1)    # (9,128)
    g1 = jnp.concatenate(
        [g1, jnp.zeros((ROWS_G1 - T1P, SLAB_W), jnp.float32)], axis=0)   # (16,128)
    g2 = jnp.concatenate(
        [mfccs_pad, k2,
         jnp.zeros((T2P, SLAB_W - D_SPEECH - ATT_DIM), jnp.float32)], axis=1)
    g2 = jnp.concatenate(
        [g2, jnp.zeros((ROWS_G2 - T2P, SLAB_W), jnp.float32)], axis=0)   # (24,128)
    out_ref[0] = jnp.concatenate([g1, g2], axis=0)                       # (40,128)


def encode(text_ids3, mfccs_pad32, text_lengths, w1_slab):
    Bsz = text_ids3.shape[0]
    grid_spec = pltpu.PrefetchScalarGridSpec(
        num_scalar_prefetch=1,
        grid=(Bsz,),
        in_specs=[
            pl.BlockSpec((1, T_TEXT, 1), lambda i, tl: (i, 0, 0)),
            pl.BlockSpec((1, T_MFCC, MFCC_PAD), lambda i, tl: (i, 0, 0)),
            pl.BlockSpec((W1_ROWS, W1_WIDTH), lambda i, tl: (0, 0)),
        ],
        out_specs=pl.BlockSpec((1, SLAB_ROWS, SLAB_W), lambda i, tl: (i, 0, 0)),
    )
    return pl.pallas_call(
        functools.partial(_encoder_kernel, off=W1_OFF),
        grid_spec=grid_spec,
        out_shape=jax.ShapeDtypeStruct((Bsz, SLAB_ROWS, SLAB_W), jnp.float32),
        compiler_params=pltpu.CompilerParams(dimension_semantics=("parallel",)),
    )(text_lengths, text_ids3, mfccs_pad32, w1_slab)


# ============== kernel 2: attention + decoders + aligner (fused) ==============

def _att_kernel(tlen_ref, mlen_ref, enc_ref, pet_ref, w_ref, out_ref, *, off):
    b = pl.program_id(0)
    tl = tlen_ref[b]
    ml = mlen_ref[b]

    def wrow(name, r, c):
        o = off[name]
        return w_ref[o:o + r, 0:c]

    enc = enc_ref[0]                                             # (40, 128)
    t_vals = enc[0:T1P, 0:D_TEXT]                                # (9, 32)
    m_vals = enc[ROW_G2:ROW_G2 + T2P, 0:D_SPEECH]                # (17, 32)
    k2 = enc[ROW_G2:ROW_G2 + T2P, ENC_K2_LANE:ENC_K2_LANE + ATT_DIM]     # (17,16)

    t_pe = t_vals + pet_ref[0]                                   # MeP PE added
    inv_sqrt = 1.0 / float(ATT_DIM) ** 0.5
    k1 = (jnp.dot(t_pe, wrow("wk1", D_TEXT, ATT_DIM),
                  preferred_element_type=jnp.float32)
          + wrow("bk1", 1, ATT_DIM)) * inv_sqrt                  # (9, 16)

    dn = (((1,), (1,)), ((), ()))
    score = jax.lax.dot_general(k1, k2, dn,
                                preferred_element_type=jnp.float32)    # (9, 17)
    score_t = jax.lax.dot_general(k2, k1, dn,
                                  preferred_element_type=jnp.float32)  # (17, 9)

    def masked_softmax(s, valid_keys):
        s = jnp.where(valid_keys, s, -1e9)
        m = jnp.max(s, axis=-1, keepdims=True)
        e = jnp.exp(s - m)
        return e / jnp.sum(e, axis=-1, keepdims=True)

    # Keys valid inside the true length OR at the appended "null" row.
    fj = jax.lax.broadcasted_iota(jnp.int32, (T1P, T2P), 1)
    w2a = masked_softmax(score, (fj < ml) | (fj == T2P - 1))     # text -> frames
    tj = jax.lax.broadcasted_iota(jnp.int32, (T2P, T1P), 1)
    w1a = masked_softmax(score_t, (tj < tl) | (tj == T1P - 1))   # frame -> text

    mfccs_at_text = jnp.dot(w2a, m_vals, preferred_element_type=jnp.float32)
    texts_at_frame = jnp.dot(w1a, t_vals, preferred_element_type=jnp.float32)

    # decoders — TODO(synk): LSTM decoders approximated by 2-layer MLPs.
    h = jnp.maximum(jnp.dot(mfccs_at_text, wrow("td1_w", D_SPEECH, DEC_H),
                            preferred_element_type=jnp.float32)
                    + wrow("td1_b", 1, DEC_H), 0.0)
    p_texts = (jnp.dot(h, wrow("td2_w", DEC_H, VOCAB),
                       preferred_element_type=jnp.float32)
               + wrow("td2_b", 1, VOCAB))                        # (9, 40)
    h2 = jnp.maximum(jnp.dot(texts_at_frame, wrow("sd1_w", D_TEXT, DEC_H),
                             preferred_element_type=jnp.float32)
                     + wrow("sd1_b", 1, DEC_H), 0.0)
    p_mfccs = (jnp.dot(h2, wrow("sd2_w", DEC_H, MFCC_DIM),
                       preferred_element_type=jnp.float32)
               + wrow("sd2_b", 1, MFCC_DIM))                     # (17, 20)

    # aligner: cumulative attention mass, gate scales pre-folded into L01.
    cum01 = jnp.dot(w2a, wrow("L01", T2P, 2 * T_MFCC),
                    preferred_element_type=jnp.float32)          # (9, 32)
    tp = (jnp.dot(t_vals, wrow("al_w", D_TEXT, 2),
                  preferred_element_type=jnp.float32)
          + wrow("al_b", 1, 2))                                  # (9, 2)
    bias01 = jnp.concatenate(
        [jnp.broadcast_to(tp[:, 0:1], (T1P, T_MFCC)),
         jnp.broadcast_to(tp[:, 1:2], (T1P, T_MFCC))], axis=1)   # (9, 32)
    z = cum01 + bias01
    bnd = 1.0 / (1.0 + jnp.exp(-z[0:T_TEXT, :]))                 # (8, 32) exact sigmoid

    # ---- one lane-dense unmasked store of all five outputs ----
    bnd_p = jnp.concatenate(
        [bnd, jnp.zeros((1, 2 * T_MFCC), jnp.float32)], axis=0)  # (9, 32)
    ga = jnp.concatenate(
        [p_texts, w2a, bnd_p,
         jnp.zeros((T1P, SLAB_W - VOCAB - T2P - 2 * T_MFCC), jnp.float32)],
        axis=1)                                                  # (9, 128)
    ga = jnp.concatenate(
        [ga, jnp.zeros((ROWS_G1 - T1P, SLAB_W), jnp.float32)], axis=0)   # (16,128)
    gb = jnp.concatenate(
        [p_mfccs, w1a,
         jnp.zeros((T2P, SLAB_W - MFCC_DIM - T1P), jnp.float32)], axis=1)
    gb = jnp.concatenate(
        [gb, jnp.zeros((ROWS_G2 - T2P, SLAB_W), jnp.float32)], axis=0)   # (24,128)
    out_ref[0] = jnp.concatenate([ga, gb], axis=0)                       # (40,128)


def fused_attention_decode_align(enc_slab, pe_t, text_lengths, mfcc_lengths,
                                 w2_slab):
    Bsz = enc_slab.shape[0]
    grid_spec = pltpu.PrefetchScalarGridSpec(
        num_scalar_prefetch=2,
        grid=(Bsz,),
        in_specs=[
            pl.BlockSpec((1, SLAB_ROWS, SLAB_W), lambda i, tl, ml: (i, 0, 0)),
            pl.BlockSpec((1, T1P, D_TEXT), lambda i, tl, ml: (i, 0, 0)),
            pl.BlockSpec((W2_ROWS, W2_WIDTH), lambda i, tl, ml: (0, 0)),
        ],
        out_specs=pl.BlockSpec((1, SLAB_ROWS, SLAB_W), lambda i, tl, ml: (i, 0, 0)),
    )
    return pl.pallas_call(
        functools.partial(_att_kernel, off=W2_OFF),
        grid_spec=grid_spec,
        out_shape=jax.ShapeDtypeStruct((Bsz, SLAB_ROWS, SLAB_W), jnp.float32),
        compiler_params=pltpu.CompilerParams(dimension_semantics=("parallel",)),
    )(text_lengths, mfcc_lengths, enc_slab, pe_t, w2_slab)


# ================================ glue (plain JAX) ================================

def sinusoidal_pe(T, D):
    pos = np.arange(T, dtype=np.float32)[:, None]
    i = np.arange(D, dtype=np.float32)[None, :]
    angle = pos / np.power(10000.0, (2.0 * np.floor(i / 2.0)) / D)
    pe = np.where((np.arange(D)[None, :] % 2) == 0, np.sin(angle), np.cos(angle))
    return jnp.asarray(pe, jnp.float32)


def pe_at_positions(positions, D):
    # sinusoidal PE evaluated at continuous (learned) positions: (B,T)->(B,T,D)
    i = jnp.arange(D)
    inv = jnp.power(10000.0, -(2.0 * jnp.floor(i.astype(jnp.float32) / 2.0)) / D)
    ang = positions[..., None] * inv
    return jnp.where((i % 2) == 0, jnp.sin(ang), jnp.cos(ang)).astype(jnp.float32)


def init_params(key):
    ks = iter(jax.random.split(key, 32))

    def w(shape, scale=0.05):
        return scale * jax.random.normal(next(ks), shape, jnp.float32)

    def z(shape):
        return jnp.zeros(shape, jnp.float32)

    return {
        # text encoder
        "emb": w((VOCAB, D_EMB), 0.1),
        "tc1_w": w((CONV_K, D_EMB, D_EMB)), "tc1_b": z((1, D_EMB)),
        "tc2_w": w((CONV_K, D_EMB, D_EMB)), "tc2_b": z((1, D_EMB)),
        "tc3_w": w((CONV_K, D_EMB, D_EMB)), "tc3_b": z((1, D_EMB)),
        "tproj_w": w((D_EMB, D_TEXT)), "tproj_b": z((1, D_TEXT)),
        # speech encoder
        "sc1_w": w((CONV_K, MFCC_DIM, D_SPEECH)), "sc1_b": z((1, D_SPEECH)),
        "sc2_w": w((CONV_K, D_SPEECH, D_SPEECH)), "sc2_b": z((1, D_SPEECH)),
        "sproj_w": w((D_SPEECH, D_SPEECH)), "sproj_b": z((1, D_SPEECH)),
        # bidirectional attention
        "att_wk1": w((D_TEXT, ATT_DIM)), "att_bk1": z((1, ATT_DIM)),
        "att_wk2": w((D_SPEECH, ATT_DIM)), "att_bk2": z((1, ATT_DIM)),
        # text decoder
        "td1_w": w((D_SPEECH, DEC_H)), "td1_b": z((1, DEC_H)),
        "td2_w": w((DEC_H, VOCAB)), "td2_b": z((1, VOCAB)),
        # speech decoder
        "sd1_w": w((D_TEXT, DEC_H)), "sd1_b": z((1, DEC_H)),
        "sd2_w": w((DEC_H, MFCC_DIM)), "sd2_b": z((1, MFCC_DIM)),
        # aligner
        "al_w": w((D_TEXT, 2)), "al_b": z((1, 2)),
        "al_scale": jnp.array([4.0, 8.0], jnp.float32),
        # MeP head: nn.Linear(text_encoder.output_dim, 1)
        "mep_w": w((D_TEXT, 1)), "mep_b": z((1,)),
    }


def prepare_params(p):
    """Pack all weights/constants into the two kernel slabs (done once)."""
    # conv weights reshaped to (K*Cin, Cout); speech conv1 channel-padded 20->32
    sc1 = jnp.pad(p["sc1_w"], ((0, 0), (0, MFCC_PAD - MFCC_DIM), (0, 0)))
    w1_arrays = {
        "emb": p["emb"],
        "tc1_w": p["tc1_w"].reshape(CONV_K * D_EMB, D_EMB),
        "tc2_w": p["tc2_w"].reshape(CONV_K * D_EMB, D_EMB),
        "tc3_w": p["tc3_w"].reshape(CONV_K * D_EMB, D_EMB),
        "sc1_w": sc1.reshape(CONV_K * MFCC_PAD, D_SPEECH),
        "sc2_w": p["sc2_w"].reshape(CONV_K * D_SPEECH, D_SPEECH),
        "tproj_w": p["tproj_w"], "sproj_w": p["sproj_w"],
        "wk2": p["att_wk2"],
        "mep_wT": p["mep_w"].T,
        "tc1_b": p["tc1_b"], "tc2_b": p["tc2_b"], "tc3_b": p["tc3_b"],
        "sc1_b": p["sc1_b"], "sc2_b": p["sc2_b"],
        "tproj_b": p["tproj_b"], "sproj_b": p["sproj_b"],
        "bk2": p["att_bk2"],
        "mep_b": p["mep_b"].reshape(1, 1),
        "pe_m": sinusoidal_pe(T2P, D_SPEECH),
    }
    # aligner cumulative-mass matrix (zero "null" row), gate scales pre-folded
    L = jnp.triu(jnp.ones((T_MFCC, T_MFCC), jnp.float32))
    L_pad = jnp.concatenate([L, jnp.zeros((1, T_MFCC), jnp.float32)], axis=0)
    L01 = jnp.concatenate([p["al_scale"][0] * L_pad,
                           p["al_scale"][1] * L_pad], axis=1)
    w2_arrays = {
        "wk1": p["att_wk1"], "bk1": p["att_bk1"],
        "td1_w": p["td1_w"], "td1_b": p["td1_b"],
        "td2_w": p["td2_w"], "td2_b": p["td2_b"],
        "sd1_w": p["sd1_w"], "sd1_b": p["sd1_b"],
        "sd2_w": p["sd2_w"], "sd2_b": p["sd2_b"],
        "al_w": p["al_w"], "al_b": p["al_b"],
        "L01": L01,
    }
    w1_slab = _build_slab(w1_arrays, W1_SHAPES, W1_OFF, W1_ROWS, W1_WIDTH)
    w2_slab = _build_slab(w2_arrays, W2_SHAPES, W2_OFF, W2_ROWS, W2_WIDTH)
    return w1_slab, w2_slab


def neufa_mep_forward(w1_slab, w2_slab, text_ids3, text_lengths, mfccs_pad32,
                      mfcc_lengths):
    Bsz = text_ids3.shape[0]
    tlen = text_lengths.astype(jnp.int32)
    mlen = mfcc_lengths.astype(jnp.int32)

    # ---- fused encoders + MeP head + k2 keys (one Pallas kernel) ----
    enc = encode(text_ids3, mfccs_pad32, tlen, w1_slab)          # (B, 40, 128)

    mep = enc[:, 0:T1P, ENC_MEP_LANE]                            # (B, T1P)
    p_mfcc_lengths = enc[:, 0, ENC_PLEN_LANE]                    # (B,)
    # TODO(synk): sin/cos of the data-dependent MeP PE kept in XLA glue
    # (Mosaic transcendental coverage for sin/cos not relied upon).
    pe_t = pe_at_positions(mep, D_TEXT)                          # (B, T1P, Dt)

    # ---- fused attention + decoders + aligner (one Pallas kernel) ----
    out = fused_attention_decode_align(enc, pe_t, tlen, mlen, w2_slab)

    p_texts = out[:, 0:T1P, 0:VOCAB]
    w2 = out[:, 0:T1P, OUT_W2_LANE:OUT_W2_LANE + T2P]
    boundaries = out[:, 0:T_TEXT,
                     OUT_BND_LANE:OUT_BND_LANE + 2 * T_MFCC].reshape(
                         Bsz, T_TEXT, 2, T_MFCC)
    p_mfccs = out[:, ROW_G2:ROW_G2 + T2P, 0:MFCC_DIM]
    w1 = out[:, ROW_G2:ROW_G2 + T2P, OUT_W1_LANE:OUT_W1_LANE + T1P]
    return p_texts, p_mfccs, w1, w2, mfcc_lengths, p_mfcc_lengths, boundaries


# ==================================== main ====================================

if __name__ == "__main__":
    key = jax.random.PRNGKey(0)
    pkey, k_text, k_mfcc = jax.random.split(key, 3)
    params = init_params(pkey)
    w1_slab, w2_slab = prepare_params(params)   # packed once, outside jit

    # variable-length batch (pad_sequence equivalent done here in glue)
    text_lengths = jnp.array([T_TEXT, 6], jnp.int32)
    mfcc_lengths = jnp.array([T_MFCC, 12], jnp.int32)

    text_ids = jax.random.randint(k_text, (B, T_TEXT), 1, VOCAB).astype(jnp.int32)
    tmask = (jnp.arange(T_TEXT)[None, :] < text_lengths[:, None]).astype(jnp.int32)
    text_ids = text_ids * tmask
    text_ids3 = text_ids[..., None]                              # (B, T1, 1)

    mfccs = jax.random.normal(k_mfcc, (B, T_MFCC, MFCC_DIM), jnp.float32)
    mmask = (jnp.arange(T_MFCC)[None, :] < mfcc_lengths[:, None]).astype(jnp.float32)
    mfccs = mfccs * mmask[:, :, None]
    mfccs_pad32 = jnp.pad(mfccs, ((0, 0), (0, 0), (0, MFCC_PAD - MFCC_DIM)))

    fwd = jax.jit(neufa_mep_forward)
    out = fwd(w1_slab, w2_slab, text_ids3, text_lengths, mfccs_pad32, mfcc_lengths)
    out = jax.block_until_ready(out)
    p_texts, p_mfccs, w1, w2, out_mfcc_lengths, p_mfcc_lengths, boundaries = out

    assert p_texts.shape == (B, T_TEXT + 1, VOCAB)
    assert p_mfccs.shape == (B, T_MFCC + 1, MFCC_DIM)
    assert w1.shape == (B, T_MFCC + 1, T_TEXT + 1)
    assert w2.shape == (B, T_TEXT + 1, T_MFCC + 1)
    assert boundaries.shape == (B, T_TEXT, 2, T_MFCC)
    assert p_mfcc_lengths.shape == (B,)
    assert out_mfcc_lengths.shape == (B,)
    assert all(bool(jnp.isfinite(a).all())
               for a in (p_texts, p_mfccs, w1, w2, p_mfcc_lengths, boundaries))
    # masked softmax rows (valid + null keys) must each sum to ~1
    assert bool(jnp.allclose(jnp.sum(w2, axis=-1), 1.0, atol=1e-3))
    assert bool(jnp.allclose(jnp.sum(w1, axis=-1), 1.0, atol=1e-3))

    print("KERNEL_OK")
</pallas_src>

<mosaic_0001>
module attributes {stable_mosaic.version = 11 : i64} {
  func.func @_encoder_kernel(%arg0: i32, %arg1: memref<2xi32, #tpu.memory_space<smem>>, %arg2: memref<1x8x1xi32, #tpu.memory_space<vmem>>, %arg3: memref<1x16x32xf32, #tpu.memory_space<vmem>>, %arg4: memref<1040x32xf32, #tpu.memory_space<vmem>>, %arg5: memref<1x40x128xf32, #tpu.memory_space<vmem>>) attributes {dimension_semantics = [#tpu.dimension_semantics<parallel>], iteration_bounds = array<i64: 2>, scalar_prefetch = 1 : i64, scratch_operands = 0 : i64, tpu.core_type = #tpu.core_type<tc>, window_params = [{transform_indices = @transform_0, window_bounds = array<i64: 1, 8, 1>}, {transform_indices = @transform_1, window_bounds = array<i64: 1, 16, 32>}, {pipeline_mode = #tpu.pipeline_mode<synchronous>, transform_indices = @transform_2, window_bounds = array<i64: 1040, 32>}, {transform_indices = @transform_3, window_bounds = array<i64: 1, 40, 128>}]} {
    %c0 = arith.constant 0 : index
    %c0_0 = arith.constant 0 : index
    %c0_1 = arith.constant 0 : index
    %0 = vector.load %arg2[%c0, %c0_0, %c0_1] : memref<1x8x1xi32, #tpu.memory_space<vmem>>, vector<1x8x1xi32>
    %1 = vector.shape_cast %0 : vector<1x8x1xi32> to vector<8x1xi32>
    %2 = tpu.iota {dimensions = array<i32: 1>} : vector<8x40xi32>
    %3 = vector.broadcast %1 : vector<8x1xi32> to vector<8x40xi32>
    %4 = arith.cmpi eq, %2, %3 : vector<8x40xi32>
    %5 = arith.extui %4 : vector<8x40xi1> to vector<8x40xi32>
    %6 = arith.sitofp %5 : vector<8x40xi32> to vector<8x40xf32>
    %c0_2 = arith.constant 0 : index
    %c0_3 = arith.constant 0 : index
    %7 = vector.load %arg4[%c0_2, %c0_3] : memref<1040x32xf32, #tpu.memory_space<vmem>>, vector<40x32xf32>
    %cst = arith.constant dense<0.000000e+00> : vector<8x32xf32>
    %8 = tpu.matmul %6, %7, %cst {dimension_numbers = #tpu.dot_dimension_numbers<[1], [0], [0], [1], [0, 0, 1, 1], [], []>} : vector<8x40xf32>, vector<40x32xf32>, vector<8x32xf32> -> vector<8x32xf32>
    %9 = tpu.iota {dimensions = array<i32: 0>} : vector<8x32xi32>
    %c2_i32 = arith.constant 2 : i32
    %10 = tpu.dynamic_rotate %8 by %c2_i32 dim 0 : vector<8x32xf32>, i32 -> vector<8x32xf32>
    %c-2_i32 = arith.constant -2 : i32
    %11 = vector.broadcast %c-2_i32 : i32 to vector<8x32xi32>
    %12 = arith.addi %9, %11 : vector<8x32xi32>
    %c0_i32 = arith.constant 0 : i32
    %13 = vector.broadcast %c0_i32 : i32 to vector<8x32xi32>
    %14 = arith.cmpi sge, %12, %13 : vector<8x32xi32>
    %c-2_i32_4 = arith.constant -2 : i32
    %15 = vector.broadcast %c-2_i32_4 : i32 to vector<8x32xi32>
    %16 = arith.addi %9, %15 : vector<8x32xi32>
    %c8_i32 = arith.constant 8 : i32
    %17 = vector.broadcast %c8_i32 : i32 to vector<8x32xi32>
    %18 = arith.cmpi slt, %16, %17 : vector<8x32xi32>
    %19 = arith.andi %14, %18 : vector<8x32xi1>
    %cst_5 = arith.constant 0.000000e+00 : f32
    %20 = vector.broadcast %cst_5 : f32 to vector<8x32xf32>
    %21 = arith.select %19, %10, %20 : vector<8x32xi1>, vector<8x32xf32>
    %c1_i32 = arith.constant 1 : i32
    %22 = tpu.dynamic_rotate %8 by %c1_i32 dim 0 : vector<8x32xf32>, i32 -> vector<8x32xf32>
    %c-1_i32 = arith.constant -1 : i32
    %23 = vector.broadcast %c-1_i32 : i32 to vector<8x32xi32>
    %24 = arith.addi %9, %23 : vector<8x32xi32>
    %c0_i32_6 = arith.constant 0 : i32
    %25 = vector.broadcast %c0_i32_6 : i32 to vector<8x32xi32>
    %26 = arith.cmpi sge, %24, %25 : vector<8x32xi32>
    %c-1_i32_7 = arith.constant -1 : i32
    %27 = vector.broadcast %c-1_i32_7 : i32 to vector<8x32xi32>
    %28 = arith.addi %9, %27 : vector<8x32xi32>
    %c8_i32_8 = arith.constant 8 : i32
    %29 = vector.broadcast %c8_i32_8 : i32 to vector<8x32xi32>
    %30 = arith.cmpi slt, %28, %29 : vector<8x32xi32>
    %31 = arith.andi %26, %30 : vector<8x32xi1>
    %cst_9 = arith.constant 0.000000e+00 : f32
    %32 = vector.broadcast %cst_9 : f32 to vector<8x32xf32>
    %33 = arith.select %31, %22, %32 : vector<8x32xi1>, vector<8x32xf32>
    %c0_i32_10 = arith.constant 0 : i32
    %34 = vector.broadcast %c0_i32_10 : i32 to vector<8x32xi32>
    %35 = arith.addi %9, %34 : vector<8x32xi32>
    %c0_i32_11 = arith.constant 0 : i32
    %36 = vector.broadcast %c0_i32_11 : i32 to vector<8x32xi32>
    %37 = arith.cmpi sge, %35, %36 : vector<8x32xi32>
    %c0_i32_12 = arith.constant 0 : i32
    %38 = vector.broadcast %c0_i32_12 : i32 to vector<8x32xi32>
    %39 = arith.addi %9, %38 : vector<8x32xi32>
    %c8_i32_13 = arith.constant 8 : i32
    %40 = vector.broadcast %c8_i32_13 : i32 to vector<8x32xi32>
    %41 = arith.cmpi slt, %39, %40 : vector<8x32xi32>
    %42 = arith.andi %37, %41 : vector<8x32xi1>
    %cst_14 = arith.constant 0.000000e+00 : f32
    %43 = vector.broadcast %cst_14 : f32 to vector<8x32xf32>
    %44 = arith.select %42, %8, %43 : vector<8x32xi1>, vector<8x32xf32>
    %c7_i32 = arith.constant 7 : i32
    %45 = tpu.dynamic_rotate %8 by %c7_i32 dim 0 : vector<8x32xf32>, i32 -> vector<8x32xf32>
    %c1_i32_15 = arith.constant 1 : i32
    %46 = vector.broadcast %c1_i32_15 : i32 to vector<8x32xi32>
    %47 = arith.addi %9, %46 : vector<8x32xi32>
    %c0_i32_16 = arith.constant 0 : i32
    %48 = vector.broadcast %c0_i32_16 : i32 to vector<8x32xi32>
    %49 = arith.cmpi sge, %47, %48 : vector<8x32xi32>
    %c1_i32_17 = arith.constant 1 : i32
    %50 = vector.broadcast %c1_i32_17 : i32 to vector<8x32xi32>
    %51 = arith.addi %9, %50 : vector<8x32xi32>
    %c8_i32_18 = arith.constant 8 : i32
    %52 = vector.broadcast %c8_i32_18 : i32 to vector<8x32xi32>
    %53 = arith.cmpi slt, %51, %52 : vector<8x32xi32>
    %54 = arith.andi %49, %53 : vector<8x32xi1>
    %cst_19 = arith.constant 0.000000e+00 : f32
    %55 = vector.broadcast %cst_19 : f32 to vector<8x32xf32>
    %56 = arith.select %54, %45, %55 : vector<8x32xi1>, vector<8x32xf32>
    %c6_i32 = arith.constant 6 : i32
    %57 = tpu.dynamic_rotate %8 by %c6_i32 dim 0 : vector<8x32xf32>, i32 -> vector<8x32xf32>
    %c2_i32_20 = arith.constant 2 : i32
    %58 = vector.broadcast %c2_i32_20 : i32 to vector<8x32xi32>
    %59 = arith.addi %9, %58 : vector<8x32xi32>
    %c0_i32_21 = arith.constant 0 : i32
    %60 = vector.broadcast %c0_i32_21 : i32 to vector<8x32xi32>
    %61 = arith.cmpi sge, %59, %60 : vector<8x32xi32>
    %c2_i32_22 = arith.constant 2 : i32
    %62 = vector.broadcast %c2_i32_22 : i32 to vector<8x32xi32>
    %63 = arith.addi %9, %62 : vector<8x32xi32>
    %c8_i32_23 = arith.constant 8 : i32
    %64 = vector.broadcast %c8_i32_23 : i32 to vector<8x32xi32>
    %65 = arith.cmpi slt, %63, %64 : vector<8x32xi32>
    %66 = arith.andi %61, %65 : vector<8x32xi1>
    %cst_24 = arith.constant 0.000000e+00 : f32
    %67 = vector.broadcast %cst_24 : f32 to vector<8x32xf32>
    %68 = arith.select %66, %57, %67 : vector<8x32xi1>, vector<8x32xf32>
    %69 = tpu.concatenate %21, %33, %44, %56, %68 in 1 : vector<8x32xf32>, vector<8x32xf32>, vector<8x32xf32>, vector<8x32xf32>, vector<8x32xf32> -> vector<8x160xf32>
    %c40 = arith.constant 40 : index
    %c0_25 = arith.constant 0 : index
    %70 = vector.load %arg4[%c40, %c0_25] : memref<1040x32xf32, #tpu.memory_space<vmem>>, vector<160x32xf32>
    %cst_26 = arith.constant dense<0.000000e+00> : vector<8x32xf32>
    %71 = tpu.matmul %69, %70, %cst_26 {dimension_numbers = #tpu.dot_dimension_numbers<[1], [0], [0], [1], [0, 0, 1, 1], [], []>} : vector<8x160xf32>, vector<160x32xf32>, vector<8x32xf32> -> vector<8x32xf32>
    %c944 = arith.constant 944 : index
    %c0_27 = arith.constant 0 : index
    %72 = vector.load %arg4[%c944, %c0_27] : memref<1040x32xf32, #tpu.memory_space<vmem>>, vector<1x32xf32>
    %73 = vector.broadcast %72 : vector<1x32xf32> to vector<8x32xf32>
    %74 = arith.addf %71, %73 : vector<8x32xf32>
    %cst_28 = arith.constant 0.000000e+00 : f32
    %75 = vector.broadcast %cst_28 : f32 to vector<8x32xf32>
    %76 = arith.maximumf %74, %75 : vector<8x32xf32>
    %77 = tpu.iota {dimensions = array<i32: 0>} : vector<8x32xi32>
    %c2_i32_29 = arith.constant 2 : i32
    %78 = tpu.dynamic_rotate %76 by %c2_i32_29 dim 0 : vector<8x32xf32>, i32 -> vector<8x32xf32>
    %c-2_i32_30 = arith.constant -2 : i32
    %79 = vector.broadcast %c-2_i32_30 : i32 to vector<8x32xi32>
    %80 = arith.addi %77, %79 : vector<8x32xi32>
    %c0_i32_31 = arith.constant 0 : i32
    %81 = vector.broadcast %c0_i32_31 : i32 to vector<8x32xi32>
    %82 = arith.cmpi sge, %80, %81 : vector<8x32xi32>
    %c-2_i32_32 = arith.constant -2 : i32
    %83 = vector.broadcast %c-2_i32_32 : i32 to vector<8x32xi32>
    %84 = arith.addi %77, %83 : vector<8x32xi32>
    %c8_i32_33 = arith.constant 8 : i32
    %85 = vector.broadcast %c8_i32_33 : i32 to vector<8x32xi32>
    %86 = arith.cmpi slt, %84, %85 : vector<8x32xi32>
    %87 = arith.andi %82, %86 : vector<8x32xi1>
    %cst_34 = arith.constant 0.000000e+00 : f32
    %88 = vector.broadcast %cst_34 : f32 to vector<8x32xf32>
    %89 = arith.select %87, %78, %88 : vector<8x32xi1>, vector<8x32xf32>
    %c1_i32_35 = arith.constant 1 : i32
    %90 = tpu.dynamic_rotate %76 by %c1_i32_35 dim 0 : vector<8x32xf32>, i32 -> vector<8x32xf32>
    %c-1_i32_36 = arith.constant -1 : i32
    %91 = vector.broadcast %c-1_i32_36 : i32 to vector<8x32xi32>
    %92 = arith.addi %77, %91 : vector<8x32xi32>
    %c0_i32_37 = arith.constant 0 : i32
    %93 = vector.broadcast %c0_i32_37 : i32 to vector<8x32xi32>
    %94 = arith.cmpi sge, %92, %93 : vector<8x32xi32>
    %c-1_i32_38 = arith.constant -1 : i32
    %95 = vector.broadcast %c-1_i32_38 : i32 to vector<8x32xi32>
    %96 = arith.addi %77, %95 : vector<8x32xi32>
    %c8_i32_39 = arith.constant 8 : i32
    %97 = vector.broadcast %c8_i32_39 : i32 to vector<8x32xi32>
    %98 = arith.cmpi slt, %96, %97 : vector<8x32xi32>
    %99 = arith.andi %94, %98 : vector<8x32xi1>
    %cst_40 = arith.constant 0.000000e+00 : f32
    %100 = vector.broadcast %cst_40 : f32 to vector<8x32xf32>
    %101 = arith.select %99, %90, %100 : vector<8x32xi1>, vector<8x32xf32>
    %c0_i32_41 = arith.constant 0 : i32
    %102 = vector.broadcast %c0_i32_41 : i32 to vector<8x32xi32>
    %103 = arith.addi %77, %102 : vector<8x32xi32>
    %c0_i32_42 = arith.constant 0 : i32
    %104 = vector.broadcast %c0_i32_42 : i32 to vector<8x32xi32>
    %105 = arith.cmpi sge, %103, %104 : vector<8x32xi32>
    %c0_i32_43 = arith.constant 0 : i32
    %106 = vector.broadcast %c0_i32_43 : i32 to vector<8x32xi32>
    %107 = arith.addi %77, %106 : vector<8x32xi32>
    %c8_i32_44 = arith.constant 8 : i32
    %108 = vector.broadcast %c8_i32_44 : i32 to vector<8x32xi32>
    %109 = arith.cmpi slt, %107, %108 : vector<8x32xi32>
    %110 = arith.andi %105, %109 : vector<8x32xi1>
    %cst_45 = arith.constant 0.000000e+00 : f32
    %111 = vector.broadcast %cst_45 : f32 to vector<8x32xf32>
    %112 = arith.select %110, %76, %111 : vector<8x32xi1>, vector<8x32xf32>
    %c7_i32_46 = arith.constant 7 : i32
    %113 = tpu.dynamic_rotate %76 by %c7_i32_46 dim 0 : vector<8x32xf32>, i32 -> vector<8x32xf32>
    %c1_i32_47 = arith.constant 1 : i32
    %114 = vector.broadcast %c1_i32_47 : i32 to vector<8x32xi32>
    %115 = arith.addi %77, %114 : vector<8x32xi32>
    %c0_i32_48 = arith.constant 0 : i32
    %116 = vector.broadcast %c0_i32_48 : i32 to vector<8x32xi32>
    %117 = arith.cmpi sge, %115, %116 : vector<8x32xi32>
    %c1_i32_49 = arith.constant 1 : i32
    %118 = vector.broadcast %c1_i32_49 : i32 to vector<8x32xi32>
    %119 = arith.addi %77, %118 : vector<8x32xi32>
    %c8_i32_50 = arith.constant 8 : i32
    %120 = vector.broadcast %c8_i32_50 : i32 to vector<8x32xi32>
    %121 = arith.cmpi slt, %119, %120 : vector<8x32xi32>
    %122 = arith.andi %117, %121 : vector<8x32xi1>
    %cst_51 = arith.constant 0.000000e+00 : f32
    %123 = vector.broadcast %cst_51 : f32 to vector<8x32xf32>
    %124 = arith.select %122, %113, %123 : vector<8x32xi1>, vector<8x32xf32>
    %c6_i32_52 = arith.constant 6 : i32
    %125 = tpu.dynamic_rotate %76 by %c6_i32_52 dim 0 : vector<8x32xf32>, i32 -> vector<8x32xf32>
    %c2_i32_53 = arith.constant 2 : i32
    %126 = vector.broadcast %c2_i32_53 : i32 to vector<8x32xi32>
    %127 = arith.addi %77, %126 : vector<8x32xi32>
    %c0_i32_54 = arith.constant 0 : i32
    %128 = vector.broadcast %c0_i32_54 : i32 to vector<8x32xi32>
    %129 = arith.cmpi sge, %127, %128 : vector<8x32xi32>
    %c2_i32_55 = arith.constant 2 : i32
    %130 = vector.broadcast %c2_i32_55 : i32 to vector<8x32xi32>
    %131 = arith.addi %77, %130 : vector<8x32xi32>
    %c8_i32_56 = arith.constant 8 : i32
    %132 = vector.broadcast %c8_i32_56 : i32 to vector<8x32xi32>
    %133 = arith.cmpi slt, %131, %132 : vector<8x32xi32>
    %134 = arith.andi %129, %133 : vector<8x32xi1>
    %cst_57 = arith.constant 0.000000e+00 : f32
    %135 = vector.broadcast %cst_57 : f32 to vector<8x32xf32>
    %136 = arith.select %134, %125, %135 : vector<8x32xi1>, vector<8x32xf32>
    %137 = tpu.concatenate %89, %101, %112, %124, %136 in 1 : vector<8x32xf32>, vector<8x32xf32>, vector<8x32xf32>, vector<8x32xf32>, vector<8x32xf32> -> vector<8x160xf32>
    %c200 = arith.constant 200 : index
    %c0_58 = arith.constant 0 : index
    %138 = vector.load %arg4[%c200, %c0_58] : memref<1040x32xf32, #tpu.memory_space<vmem>>, vector<160x32xf32>
    %cst_59 = arith.constant dense<0.000000e+00> : vector<8x32xf32>
    %139 = tpu.matmul %137, %138, %cst_59 {dimension_numbers = #tpu.dot_dimension_numbers<[1], [0], [0], [1], [0, 0, 1, 1], [], []>} : vector<8x160xf32>, vector<160x32xf32>, vector<8x32xf32> -> vector<8x32xf32>
    %c952 = arith.constant 952 : index
    %c0_60 = arith.constant 0 : index
    %140 = vector.load %arg4[%c952, %c0_60] : memref<1040x32xf32, #tpu.memory_space<vmem>>, vector<1x32xf32>
    %141 = vector.broadcast %140 : vector<1x32xf32> to vector<8x32xf32>
    %142 = arith.addf %139, %141 : vector<8x32xf32>
    %cst_61 = arith.constant 0.000000e+00 : f32
    %143 = vector.broadcast %cst_61 : f32 to vector<8x32xf32>
    %144 = arith.maximumf %142, %143 : vector<8x32xf32>
    %145 = tpu.iota {dimensions = array<i32: 0>} : vector<8x32xi32>
    %c2_i32_62 = arith.constant 2 : i32
    %146 = tpu.dynamic_rotate %144 by %c2_i32_62 dim 0 : vector<8x32xf32>, i32 -> vector<8x32xf32>
    %c-2_i32_63 = arith.constant -2 : i32
    %147 = vector.broadcast %c-2_i32_63 : i32 to vector<8x32xi32>
    %148 = arith.addi %145, %147 : vector<8x32xi32>
    %c0_i32_64 = arith.constant 0 : i32
    %149 = vector.broadcast %c0_i32_64 : i32 to vector<8x32xi32>
    %150 = arith.cmpi sge, %148, %149 : vector<8x32xi32>
    %c-2_i32_65 = arith.constant -2 : i32
    %151 = vector.broadcast %c-2_i32_65 : i32 to vector<8x32xi32>
    %152 = arith.addi %145, %151 : vector<8x32xi32>
    %c8_i32_66 = arith.constant 8 : i32
    %153 = vector.broadcast %c8_i32_66 : i32 to vector<8x32xi32>
    %154 = arith.cmpi slt, %152, %153 : vector<8x32xi32>
    %155 = arith.andi %150, %154 : vector<8x32xi1>
    %cst_67 = arith.constant 0.000000e+00 : f32
    %156 = vector.broadcast %cst_67 : f32 to vector<8x32xf32>
    %157 = arith.select %155, %146, %156 : vector<8x32xi1>, vector<8x32xf32>
    %c1_i32_68 = arith.constant 1 : i32
    %158 = tpu.dynamic_rotate %144 by %c1_i32_68 dim 0 : vector<8x32xf32>, i32 -> vector<8x32xf32>
    %c-1_i32_69 = arith.constant -1 : i32
    %159 = vector.broadcast %c-1_i32_69 : i32 to vector<8x32xi32>
    %160 = arith.addi %145, %159 : vector<8x32xi32>
    %c0_i32_70 = arith.constant 0 : i32
    %161 = vector.broadcast %c0_i32_70 : i32 to vector<8x32xi32>
    %162 = arith.cmpi sge, %160, %161 : vector<8x32xi32>
    %c-1_i32_71 = arith.constant -1 : i32
    %163 = vector.broadcast %c-1_i32_71 : i32 to vector<8x32xi32>
    %164 = arith.addi %145, %163 : vector<8x32xi32>
    %c8_i32_72 = arith.constant 8 : i32
    %165 = vector.broadcast %c8_i32_72 : i32 to vector<8x32xi32>
    %166 = arith.cmpi slt, %164, %165 : vector<8x32xi32>
    %167 = arith.andi %162, %166 : vector<8x32xi1>
    %cst_73 = arith.constant 0.000000e+00 : f32
    %168 = vector.broadcast %cst_73 : f32 to vector<8x32xf32>
    %169 = arith.select %167, %158, %168 : vector<8x32xi1>, vector<8x32xf32>
    %c0_i32_74 = arith.constant 0 : i32
    %170 = vector.broadcast %c0_i32_74 : i32 to vector<8x32xi32>
    %171 = arith.addi %145, %170 : vector<8x32xi32>
    %c0_i32_75 = arith.constant 0 : i32
    %172 = vector.broadcast %c0_i32_75 : i32 to vector<8x32xi32>
    %173 = arith.cmpi sge, %171, %172 : vector<8x32xi32>
    %c0_i32_76 = arith.constant 0 : i32
    %174 = vector.broadcast %c0_i32_76 : i32 to vector<8x32xi32>
    %175 = arith.addi %145, %174 : vector<8x32xi32>
    %c8_i32_77 = arith.constant 8 : i32
    %176 = vector.broadcast %c8_i32_77 : i32 to vector<8x32xi32>
    %177 = arith.cmpi slt, %175, %176 : vector<8x32xi32>
    %178 = arith.andi %173, %177 : vector<8x32xi1>
    %cst_78 = arith.constant 0.000000e+00 : f32
    %179 = vector.broadcast %cst_78 : f32 to vector<8x32xf32>
    %180 = arith.select %178, %144, %179 : vector<8x32xi1>, vector<8x32xf32>
    %c7_i32_79 = arith.constant 7 : i32
    %181 = tpu.dynamic_rotate %144 by %c7_i32_79 dim 0 : vector<8x32xf32>, i32 -> vector<8x32xf32>
    %c1_i32_80 = arith.constant 1 : i32
    %182 = vector.broadcast %c1_i32_80 : i32 to vector<8x32xi32>
    %183 = arith.addi %145, %182 : vector<8x32xi32>
    %c0_i32_81 = arith.constant 0 : i32
    %184 = vector.broadcast %c0_i32_81 : i32 to vector<8x32xi32>
    %185 = arith.cmpi sge, %183, %184 : vector<8x32xi32>
    %c1_i32_82 = arith.constant 1 : i32
    %186 = vector.broadcast %c1_i32_82 : i32 to vector<8x32xi32>
    %187 = arith.addi %145, %186 : vector<8x32xi32>
    %c8_i32_83 = arith.constant 8 : i32
    %188 = vector.broadcast %c8_i32_83 : i32 to vector<8x32xi32>
    %189 = arith.cmpi slt, %187, %188 : vector<8x32xi32>
    %190 = arith.andi %185, %189 : vector<8x32xi1>
    %cst_84 = arith.constant 0.000000e+00 : f32
    %191 = vector.broadcast %cst_84 : f32 to vector<8x32xf32>
    %192 = arith.select %190, %181, %191 : vector<8x32xi1>, vector<8x32xf32>
    %c6_i32_85 = arith.constant 6 : i32
    %193 = tpu.dynamic_rotate %144 by %c6_i32_85 dim 0 : vector<8x32xf32>, i32 -> vector<8x32xf32>
    %c2_i32_86 = arith.constant 2 : i32
    %194 = vector.broadcast %c2_i32_86 : i32 to vector<8x32xi32>
    %195 = arith.addi %145, %194 : vector<8x32xi32>
    %c0_i32_87 = arith.constant 0 : i32
    %196 = vector.broadcast %c0_i32_87 : i32 to vector<8x32xi32>
    %197 = arith.cmpi sge, %195, %196 : vector<8x32xi32>
    %c2_i32_88 = arith.constant 2 : i32
    %198 = vector.broadcast %c2_i32_88 : i32 to vector<8x32xi32>
    %199 = arith.addi %145, %198 : vector<8x32xi32>
    %c8_i32_89 = arith.constant 8 : i32
    %200 = vector.broadcast %c8_i32_89 : i32 to vector<8x32xi32>
    %201 = arith.cmpi slt, %199, %200 : vector<8x32xi32>
    %202 = arith.andi %197, %201 : vector<8x32xi1>
    %cst_90 = arith.constant 0.000000e+00 : f32
    %203 = vector.broadcast %cst_90 : f32 to vector<8x32xf32>
    %204 = arith.select %202, %193, %203 : vector<8x32xi1>, vector<8x32xf32>
    %205 = tpu.concatenate %157, %169, %180, %192, %204 in 1 : vector<8x32xf32>, vector<8x32xf32>, vector<8x32xf32>, vector<8x32xf32>, vector<8x32xf32> -> vector<8x160xf32>
    %c360 = arith.constant 360 : index
    %c0_91 = arith.constant 0 : index
    %206 = vector.load %arg4[%c360, %c0_91] : memref<1040x32xf32, #tpu.memory_space<vmem>>, vector<160x32xf32>
    %cst_92 = arith.constant dense<0.000000e+00> : vector<8x32xf32>
    %207 = tpu.matmul %205, %206, %cst_92 {dimension_numbers = #tpu.dot_dimension_numbers<[1], [0], [0], [1], [0, 0, 1, 1], [], []>} : vector<8x160xf32>, vector<160x32xf32>, vector<8x32xf32> -> vector<8x32xf32>
    %c960 = arith.constant 960 : index
    %c0_93 = arith.constant 0 : index
    %208 = vector.load %arg4[%c960, %c0_93] : memref<1040x32xf32, #tpu.memory_space<vmem>>, vector<1x32xf32>
    %209 = vector.broadcast %208 : vector<1x32xf32> to vector<8x32xf32>
    %210 = arith.addf %207, %209 : vector<8x32xf32>
    %cst_94 = arith.constant 0.000000e+00 : f32
    %211 = vector.broadcast %cst_94 : f32 to vector<8x32xf32>
    %212 = arith.maximumf %210, %211 : vector<8x32xf32>
    %c840 = arith.constant 840 : index
    %c0_95 = arith.constant 0 : index
    %213 = vector.load %arg4[%c840, %c0_95] : memref<1040x32xf32, #tpu.memory_space<vmem>>, vector<32x32xf32>
    %cst_96 = arith.constant dense<0.000000e+00> : vector<8x32xf32>
    %214 = tpu.matmul %212, %213, %cst_96 {dimension_numbers = #tpu.dot_dimension_numbers<[1], [0], [0], [1], [0, 0, 1, 1], [], []>} : vector<8x32xf32>, vector<32x32xf32>, vector<8x32xf32> -> vector<8x32xf32>
    %c984 = arith.constant 984 : index
    %c0_97 = arith.constant 0 : index
    %215 = vector.load %arg4[%c984, %c0_97] : memref<1040x32xf32, #tpu.memory_space<vmem>>, vector<1x32xf32>
    %216 = vector.broadcast %215 : vector<1x32xf32> to vector<8x32xf32>
    %217 = arith.addf %214, %216 : vector<8x32xf32>
    %218 = math.tanh %217 : vector<8x32xf32>
    %cst_98 = arith.constant 0.000000e+00 : f32
    %219 = vector.broadcast %cst_98 : f32 to vector<1x32xf32>
    %220 = tpu.concatenate %218, %219 in 0 : vector<8x32xf32>, vector<1x32xf32> -> vector<9x32xf32>
    %c0_99 = arith.constant 0 : index
    %c0_100 = arith.constant 0 : index
    %c0_101 = arith.constant 0 : index
    %221 = vector.load %arg3[%c0_99, %c0_100, %c0_101] : memref<1x16x32xf32, #tpu.memory_space<vmem>>, vector<1x16x32xf32>
    %222 = vector.shape_cast %221 : vector<1x16x32xf32> to vector<16x32xf32>
    %223 = tpu.iota {dimensions = array<i32: 0>} : vector<16x32xi32>
    %c2_i32_102 = arith.constant 2 : i32
    %224 = tpu.dynamic_rotate %222 by %c2_i32_102 dim 0 : vector<16x32xf32>, i32 -> vector<16x32xf32>
    %c-2_i32_103 = arith.constant -2 : i32
    %225 = vector.broadcast %c-2_i32_103 : i32 to vector<16x32xi32>
    %226 = arith.addi %223, %225 : vector<16x32xi32>
    %c0_i32_104 = arith.constant 0 : i32
    %227 = vector.broadcast %c0_i32_104 : i32 to vector<16x32xi32>
    %228 = arith.cmpi sge, %226, %227 : vector<16x32xi32>
    %c-2_i32_105 = arith.constant -2 : i32
    %229 = vector.broadcast %c-2_i32_105 : i32 to vector<16x32xi32>
    %230 = arith.addi %223, %229 : vector<16x32xi32>
    %c16_i32 = arith.constant 16 : i32
    %231 = vector.broadcast %c16_i32 : i32 to vector<16x32xi32>
    %232 = arith.cmpi slt, %230, %231 : vector<16x32xi32>
    %233 = arith.andi %228, %232 : vector<16x32xi1>
    %cst_106 = arith.constant 0.000000e+00 : f32
    %234 = vector.broadcast %cst_106 : f32 to vector<16x32xf32>
    %235 = arith.select %233, %224, %234 : vector<16x32xi1>, vector<16x32xf32>
    %c1_i32_107 = arith.constant 1 : i32
    %236 = tpu.dynamic_rotate %222 by %c1_i32_107 dim 0 : vector<16x32xf32>, i32 -> vector<16x32xf32>
    %c-1_i32_108 = arith.constant -1 : i32
    %237 = vector.broadcast %c-1_i32_108 : i32 to vector<16x32xi32>
    %238 = arith.addi %223, %237 : vector<16x32xi32>
    %c0_i32_109 = arith.constant 0 : i32
    %239 = vector.broadcast %c0_i32_109 : i32 to vector<16x32xi32>
    %240 = arith.cmpi sge, %238, %239 : vector<16x32xi32>
    %c-1_i32_110 = arith.constant -1 : i32
    %241 = vector.broadcast %c-1_i32_110 : i32 to vector<16x32xi32>
    %242 = arith.addi %223, %241 : vector<16x32xi32>
    %c16_i32_111 = arith.constant 16 : i32
    %243 = vector.broadcast %c16_i32_111 : i32 to vector<16x32xi32>
    %244 = arith.cmpi slt, %242, %243 : vector<16x32xi32>
    %245 = arith.andi %240, %244 : vector<16x32xi1>
    %cst_112 = arith.constant 0.000000e+00 : f32
    %246 = vector.broadcast %cst_112 : f32 to vector<16x32xf32>
    %247 = arith.select %245, %236, %246 : vector<16x32xi1>, vector<16x32xf32>
    %c0_i32_113 = arith.constant 0 : i32
    %248 = vector.broadcast %c0_i32_113 : i32 to vector<16x32xi32>
    %249 = arith.addi %223, %248 : vector<16x32xi32>
    %c0_i32_114 = arith.constant 0 : i32
    %250 = vector.broadcast %c0_i32_114 : i32 to vector<16x32xi32>
    %251 = arith.cmpi sge, %249, %250 : vector<16x32xi32>
    %c0_i32_115 = arith.constant 0 : i32
    %252 = vector.broadcast %c0_i32_115 : i32 to vector<16x32xi32>
    %253 = arith.addi %223, %252 : vector<16x32xi32>
    %c16_i32_116 = arith.constant 16 : i32
    %254 = vector.broadcast %c16_i32_116 : i32 to vector<16x32xi32>
    %255 = arith.cmpi slt, %253, %254 : vector<16x32xi32>
    %256 = arith.andi %251, %255 : vector<16x32xi1>
    %cst_117 = arith.constant 0.000000e+00 : f32
    %257 = vector.broadcast %cst_117 : f32 to vector<16x32xf32>
    %258 = arith.select %256, %222, %257 : vector<16x32xi1>, vector<16x32xf32>
    %c15_i32 = arith.constant 15 : i32
    %259 = tpu.dynamic_rotate %222 by %c15_i32 dim 0 : vector<16x32xf32>, i32 -> vector<16x32xf32>
    %c1_i32_118 = arith.constant 1 : i32
    %260 = vector.broadcast %c1_i32_118 : i32 to vector<16x32xi32>
    %261 = arith.addi %223, %260 : vector<16x32xi32>
    %c0_i32_119 = arith.constant 0 : i32
    %262 = vector.broadcast %c0_i32_119 : i32 to vector<16x32xi32>
    %263 = arith.cmpi sge, %261, %262 : vector<16x32xi32>
    %c1_i32_120 = arith.constant 1 : i32
    %264 = vector.broadcast %c1_i32_120 : i32 to vector<16x32xi32>
    %265 = arith.addi %223, %264 : vector<16x32xi32>
    %c16_i32_121 = arith.constant 16 : i32
    %266 = vector.broadcast %c16_i32_121 : i32 to vector<16x32xi32>
    %267 = arith.cmpi slt, %265, %266 : vector<16x32xi32>
    %268 = arith.andi %263, %267 : vector<16x32xi1>
    %cst_122 = arith.constant 0.000000e+00 : f32
    %269 = vector.broadcast %cst_122 : f32 to vector<16x32xf32>
    %270 = arith.select %268, %259, %269 : vector<16x32xi1>, vector<16x32xf32>
    %c14_i32 = arith.constant 14 : i32
    %271 = tpu.dynamic_rotate %222 by %c14_i32 dim 0 : vector<16x32xf32>, i32 -> vector<16x32xf32>
    %c2_i32_123 = arith.constant 2 : i32
    %272 = vector.broadcast %c2_i32_123 : i32 to vector<16x32xi32>
    %273 = arith.addi %223, %272 : vector<16x32xi32>
    %c0_i32_124 = arith.constant 0 : i32
    %274 = vector.broadcast %c0_i32_124 : i32 to vector<16x32xi32>
    %275 = arith.cmpi sge, %273, %274 : vector<16x32xi32>
    %c2_i32_125 = arith.constant 2 : i32
    %276 = vector.broadcast %c2_i32_125 : i32 to vector<16x32xi32>
    %277 = arith.addi %223, %276 : vector<16x32xi32>
    %c16_i32_126 = arith.constant 16 : i32
    %278 = vector.broadcast %c16_i32_126 : i32 to vector<16x32xi32>
    %279 = arith.cmpi slt, %277, %278 : vector<16x32xi32>
    %280 = arith.andi %275, %279 : vector<16x32xi1>
    %cst_127 = arith.constant 0.000000e+00 : f32
    %281 = vector.broadcast %cst_127 : f32 to vector<16x32xf32>
    %282 = arith.select %280, %271, %281 : vector<16x32xi1>, vector<16x32xf32>
    %283 = tpu.concatenate %235, %247, %258, %270, %282 in 1 : vector<16x32xf32>, vector<16x32xf32>, vector<16x32xf32>, vector<16x32xf32>, vector<16x32xf32> -> vector<16x160xf32>
    %c520 = arith.constant 520 : index
    %c0_128 = arith.constant 0 : index
    %284 = vector.load %arg4[%c520, %c0_128] : memref<1040x32xf32, #tpu.memory_space<vmem>>, vector<160x32xf32>
    %cst_129 = arith.constant dense<0.000000e+00> : vector<16x32xf32>
    %285 = tpu.matmul %283, %284, %cst_129 {dimension_numbers = #tpu.dot_dimension_numbers<[1], [0], [0], [1], [0, 0, 1, 1], [], []>} : vector<16x160xf32>, vector<160x32xf32>, vector<16x32xf32> -> vector<16x32xf32>
    %c968 = arith.constant 968 : index
    %c0_130 = arith.constant 0 : index
    %286 = vector.load %arg4[%c968, %c0_130] : memref<1040x32xf32, #tpu.memory_space<vmem>>, vector<1x32xf32>
    %287 = vector.broadcast %286 : vector<1x32xf32> to vector<16x32xf32>
    %288 = arith.addf %285, %287 : vector<16x32xf32>
    %cst_131 = arith.constant 0.000000e+00 : f32
    %289 = vector.broadcast %cst_131 : f32 to vector<16x32xf32>
    %290 = arith.maximumf %288, %289 : vector<16x32xf32>
    %291 = tpu.iota {dimensions = array<i32: 0>} : vector<16x32xi32>
    %c2_i32_132 = arith.constant 2 : i32
    %292 = tpu.dynamic_rotate %290 by %c2_i32_132 dim 0 : vector<16x32xf32>, i32 -> vector<16x32xf32>
    %c-2_i32_133 = arith.constant -2 : i32
    %293 = vector.broadcast %c-2_i32_133 : i32 to vector<16x32xi32>
    %294 = arith.addi %291, %293 : vector<16x32xi32>
    %c0_i32_134 = arith.constant 0 : i32
    %295 = vector.broadcast %c0_i32_134 : i32 to vector<16x32xi32>
    %296 = arith.cmpi sge, %294, %295 : vector<16x32xi32>
    %c-2_i32_135 = arith.constant -2 : i32
    %297 = vector.broadcast %c-2_i32_135 : i32 to vector<16x32xi32>
    %298 = arith.addi %291, %297 : vector<16x32xi32>
    %c16_i32_136 = arith.constant 16 : i32
    %299 = vector.broadcast %c16_i32_136 : i32 to vector<16x32xi32>
    %300 = arith.cmpi slt, %298, %299 : vector<16x32xi32>
    %301 = arith.andi %296, %300 : vector<16x32xi1>
    %cst_137 = arith.constant 0.000000e+00 : f32
    %302 = vector.broadcast %cst_137 : f32 to vector<16x32xf32>
    %303 = arith.select %301, %292, %302 : vector<16x32xi1>, vector<16x32xf32>
    %c1_i32_138 = arith.constant 1 : i32
    %304 = tpu.dynamic_rotate %290 by %c1_i32_138 dim 0 : vector<16x32xf32>, i32 -> vector<16x32xf32>
    %c-1_i32_139 = arith.constant -1 : i32
    %305 = vector.broadcast %c-1_i32_139 : i32 to vector<16x32xi32>
    %306 = arith.addi %291, %305 : vector<16x32xi32>
    %c0_i32_140 = arith.constant 0 : i32
    %307 = vector.broadcast %c0_i32_140 : i32 to vector<16x32xi32>
    %308 = arith.cmpi sge, %306, %307 : vector<16x32xi32>
    %c-1_i32_141 = arith.constant -1 : i32
    %309 = vector.broadcast %c-1_i32_141 : i32 to vector<16x32xi32>
    %310 = arith.addi %291, %309 : vector<16x32xi32>
    %c16_i32_142 = arith.constant 16 : i32
    %311 = vector.broadcast %c16_i32_142 : i32 to vector<16x32xi32>
    %312 = arith.cmpi slt, %310, %311 : vector<16x32xi32>
    %313 = arith.andi %308, %312 : vector<16x32xi1>
    %cst_143 = arith.constant 0.000000e+00 : f32
    %314 = vector.broadcast %cst_143 : f32 to vector<16x32xf32>
    %315 = arith.select %313, %304, %314 : vector<16x32xi1>, vector<16x32xf32>
    %c0_i32_144 = arith.constant 0 : i32
    %316 = vector.broadcast %c0_i32_144 : i32 to vector<16x32xi32>
    %317 = arith.addi %291, %316 : vector<16x32xi32>
    %c0_i32_145 = arith.constant 0 : i32
    %318 = vector.broadcast %c0_i32_145 : i32 to vector<16x32xi32>
    %319 = arith.cmpi sge, %317, %318 : vector<16x32xi32>
    %c0_i32_146 = arith.constant 0 : i32
    %320 = vector.broadcast %c0_i32_146 : i32 to vector<16x32xi32>
    %321 = arith.addi %291, %320 : vector<16x32xi32>
    %c16_i32_147 = arith.constant 16 : i32
    %322 = vector.broadcast %c16_i32_147 : i32 to vector<16x32xi32>
    %323 = arith.cmpi slt, %321, %322 : vector<16x32xi32>
    %324 = arith.andi %319, %323 : vector<16x32xi1>
    %cst_148 = arith.constant 0.000000e+00 : f32
    %325 = vector.broadcast %cst_148 : f32 to vector<16x32xf32>
    %326 = arith.select %324, %290, %325 : vector<16x32xi1>, vector<16x32xf32>
    %c15_i32_149 = arith.constant 15 : i32
    %327 = tpu.dynamic_rotate %290 by %c15_i32_149 dim 0 : vector<16x32xf32>, i32 -> vector<16x32xf32>
    %c1_i32_150 = arith.constant 1 : i32
    %328 = vector.broadcast %c1_i32_150 : i32 to vector<16x32xi32>
    %329 = arith.addi %291, %328 : vector<16x32xi32>
    %c0_i32_151 = arith.constant 0 : i32
    %330 = vector.broadcast %c0_i32_151 : i32 to vector<16x32xi32>
    %331 = arith.cmpi sge, %329, %330 : vector<16x32xi32>
    %c1_i32_152 = arith.constant 1 : i32
    %332 = vector.broadcast %c1_i32_152 : i32 to vector<16x32xi32>
    %333 = arith.addi %291, %332 : vector<16x32xi32>
    %c16_i32_153 = arith.constant 16 : i32
    %334 = vector.broadcast %c16_i32_153 : i32 to vector<16x32xi32>
    %335 = arith.cmpi slt, %333, %334 : vector<16x32xi32>
    %336 = arith.andi %331, %335 : vector<16x32xi1>
    %cst_154 = arith.constant 0.000000e+00 : f32
    %337 = vector.broadcast %cst_154 : f32 to vector<16x32xf32>
    %338 = arith.select %336, %327, %337 : vector<16x32xi1>, vector<16x32xf32>
    %c14_i32_155 = arith.constant 14 : i32
    %339 = tpu.dynamic_rotate %290 by %c14_i32_155 dim 0 : vector<16x32xf32>, i32 -> vector<16x32xf32>
    %c2_i32_156 = arith.constant 2 : i32
    %340 = vector.broadcast %c2_i32_156 : i32 to vector<16x32xi32>
    %341 = arith.addi %291, %340 : vector<16x32xi32>
    %c0_i32_157 = arith.constant 0 : i32
    %342 = vector.broadcast %c0_i32_157 : i32 to vector<16x32xi32>
    %343 = arith.cmpi sge, %341, %342 : vector<16x32xi32>
    %c2_i32_158 = arith.constant 2 : i32
    %344 = vector.broadcast %c2_i32_158 : i32 to vector<16x32xi32>
    %345 = arith.addi %291, %344 : vector<16x32xi32>
    %c16_i32_159 = arith.constant 16 : i32
    %346 = vector.broadcast %c16_i32_159 : i32 to vector<16x32xi32>
    %347 = arith.cmpi slt, %345, %346 : vector<16x32xi32>
    %348 = arith.andi %343, %347 : vector<16x32xi1>
    %cst_160 = arith.constant 0.000000e+00 : f32
    %349 = vector.broadcast %cst_160 : f32 to vector<16x32xf32>
    %350 = arith.select %348, %339, %349 : vector<16x32xi1>, vector<16x32xf32>
    %351 = tpu.concatenate %303, %315, %326, %338, %350 in 1 : vector<16x32xf32>, vector<16x32xf32>, vector<16x32xf32>, vector<16x32xf32>, vector<16x32xf32> -> vector<16x160xf32>
    %c680 = arith.constant 680 : index
    %c0_161 = arith.constant 0 : index
    %352 = vector.load %arg4[%c680, %c0_161] : memref<1040x32xf32, #tpu.memory_space<vmem>>, vector<160x32xf32>
    %cst_162 = arith.constant dense<0.000000e+00> : vector<16x32xf32>
    %353 = tpu.matmul %351, %352, %cst_162 {dimension_numbers = #tpu.dot_dimension_numbers<[1], [0], [0], [1], [0, 0, 1, 1], [], []>} : vector<16x160xf32>, vector<160x32xf32>, vector<16x32xf32> -> vector<16x32xf32>
    %c976 = arith.constant 976 : index
    %c0_163 = arith.constant 0 : index
    %354 = vector.load %arg4[%c976, %c0_163] : memref<1040x32xf32, #tpu.memory_space<vmem>>, vector<1x32xf32>
    %355 = vector.broadcast %354 : vector<1x32xf32> to vector<16x32xf32>
    %356 = arith.addf %353, %355 : vector<16x32xf32>
    %cst_164 = arith.constant 0.000000e+00 : f32
    %357 = vector.broadcast %cst_164 : f32 to vector<16x32xf32>
    %358 = arith.maximumf %356, %357 : vector<16x32xf32>
    %c872 = arith.constant 872 : index
    %c0_165 = arith.constant 0 : index
    %359 = vector.load %arg4[%c872, %c0_165] : memref<1040x32xf32, #tpu.memory_space<vmem>>, vector<32x32xf32>
    %cst_166 = arith.constant dense<0.000000e+00> : vector<16x32xf32>
    %360 = tpu.matmul %358, %359, %cst_166 {dimension_numbers = #tpu.dot_dimension_numbers<[1], [0], [0], [1], [0, 0, 1, 1], [], []>} : vector<16x32xf32>, vector<32x32xf32>, vector<16x32xf32> -> vector<16x32xf32>
    %c992 = arith.constant 992 : index
    %c0_167 = arith.constant 0 : index
    %361 = vector.load %arg4[%c992, %c0_167] : memref<1040x32xf32, #tpu.memory_space<vmem>>, vector<1x32xf32>
    %362 = vector.broadcast %361 : vector<1x32xf32> to vector<16x32xf32>
    %363 = arith.addf %360, %362 : vector<16x32xf32>
    %364 = math.tanh %363 : vector<16x32xf32>
    %cst_168 = arith.constant 0.000000e+00 : f32
    %365 = vector.broadcast %cst_168 : f32 to vector<1x32xf32>
    %366 = tpu.concatenate %364, %365 in 0 : vector<16x32xf32>, vector<1x32xf32> -> vector<17x32xf32>
    %c1016 = arith.constant 1016 : index
    %c0_169 = arith.constant 0 : index
    %367 = vector.load %arg4[%c1016, %c0_169] : memref<1040x32xf32, #tpu.memory_space<vmem>>, vector<17x32xf32>
    %368 = arith.addf %366, %367 : vector<17x32xf32>
    %c904 = arith.constant 904 : index
    %c0_170 = arith.constant 0 : index
    %369 = vector.load %arg4[%c904, %c0_170] : memref<1040x32xf32, #tpu.memory_space<vmem>>, vector<32x16xf32>
    %cst_171 = arith.constant dense<0.000000e+00> : vector<17x16xf32>
    %370 = tpu.matmul %368, %369, %cst_171 {dimension_numbers = #tpu.dot_dimension_numbers<[1], [0], [0], [1], [0, 0, 1, 1], [], []>} : vector<17x32xf32>, vector<32x16xf32>, vector<17x16xf32> -> vector<17x16xf32>
    %c1000 = arith.constant 1000 : index
    %c0_172 = arith.constant 0 : index
    %371 = vector.load %arg4[%c1000, %c0_172] : memref<1040x32xf32, #tpu.memory_space<vmem>>, vector<1x16xf32>
    %372 = vector.broadcast %371 : vector<1x16xf32> to vector<17x16xf32>
    %373 = arith.addf %370, %372 : vector<17x16xf32>
    %c936 = arith.constant 936 : index
    %c0_173 = arith.constant 0 : index
    %374 = vector.load %arg4[%c936, %c0_173] : memref<1040x32xf32, #tpu.memory_space<vmem>>, vector<1x32xf32>
    %c1008 = arith.constant 1008 : index
    %c0_174 = arith.constant 0 : index
    %375 = vector.load %arg4[%c1008, %c0_174] : memref<1040x32xf32, #tpu.memory_space<vmem>>, vector<1x1xf32>
    %376 = vector.broadcast %374 : vector<1x32xf32> to vector<9x32xf32>
    %377 = arith.mulf %220, %376 : vector<9x32xf32>
    %cst_175 = arith.constant dense<0.000000e+00> : vector<9xf32>
    %378 = vector.multi_reduction <add>, %377, %cst_175 [1] : vector<9x32xf32> to vector<9xf32>
    %379 = vector.shape_cast %378 : vector<9xf32> to vector<9x1xf32>
    %380 = vector.broadcast %375 : vector<1x1xf32> to vector<9x1xf32>
    %381 = arith.addf %379, %380 : vector<9x1xf32>
    %cst_176 = arith.constant 0.000000e+00 : f32
    %382 = vector.broadcast %cst_176 : f32 to vector<9x1xf32>
    %383 = arith.maximumf %381, %382 : vector<9x1xf32>
    %384 = tpu.iota {dimensions = array<i32: 0>} : vector<9x9xi32>
    %385 = tpu.iota {dimensions = array<i32: 1>} : vector<9x9xi32>
    %386 = arith.cmpi sle, %385, %384 : vector<9x9xi32>
    %387 = arith.extui %386 : vector<9x9xi1> to vector<9x9xi32>
    %388 = arith.sitofp %387 : vector<9x9xi32> to vector<9x9xf32>
    %cst_177 = arith.constant dense<0.000000e+00> : vector<9x1xf32>
    %389 = tpu.matmul %388, %383, %cst_177 {dimension_numbers = #tpu.dot_dimension_numbers<[1], [0], [0], [1], [0, 0, 1, 1], [], []>} : vector<9x9xf32>, vector<9x1xf32>, vector<9x1xf32> -> vector<9x1xf32>
    %390 = arith.index_cast %arg0 : i32 to index
    %391 = memref.load %arg1[%390] : memref<2xi32, #tpu.memory_space<smem>>
    %392 = tpu.iota {dimensions = array<i32: 0>} : vector<9x1xi32>
    %c1_i32_178 = arith.constant 1 : i32
    %393 = arith.subi %391, %c1_i32_178 : i32
    %394 = vector.broadcast %393 : i32 to vector<9x1xi32>
    %395 = arith.cmpi eq, %392, %394 : vector<9x1xi32>
    %396 = arith.extui %395 : vector<9x1xi1> to vector<9x1xi32>
    %397 = arith.sitofp %396 : vector<9x1xi32> to vector<9x1xf32>
    %398 = arith.mulf %389, %397 : vector<9x1xf32>
    %399 = vector.shape_cast %398 : vector<9x1xf32> to vector<1x9x1xf32>
    %cst_179 = arith.constant dense<0.000000e+00> : vector<1xf32>
    %400 = vector.multi_reduction <add>, %399, %cst_179 [1, 2] : vector<1x9x1xf32> to vector<1xf32>
    %401 = vector.shape_cast %400 : vector<1xf32> to vector<1x1x1xf32>
    %402 = vector.extract %401[0, 0, 0] : f32 from vector<1x1x1xf32>
    %cst_180 = arith.constant 1.000000e+00 : f32
    %403 = vector.broadcast %cst_180 : f32 to vector<9x1xf32>
    %404 = vector.broadcast %402 : f32 to vector<9x1xf32>
    %405 = arith.mulf %404, %403 : vector<9x1xf32>
    %cst_181 = arith.constant 0.000000e+00 : f32
    %406 = vector.broadcast %cst_181 : f32 to vector<9x94xf32>
    %407 = tpu.concatenate %220, %389, %405, %406 in 1 : vector<9x32xf32>, vector<9x1xf32>, vector<9x1xf32>, vector<9x94xf32> -> vector<9x128xf32>
    %cst_182 = arith.constant 0.000000e+00 : f32
    %408 = vector.broadcast %cst_182 : f32 to vector<7x128xf32>
    %409 = tpu.concatenate %407, %408 in 0 : vector<9x128xf32>, vector<7x128xf32> -> vector<16x128xf32>
    %cst_183 = arith.constant 0.000000e+00 : f32
    %410 = vector.broadcast %cst_183 : f32 to vector<17x80xf32>
    %411 = tpu.concatenate %366, %373, %410 in 1 : vector<17x32xf32>, vector<17x16xf32>, vector<17x80xf32> -> vector<17x128xf32>
    %cst_184 = arith.constant 0.000000e+00 : f32
    %412 = vector.broadcast %cst_184 : f32 to vector<7x128xf32>
    %413 = tpu.concatenate %411, %412 in 0 : vector<17x128xf32>, vector<7x128xf32> -> vector<24x128xf32>
    %414 = tpu.concatenate %409, %413 in 0 : vector<16x128xf32>, vector<24x128xf32> -> vector<40x128xf32>
    %c0_185 = arith.constant 0 : index
    %c0_186 = arith.constant 0 : index
    %c0_187 = arith.constant 0 : index
    %415 = vector.load %arg5[%c0_185, %c0_186, %c0_187] : memref<1x40x128xf32, #tpu.memory_space<vmem>>, vector<1x40x128xf32>
    %416 = vector.shape_cast %415 : vector<1x40x128xf32> to vector<40x128xf32>
    %417 = vector.shape_cast %414 : vector<40x128xf32> to vector<1x40x128xf32>
    tpu.vector_store %arg5[%c0_185, %c0_186, %c0_187], %417 {strides = array<i32>} : memref<1x40x128xf32, #tpu.memory_space<vmem>>, vector<1x40x128xf32>,
    return
  }
  func.func @transform_0(%arg0: i32, %arg1: memref<2xi32, #tpu.memory_space<smem>>) -> (i32, i32, i32) {
    %c0_i32 = arith.constant 0 : i32
    %c0_i32_0 = arith.constant 0 : i32
    %c0_i32_1 = arith.constant 0 : i32
    return %arg0, %c0_i32, %c0_i32_0 : i32, i32, i32
  }
  func.func @transform_1(%arg0: i32, %arg1: memref<2xi32, #tpu.memory_space<smem>>) -> (i32, i32, i32) {
    %c0_i32 = arith.constant 0 : i32
    %c0_i32_0 = arith.constant 0 : i32
    %c0_i32_1 = arith.constant 0 : i32
    return %arg0, %c0_i32, %c0_i32_0 : i32, i32, i32
  }
  func.func @transform_2(%arg0: i32, %arg1: memref<2xi32, #tpu.memory_space<smem>>) -> (i32, i32) {
    %c0_i32 = arith.constant 0 : i32
    %c0_i32_0 = arith.constant 0 : i32
    %c0_i32_1 = arith.constant 0 : i32
    return %c0_i32, %c0_i32_0 : i32, i32
  }
  func.func @transform_3(%arg0: i32, %arg1: memref<2xi32, #tpu.memory_space<smem>>) -> (i32, i32, i32) {
    %c0_i32 = arith.constant 0 : i32
    %c0_i32_0 = arith.constant 0 : i32
    %c0_i32_1 = arith.constant 0 : i32
    return %arg0, %c0_i32, %c0_i32_0 : i32, i32, i32
  }
}

module attributes {stable_mosaic.version = 11 : i64} {
  func.func @_att_kernel(%arg0: i32, %arg1: memref<2xi32, #tpu.memory_space<smem>>, %arg2: memref<2xi32, #tpu.memory_space<smem>>, %arg3: memref<1x40x128xf32, #tpu.memory_space<vmem>>, %arg4: memref<1x9x32xf32, #tpu.memory_space<vmem>>, %arg5: memref<264x64xf32, #tpu.memory_space<vmem>>, %arg6: memref<1x40x128xf32, #tpu.memory_space<vmem>>) attributes {dimension_semantics = [#tpu.dimension_semantics<parallel>], iteration_bounds = array<i64: 2>, scalar_prefetch = 2 : i64, scratch_operands = 0 : i64, tpu.core_type = #tpu.core_type<tc>, window_params = [{transform_indices = @transform_0, window_bounds = array<i64: 1, 40, 128>}, {transform_indices = @transform_1, window_bounds = array<i64: 1, 9, 32>}, {pipeline_mode = #tpu.pipeline_mode<synchronous>, transform_indices = @transform_2, window_bounds = array<i64: 264, 64>}, {transform_indices = @transform_3, window_bounds = array<i64: 1, 40, 128>}]} {
    %0 = arith.index_cast %arg0 : i32 to index
    %1 = memref.load %arg1[%0] : memref<2xi32, #tpu.memory_space<smem>>
    %2 = arith.index_cast %arg0 : i32 to index
    %3 = memref.load %arg2[%2] : memref<2xi32, #tpu.memory_space<smem>>
    %c0 = arith.constant 0 : index
    %c0_0 = arith.constant 0 : index
    %c0_1 = arith.constant 0 : index
    %4 = vector.load %arg3[%c0, %c0_0, %c0_1] : memref<1x40x128xf32, #tpu.memory_space<vmem>>, vector<1x40x128xf32>
    %5 = vector.shape_cast %4 : vector<1x40x128xf32> to vector<40x128xf32>
    %6 = vector.extract_strided_slice %5 {offsets = [0, 0], sizes = [9, 32], strides = [1, 1]} : vector<40x128xf32> to vector<9x32xf32>
    %7 = vector.extract_strided_slice %5 {offsets = [16, 0], sizes = [17, 32], strides = [1, 1]} : vector<40x128xf32> to vector<17x32xf32>
    %8 = vector.extract_strided_slice %5 {offsets = [16, 32], sizes = [17, 16], strides = [1, 1]} : vector<40x128xf32> to vector<17x16xf32>
    %c0_2 = arith.constant 0 : index
    %c0_3 = arith.constant 0 : index
    %c0_4 = arith.constant 0 : index
    %9 = vector.load %arg4[%c0_2, %c0_3, %c0_4] : memref<1x9x32xf32, #tpu.memory_space<vmem>>, vector<1x9x32xf32>
    %10 = vector.shape_cast %9 : vector<1x9x32xf32> to vector<9x32xf32>
    %11 = arith.addf %6, %10 : vector<9x32xf32>
    %c0_5 = arith.constant 0 : index
    %c0_6 = arith.constant 0 : index
    %12 = vector.load %arg5[%c0_5, %c0_6] : memref<264x64xf32, #tpu.memory_space<vmem>>, vector<32x16xf32>
    %cst = arith.constant dense<0.000000e+00> : vector<9x16xf32>
    %13 = tpu.matmul %11, %12, %cst {dimension_numbers = #tpu.dot_dimension_numbers<[1], [0], [0], [1], [0, 0, 1, 1], [], []>} : vector<9x32xf32>, vector<32x16xf32>, vector<9x16xf32> -> vector<9x16xf32>
    %c32 = arith.constant 32 : index
    %c0_7 = arith.constant 0 : index
    %14 = vector.load %arg5[%c32, %c0_7] : memref<264x64xf32, #tpu.memory_space<vmem>>, vector<1x16xf32>
    %15 = vector.broadcast %14 : vector<1x16xf32> to vector<9x16xf32>
    %16 = arith.addf %13, %15 : vector<9x16xf32>
    %cst_8 = arith.constant 2.500000e-01 : f32
    %17 = vector.broadcast %cst_8 : f32 to vector<9x16xf32>
    %18 = arith.mulf %16, %17 : vector<9x16xf32>
    %cst_9 = arith.constant dense<0.000000e+00> : vector<9x17xf32>
    %19 = tpu.matmul %18, %8, %cst_9 {dimension_numbers = #tpu.dot_dimension_numbers<[1], [1], [0], [0], [0, 0, 1, 0], [], []>} : vector<9x16xf32>, vector<17x16xf32>, vector<9x17xf32> -> vector<9x17xf32>
    %cst_10 = arith.constant dense<0.000000e+00> : vector<17x9xf32>
    %20 = tpu.matmul %8, %18, %cst_10 {dimension_numbers = #tpu.dot_dimension_numbers<[1], [1], [0], [0], [0, 0, 1, 0], [], []>} : vector<17x16xf32>, vector<9x16xf32>, vector<17x9xf32> -> vector<17x9xf32>
    %21 = tpu.iota {dimensions = array<i32: 1>} : vector<9x17xi32>
    %22 = vector.broadcast %3 : i32 to vector<9x17xi32>
    %23 = arith.cmpi slt, %21, %22 : vector<9x17xi32>
    %c16_i32 = arith.constant 16 : i32
    %24 = vector.broadcast %c16_i32 : i32 to vector<9x17xi32>
    %25 = arith.cmpi eq, %21, %24 : vector<9x17xi32>
    %26 = arith.ori %23, %25 : vector<9x17xi1>
    %cst_11 = arith.constant -1.000000e+09 : f32
    %27 = vector.broadcast %cst_11 : f32 to vector<9x17xf32>
    %28 = arith.select %26, %19, %27 : vector<9x17xi1>, vector<9x17xf32>
    %cst_12 = arith.constant dense<0xFF800000> : vector<9xf32>
    %29 = vector.multi_reduction <maximumf>, %28, %cst_12 [1] : vector<9x17xf32> to vector<9xf32>
    %30 = vector.shape_cast %29 : vector<9xf32> to vector<9x1xf32>
    %31 = vector.broadcast %30 : vector<9x1xf32> to vector<9x17xf32>
    %32 = arith.subf %28, %31 : vector<9x17xf32>
    %33 = math.exp %32 : vector<9x17xf32>
    %cst_13 = arith.constant dense<0.000000e+00> : vector<9xf32>
    %34 = vector.multi_reduction <add>, %33, %cst_13 [1] : vector<9x17xf32> to vector<9xf32>
    %35 = vector.shape_cast %34 : vector<9xf32> to vector<9x1xf32>
    %36 = vector.broadcast %35 : vector<9x1xf32> to vector<9x17xf32>
    %37 = arith.divf %33, %36 : vector<9x17xf32>
    %38 = tpu.iota {dimensions = array<i32: 1>} : vector<17x9xi32>
    %39 = vector.broadcast %1 : i32 to vector<17x9xi32>
    %40 = arith.cmpi slt, %38, %39 : vector<17x9xi32>
    %c8_i32 = arith.constant 8 : i32
    %41 = vector.broadcast %c8_i32 : i32 to vector<17x9xi32>
    %42 = arith.cmpi eq, %38, %41 : vector<17x9xi32>
    %43 = arith.ori %40, %42 : vector<17x9xi1>
    %cst_14 = arith.constant -1.000000e+09 : f32
    %44 = vector.broadcast %cst_14 : f32 to vector<17x9xf32>
    %45 = arith.select %43, %20, %44 : vector<17x9xi1>, vector<17x9xf32>
    %cst_15 = arith.constant dense<0xFF800000> : vector<17xf32>
    %46 = vector.multi_reduction <maximumf>, %45, %cst_15 [1] : vector<17x9xf32> to vector<17xf32>
    %47 = vector.shape_cast %46 : vector<17xf32> to vector<17x1xf32>
    %48 = vector.broadcast %47 : vector<17x1xf32> to vector<17x9xf32>
    %49 = arith.subf %45, %48 : vector<17x9xf32>
    %50 = math.exp %49 : vector<17x9xf32>
    %cst_16 = arith.constant dense<0.000000e+00> : vector<17xf32>
    %51 = vector.multi_reduction <add>, %50, %cst_16 [1] : vector<17x9xf32> to vector<17xf32>
    %52 = vector.shape_cast %51 : vector<17xf32> to vector<17x1xf32>
    %53 = vector.broadcast %52 : vector<17x1xf32> to vector<17x9xf32>
    %54 = arith.divf %50, %53 : vector<17x9xf32>
    %cst_17 = arith.constant dense<0.000000e+00> : vector<9x32xf32>
    %55 = tpu.matmul %37, %7, %cst_17 {dimension_numbers = #tpu.dot_dimension_numbers<[1], [0], [0], [1], [0, 0, 1, 1], [], []>} : vector<9x17xf32>, vector<17x32xf32>, vector<9x32xf32> -> vector<9x32xf32>
    %cst_18 = arith.constant dense<0.000000e+00> : vector<17x32xf32>
    %56 = tpu.matmul %54, %6, %cst_18 {dimension_numbers = #tpu.dot_dimension_numbers<[1], [0], [0], [1], [0, 0, 1, 1], [], []>} : vector<17x9xf32>, vector<9x32xf32>, vector<17x32xf32> -> vector<17x32xf32>
    %c40 = arith.constant 40 : index
    %c0_19 = arith.constant 0 : index
    %57 = vector.load %arg5[%c40, %c0_19] : memref<264x64xf32, #tpu.memory_space<vmem>>, vector<32x32xf32>
    %cst_20 = arith.constant dense<0.000000e+00> : vector<9x32xf32>
    %58 = tpu.matmul %55, %57, %cst_20 {dimension_numbers = #tpu.dot_dimension_numbers<[1], [0], [0], [1], [0, 0, 1, 1], [], []>} : vector<9x32xf32>, vector<32x32xf32>, vector<9x32xf32> -> vector<9x32xf32>
    %c72 = arith.constant 72 : index
    %c0_21 = arith.constant 0 : index
    %59 = vector.load %arg5[%c72, %c0_21] : memref<264x64xf32, #tpu.memory_space<vmem>>, vector<1x32xf32>
    %60 = vector.broadcast %59 : vector<1x32xf32> to vector<9x32xf32>
    %61 = arith.addf %58, %60 : vector<9x32xf32>
    %cst_22 = arith.constant 0.000000e+00 : f32
    %62 = vector.broadcast %cst_22 : f32 to vector<9x32xf32>
    %63 = arith.maximumf %61, %62 : vector<9x32xf32>
    %c80 = arith.constant 80 : index
    %c0_23 = arith.constant 0 : index
    %64 = vector.load %arg5[%c80, %c0_23] : memref<264x64xf32, #tpu.memory_space<vmem>>, vector<32x40xf32>
    %cst_24 = arith.constant dense<0.000000e+00> : vector<9x40xf32>
    %65 = tpu.matmul %63, %64, %cst_24 {dimension_numbers = #tpu.dot_dimension_numbers<[1], [0], [0], [1], [0, 0, 1, 1], [], []>} : vector<9x32xf32>, vector<32x40xf32>, vector<9x40xf32> -> vector<9x40xf32>
    %c112 = arith.constant 112 : index
    %c0_25 = arith.constant 0 : index
    %66 = vector.load %arg5[%c112, %c0_25] : memref<264x64xf32, #tpu.memory_space<vmem>>, vector<1x40xf32>
    %67 = vector.broadcast %66 : vector<1x40xf32> to vector<9x40xf32>
    %68 = arith.addf %65, %67 : vector<9x40xf32>
    %c120 = arith.constant 120 : index
    %c0_26 = arith.constant 0 : index
    %69 = vector.load %arg5[%c120, %c0_26] : memref<264x64xf32, #tpu.memory_space<vmem>>, vector<32x32xf32>
    %cst_27 = arith.constant dense<0.000000e+00> : vector<17x32xf32>
    %70 = tpu.matmul %56, %69, %cst_27 {dimension_numbers = #tpu.dot_dimension_numbers<[1], [0], [0], [1], [0, 0, 1, 1], [], []>} : vector<17x32xf32>, vector<32x32xf32>, vector<17x32xf32> -> vector<17x32xf32>
    %c152 = arith.constant 152 : index
    %c0_28 = arith.constant 0 : index
    %71 = vector.load %arg5[%c152, %c0_28] : memref<264x64xf32, #tpu.memory_space<vmem>>, vector<1x32xf32>
    %72 = vector.broadcast %71 : vector<1x32xf32> to vector<17x32xf32>
    %73 = arith.addf %70, %72 : vector<17x32xf32>
    %cst_29 = arith.constant 0.000000e+00 : f32
    %74 = vector.broadcast %cst_29 : f32 to vector<17x32xf32>
    %75 = arith.maximumf %73, %74 : vector<17x32xf32>
    %c160 = arith.constant 160 : index
    %c0_30 = arith.constant 0 : index
    %76 = vector.load %arg5[%c160, %c0_30] : memref<264x64xf32, #tpu.memory_space<vmem>>, vector<32x20xf32>
    %cst_31 = arith.constant dense<0.000000e+00> : vector<17x20xf32>
    %77 = tpu.matmul %75, %76, %cst_31 {dimension_numbers = #tpu.dot_dimension_numbers<[1], [0], [0], [1], [0, 0, 1, 1], [], []>} : vector<17x32xf32>, vector<32x20xf32>, vector<17x20xf32> -> vector<17x20xf32>
    %c192 = arith.constant 192 : index
    %c0_32 = arith.constant 0 : index
    %78 = vector.load %arg5[%c192, %c0_32] : memref<264x64xf32, #tpu.memory_space<vmem>>, vector<1x20xf32>
    %79 = vector.broadcast %78 : vector<1x20xf32> to vector<17x20xf32>
    %80 = arith.addf %77, %79 : vector<17x20xf32>
    %c240 = arith.constant 240 : index
    %c0_33 = arith.constant 0 : index
    %81 = vector.load %arg5[%c240, %c0_33] : memref<264x64xf32, #tpu.memory_space<vmem>>, vector<17x32xf32>
    %cst_34 = arith.constant dense<0.000000e+00> : vector<9x32xf32>
    %82 = tpu.matmul %37, %81, %cst_34 {dimension_numbers = #tpu.dot_dimension_numbers<[1], [0], [0], [1], [0, 0, 1, 1], [], []>} : vector<9x17xf32>, vector<17x32xf32>, vector<9x32xf32> -> vector<9x32xf32>
    %c200 = arith.constant 200 : index
    %c0_35 = arith.constant 0 : index
    %83 = vector.load %arg5[%c200, %c0_35] : memref<264x64xf32, #tpu.memory_space<vmem>>, vector<32x2xf32>
    %cst_36 = arith.constant dense<0.000000e+00> : vector<9x2xf32>
    %84 = tpu.matmul %6, %83, %cst_36 {dimension_numbers = #tpu.dot_dimension_numbers<[1], [0], [0], [1], [0, 0, 1, 1], [], []>} : vector<9x32xf32>, vector<32x2xf32>, vector<9x2xf32> -> vector<9x2xf32>
    %c232 = arith.constant 232 : index
    %c0_37 = arith.constant 0 : index
    %85 = vector.load %arg5[%c232, %c0_37] : memref<264x64xf32, #tpu.memory_space<vmem>>, vector<1x2xf32>
    %86 = vector.broadcast %85 : vector<1x2xf32> to vector<9x2xf32>
    %87 = arith.addf %84, %86 : vector<9x2xf32>
    %88 = vector.extract_strided_slice %87 {offsets = [0, 0], sizes = [9, 1], strides = [1, 1]} : vector<9x2xf32> to vector<9x1xf32>
    %89 = vector.shape_cast %88 : vector<9x1xf32> to vector<9x1xf32>
    %90 = vector.broadcast %89 : vector<9x1xf32> to vector<9x16xf32>
    %91 = vector.extract_strided_slice %87 {offsets = [0, 1], sizes = [9, 1], strides = [1, 1]} : vector<9x2xf32> to vector<9x1xf32>
    %92 = vector.shape_cast %91 : vector<9x1xf32> to vector<9x1xf32>
    %93 = vector.broadcast %92 : vector<9x1xf32> to vector<9x16xf32>
    %94 = tpu.concatenate %90, %93 in 1 : vector<9x16xf32>, vector<9x16xf32> -> vector<9x32xf32>
    %95 = arith.addf %82, %94 : vector<9x32xf32>
    %96 = vector.extract_strided_slice %95 {offsets = [0, 0], sizes = [8, 32], strides = [1, 1]} : vector<9x32xf32> to vector<8x32xf32>
    %cst_38 = arith.constant 0.000000e+00 : f32
    %97 = vector.broadcast %cst_38 : f32 to vector<8x32xf32>
    %98 = arith.subf %97, %96 : vector<8x32xf32>
    %99 = math.exp %98 : vector<8x32xf32>
    %cst_39 = arith.constant 1.000000e+00 : f32
    %100 = vector.broadcast %cst_39 : f32 to vector<8x32xf32>
    %101 = arith.addf %100, %99 : vector<8x32xf32>
    %cst_40 = arith.constant 1.000000e+00 : f32
    %102 = vector.broadcast %cst_40 : f32 to vector<8x32xf32>
    %103 = arith.divf %102, %101 : vector<8x32xf32>
    %cst_41 = arith.constant 0.000000e+00 : f32
    %104 = vector.broadcast %cst_41 : f32 to vector<1x32xf32>
    %105 = tpu.concatenate %103, %104 in 0 : vector<8x32xf32>, vector<1x32xf32> -> vector<9x32xf32>
    %cst_42 = arith.constant 0.000000e+00 : f32
    %106 = vector.broadcast %cst_42 : f32 to vector<9x39xf32>
    %107 = tpu.concatenate %68, %37, %105, %106 in 1 : vector<9x40xf32>, vector<9x17xf32>, vector<9x32xf32>, vector<9x39xf32> -> vector<9x128xf32>
    %cst_43 = arith.constant 0.000000e+00 : f32
    %108 = vector.broadcast %cst_43 : f32 to vector<7x128xf32>
    %109 = tpu.concatenate %107, %108 in 0 : vector<9x128xf32>, vector<7x128xf32> -> vector<16x128xf32>
    %cst_44 = arith.constant 0.000000e+00 : f32
    %110 = vector.broadcast %cst_44 : f32 to vector<17x99xf32>
    %111 = tpu.concatenate %80, %54, %110 in 1 : vector<17x20xf32>, vector<17x9xf32>, vector<17x99xf32> -> vector<17x128xf32>
    %cst_45 = arith.constant 0.000000e+00 : f32
    %112 = vector.broadcast %cst_45 : f32 to vector<7x128xf32>
    %113 = tpu.concatenate %111, %112 in 0 : vector<17x128xf32>, vector<7x128xf32> -> vector<24x128xf32>
    %114 = tpu.concatenate %109, %113 in 0 : vector<16x128xf32>, vector<24x128xf32> -> vector<40x128xf32>
    %c0_46 = arith.constant 0 : index
    %c0_47 = arith.constant 0 : index
    %c0_48 = arith.constant 0 : index
    %115 = vector.load %arg6[%c0_46, %c0_47, %c0_48] : memref<1x40x128xf32, #tpu.memory_space<vmem>>, vector<1x40x128xf32>
    %116 = vector.shape_cast %115 : vector<1x40x128xf32> to vector<40x128xf32>
    %117 = vector.shape_cast %114 : vector<40x128xf32> to vector<1x40x128xf32>
    tpu.vector_store %arg6[%c0_46, %c0_47, %c0_48], %117 {strides = array<i32>} : memref<1x40x128xf32, #tpu.memory_space<vmem>>, vector<1x40x128xf32>,
    return
  }
  func.func @transform_0(%arg0: i32, %arg1: memref<2xi32, #tpu.memory_space<smem>>, %arg2: memref<2xi32, #tpu.memory_space<smem>>) -> (i32, i32, i32) {
    %c0_i32 = arith.constant 0 : i32
    %c0_i32_0 = arith.constant 0 : i32
    %c0_i32_1 = arith.constant 0 : i32
    return %arg0, %c0_i32, %c0_i32_0 : i32, i32, i32
  }
  func.func @transform_1(%arg0: i32, %arg1: memref<2xi32, #tpu.memory_space<smem>>, %arg2: memref<2xi32, #tpu.memory_space<smem>>) -> (i32, i32, i32) {
    %c0_i32 = arith.constant 0 : i32
    %c0_i32_0 = arith.constant 0 : i32
    %c0_i32_1 = arith.constant 0 : i32
    return %arg0, %c0_i32, %c0_i32_0 : i32, i32, i32
  }
  func.func @transform_2(%arg0: i32, %arg1: memref<2xi32, #tpu.memory_space<smem>>, %arg2: memref<2xi32, #tpu.memory_space<smem>>) -> (i32, i32) {
    %c0_i32 = arith.constant 0 : i32
    %c0_i32_0 = arith.constant 0 : i32
    %c0_i32_1 = arith.constant 0 : i32
    return %c0_i32, %c0_i32_0 : i32, i32
  }
  func.func @transform_3(%arg0: i32, %arg1: memref<2xi32, #tpu.memory_space<smem>>, %arg2: memref<2xi32, #tpu.memory_space<smem>>) -> (i32, i32, i32) {
    %c0_i32 = arith.constant 0 : i32
    %c0_i32_0 = arith.constant 0 : i32
    %c0_i32_1 = arith.constant 0 : i32
    return %arg0, %c0_i32, %c0_i32_0 : i32, i32, i32
  }
}

</mosaic_0001>

<llo_original>
// kernel: neufa_mep_forward.2
$region0: #{neufa_mep_forward.2}
  #allocation0 [shape = 'u32[]', space=smem, size = 0x4, offset = 0x4, fixed_abs, tag = 'smem constant byte address 0x4 - core index']
  #allocation1 [shape = 'u32[72,128]{1,0:T(1,128)}', space=vmem, size = 0x9000, scoped, tag = 'internal scratch']
  #allocation2 [shape = 's32[1]{0}', space=sflag, size = 0x4, scoped, tag = 'scoped memory for neufa_mep_forward.2']
  #allocation3 [shape = 'u8[512]{0}', space=smem, size = 0x200, scoped, tag = 'prefetched SMEM operand 0']
  %s0 = inlined_call_operand.vmem [shape: s32[2], index: 0, kind: input, shape index: {}]
  %s1 = inlined_call_operand.vmem [shape: s32[2,8,1], index: 1, kind: input, shape index: {}]
  %s2 = inlined_call_operand.vmem [shape: f32[2,16,32], index: 2, kind: input, shape index: {}]
  %s3 = inlined_call_operand.vmem [shape: f32[1040,32], index: 3, kind: input, shape index: {}]
  %s4 = inlined_call_operand.vmem [shape: f32[2,40,128], index: 4, kind: output, shape index: {}]
  %s5 = sld [smem:[#allocation0]]
  $region45: #{neufa_mep_forward.2} parent=0
    _
  %s7 = ssub.s32 1, %s5
  %s8 = scalar_select 0, %s7, %s5
  %s10 = sshll.u32 %s0, 4
  %s11 = int_to_ptr.vmem [resolvable:$true] %s10
  %13 = dma.vmem_to_smem %s11, 16, [#allocation3], [#allocation2]
  %15 = dma.done [#allocation2], 16
  %16 = sfence
  loop: start=0, step=1, limit=4
  $region2: #{neufa_mep_forward.2} parent=0 // loop_pre_header
    _
  $region3: #{neufa_mep_forward.2} parent=0 // loop_header
    %s18 = sphi 0, %s22
    %p19 = scmp.ge.s32.totalorder %s18, 4
    %s28 = sphi 0, %s30
    %s31 = sphi 0, %s28
    %s32 = sphi 0, %s31
    %s48 = sphi 0, %s32
    %s54 = sphi 0, %s56
    %s57 = sphi 0, %s54
    %s58 = sphi 0, %s57
    %s74 = sphi 0, %s58
    %s78 = sphi 0, %s78
    %s80 = sphi 0, %s78
    %s81 = sphi 0, %s80
    %s95 = sphi 0, %s81
    %s101 = sphi 0, %s103
    %s104 = sphi 0, %s101
    %s105 = sphi 0, %s104
    %s121 = sphi 0, %s105
  $region4: #{neufa_mep_forward.2} parent=0 // loop_header_branch
    %21 = sbr.rel (%p19) target = $region8
  $region5: #{neufa_mep_forward.2} parent=0 // loop_body
    %s23 = ssub.s32 %s18, 1
    %s24 = ssub.s32 %s18, 2
    %s25 = sadd.s32 %s18, 1
    %s26 = ssub.s32 %s18, %s25
    %p27 = scmp.eq.s32.totalorder %s26, 0
    %s29 = sadd.s32 %s28, 1
    %s30 = scalar_select %p27, %s28, %s29
    %p33 = pneg %p27
    %p34 = scmp.eq.s32.totalorder %s18, 1
    %p35 = por %p33, %p34
    %p36 = scmp.ne.s32.totalorder %s28, %s31
    %p37 = scmp.eq.s32.totalorder %s18, 0
    %p38 = por %p36, %p37
    %p39 = scmp.ne.s32.totalorder %s28, %s31
    %p40 = scmp.eq.s32.totalorder %s23, 1
    %p41 = por %p39, %p40
    %p42 = scmp.ne.s32.totalorder %s31, %s32
    %p43 = scmp.eq.s32.totalorder %s23, 0
    %p44 = por %p42, %p43
    %p45 = scmp.ne.s32.totalorder %s31, %s32
    %p46 = scmp.eq.s32.totalorder %s24, 1
    %p47 = por %p45, %p46
    %p49 = scmp.ne.s32.totalorder %s32, %s48
    %p50 = scmp.eq.s32.totalorder %s24, 0
    %p51 = por %p49, %p50
    %s52 = ssub.s32 %s18, %s25
    %p53 = scmp.eq.s32.totalorder %s52, 0
    %s55 = sadd.s32 %s54, 1
    %s56 = scalar_select %p53, %s54, %s55
    %p59 = pneg %p53
    %p60 = scmp.eq.s32.totalorder %s18, 1
    %p61 = por %p59, %p60
    %p62 = scmp.ne.s32.totalorder %s54, %s57
    %p63 = scmp.eq.s32.totalorder %s18, 0
    %p64 = por %p62, %p63
    %p65 = scmp.ne.s32.totalorder %s54, %s57
    %p66 = scmp.eq.s32.totalorder %s23, 1
    %p67 = por %p65, %p66
    %p68 = scmp.ne.s32.totalorder %s57, %s58
    %p69 = scmp.eq.s32.totalorder %s23, 0
    %p70 = por %p68, %p69
    %p71 = scmp.ne.s32.totalorder %s57, %s58
    %p72 = scmp.eq.s32.totalorder %s24, 1
    %p73 = por %p71, %p72
    %p75 = scmp.ne.s32.totalorder %s58, %s74
    %p76 = scmp.eq.s32.totalorder %s24, 0
    %p77 = por %p75, %p76
    %s79 = sadd.s32 %s78, 1
    %p82 = scmp.eq.s32.totalorder %s18, 1
    %p83 = scmp.ne.s32.totalorder %s78, %s80
    %p84 = scmp.eq.s32.totalorder %s18, 0
    %p85 = por %p83, %p84
    %p86 = scmp.ne.s32.totalorder %s78, %s80
    %p87 = scmp.eq.s32.totalorder %s23, 1
    %p88 = por %p86, %p87
    %p89 = scmp.ne.s32.totalorder %s80, %s81
    %p90 = scmp.eq.s32.totalorder %s23, 0
    %p91 = por %p89, %p90
    %p92 = scmp.ne.s32.totalorder %s80, %s81
    %p93 = scmp.eq.s32.totalorder %s24, 1
    %p94 = por %p92, %p93
    %p96 = scmp.ne.s32.totalorder %s81, %s95
    %p97 = scmp.eq.s32.totalorder %s24, 0
    %p98 = por %p96, %p97
    %s99 = ssub.s32 %s18, %s25
    %p100 = scmp.eq.s32.totalorder %s99, 0
    %s102 = sadd.s32 %s101, 1
    %s103 = scalar_select %p100, %s101, %s102
    %p106 = pneg %p100
    %p107 = scmp.eq.s32.totalorder %s18, 1
    %p108 = por %p106, %p107
    %p109 = scmp.ne.s32.totalorder %s101, %s104
    %p110 = scmp.eq.s32.totalorder %s18, 0
    %p111 = por %p109, %p110
    %p112 = scmp.ne.s32.totalorder %s101, %s104
    %p113 = scmp.eq.s32.totalorder %s23, 1
    %p114 = por %p112, %p113
    %p115 = scmp.ne.s32.totalorder %s104, %s105
    %p116 = scmp.eq.s32.totalorder %s23, 0
    %p117 = por %p115, %p116
    %p118 = scmp.ne.s32.totalorder %s104, %s105
    %p119 = scmp.eq.s32.totalorder %s24, 1
    %p120 = por %p118, %p119
    %p122 = scmp.ne.s32.totalorder %s105, %s121
    %p123 = scmp.eq.s32.totalorder %s24, 0
    %p124 = por %p122, %p123
    %p125 = scmp.le.s32.totalorder 1, %s18
    %p126 = scmp.lt.s32.totalorder %s18, 3
    %p127 = pnand %p125, %p126
    %p128 = pneg %p127
    // Predicated region
    $region9: #{neufa_mep_forward.2} parent=5 // pred_check
      _
    $region10: #{neufa_mep_forward.2} parent=5 // pred_check_branch
      %130 = sbr.rel (%p127) target = $region12
    $region11: #{neufa_mep_forward.2} parent=5 // pred_region
      %s131 = ssub.s32 %s18, 1
      // Predicated region
      $region13: #{neufa_mep_forward.2} parent=11 // pred_check
        %p132 = pneg %p91
      $region14: #{neufa_mep_forward.2} parent=11 // pred_check_branch
        %134 = sbr.rel (%p132) target = $region16
      $region15: #{neufa_mep_forward.2} parent=11 // pred_region
        _
      $region16: #{neufa_mep_forward.2} parent=11 // pred_fallthru
        _
    $region12: #{neufa_mep_forward.2} parent=5 // pred_fallthru
      _
    %p135 = scmp.lt.s32.totalorder %s18, 2
    // Predicated region
    $region17: #{neufa_mep_forward.2} parent=5 // pred_check
      %p136 = pneg %p135
    $region18: #{neufa_mep_forward.2} parent=5 // pred_check_branch
      %138 = sbr.rel (%p136) target = $region20
    $region19: #{neufa_mep_forward.2} parent=5 // pred_region
      // Predicated region
      $region21: #{neufa_mep_forward.2} parent=19 // pred_check
        %p139 = pneg %p38
      $region22: #{neufa_mep_forward.2} parent=19 // pred_check_branch
        %141 = sbr.rel (%p139) target = $region24
      $region23: #{neufa_mep_forward.2} parent=19 // pred_region
        %p142 = scmp.lt.s32.totalorder %s18, 1
        %s143 = scalar_select %p142, %s18, 1
        %s144 = smul.addr %s143, 8
        %s145 = scalar_lea.vmem %s1, %s144
      $region24: #{neufa_mep_forward.2} parent=19 // pred_fallthru
        _
      // Predicated region
      $region25: #{neufa_mep_forward.2} parent=19 // pred_check
        %p146 = pneg %p64
      $region26: #{neufa_mep_forward.2} parent=19 // pred_check_branch
        %148 = sbr.rel (%p146) target = $region28
      $region27: #{neufa_mep_forward.2} parent=19 // pred_region
        %p149 = scmp.lt.s32.totalorder %s18, 1
        %s150 = scalar_select %p149, %s18, 1
        %s151 = smul.addr %s150, 2
        %s152 = smul.addr %s151, 8
        %s153 = scalar_lea.vmem %s2, %s152
      $region28: #{neufa_mep_forward.2} parent=19 // pred_fallthru
        _
    $region20: #{neufa_mep_forward.2} parent=5 // pred_fallthru
      _
    %p154 = scmp.le.s32.totalorder 1, %s18
    %p155 = scmp.lt.s32.totalorder %s18, 3
    %p156 = pnand %p154, %p155
    %p157 = pneg %p156
    // Predicated region
    $region29: #{neufa_mep_forward.2} parent=5 // pred_check
      _
    $region30: #{neufa_mep_forward.2} parent=5 // pred_check_branch
      %159 = sbr.rel (%p156) target = $region32
    $region31: #{neufa_mep_forward.2} parent=5 // pred_region
      %s160 = ssub.s32 %s18, 1
      %p161 = scmp.lt.s32.totalorder %s23, 1
      %s162 = scalar_select %p161, %s23, 1
      %s163 = smul.addr %s162, 8
      %s164 = scalar_lea.vmem %s1, %s163
      %p165 = pneg %p44
      %p166 = pneg %p41
      %p167 = scmp.lt.s32.totalorder %s23, 1
      %s168 = scalar_select %p167, %s23, 1
      %s169 = smul.addr %s168, 2
      %s170 = smul.addr %s169, 8
      %s171 = scalar_lea.vmem %s2, %s170
      %p172 = pneg %p70
      %p173 = pneg %p67
      %p174 = pneg %p91
      %p175 = pneg %p88
      %p176 = pneg %p117
      %p177 = pneg %p114
      %p178 = scmp.lt.s32.totalorder %s23, 1
      %s179 = scalar_select %p178, %s23, 1
      %s180 = smul.addr %s179, 5
      %s181 = smul.addr %s180, 8
      %s182 = scalar_lea.vmem %s4, %s181
      %p183 = scmp.lt.s32.totalorder %s23, 1
      %s184 = scalar_select %p183, %s23, 1
      %s185 = smul.addr %s184, 8
      %s186 = scalar_lea.vmem %s1, %s185
      %p187 = scmp.lt.s32.totalorder %s23, 1
      %s188 = scalar_select %p187, %s23, 1
      %s189 = smul.addr %s188, 2
      %s190 = smul.addr %s189, 8
      %s191 = scalar_lea.vmem %s2, %s190
      %p192 = scmp.lt.s32.totalorder %s23, 1
      %s193 = scalar_select %p192, %s23, 1
      %s194 = smul.addr %s193, 5
      %s195 = smul.addr %s194, 8
      %s196 = scalar_lea.vmem %s4, %s195
      %v197 = vld [vmem:[%s186] sm:$0xff]
      %v198 = vlaneseq
      %v199 = vand.u32 %v198, 127
      %200 = vset.pattern.permute.xlu0 0
      %201 = vperm.xlu0 %200, %v197
      %v202 = vpop.permute.xlu0 %201
      %vm203 = vcmp.eq.s32.totalorder %v199, %v202
      %v204 = vsel %vm203, 1, 0
      %v205 = vcvt.s32.f32 %v204
      %v206 = vld [vmem:[%s3] sm:$0xff]
      %v207 = vld [vmem:[%s3 + $0x8] sm:$0xff]
      %v208 = vld [vmem:[%s3 + $0x10] sm:$0xff]
      %v209 = vld [vmem:[%s3 + $0x18] sm:$0xff]
      %v210 = vld [vmem:[%s3 + $0x20] sm:$0xff]
      %vm211 = vcmask 326656
      %v213 = vsel %vm211, %v205, 0
      %215 = vmatpush.msra.mxu0 0.0
      %216 = vmatpush.msra.mxu0 0.0
      %217 = vmatpush.msra.mxu0 0.0
      %218 = vmatpush.msra.mxu0 0.0
      %219 = vmatpush.msra.mxu0 0.0
      %220 = vmatpush.msra.mxu0 0.0
      %221 = vmatpush.msra.mxu0 0.0
      %222 = vmatpush.msra.mxu0 0.0
      %223 = vmatpush.msra.mxu0 0.0
      %224 = vmatpush.msra.mxu0 0.0
      %225 = vmatpush.msra.mxu0 0.0
      %226 = vmatpush.msra.mxu0 %v210
      %227 = vmatpush.msra.mxu0 %v209
      %228 = vmatpush.msra.mxu0 %v208
      %229 = vmatpush.msra.mxu0 %v207
      %230 = vmatpush.msra.mxu0 %v206
      %231 = vmatmul.f32.gmra.mxu0 %v213
      %v232 = vpop.f32.mrf.mxu0
      %v233 = vadd.f32 0.0, %v232
      %234 = vdwg.mxu0
      %v235 = vlaneseq
      %v236 = vshrl.u32 %v235, 7
      %v237 = vrot.slane %v233, 6
      %v238 = vadd.s32 %v236, 4294967294
      %vm239 = vcmp.ge.s32.totalorder %v238, 0
      %vm240 = vcmp.lt.s32.totalorder %v238, 8
      %vm241 = vmand %vm239, %vm240
      %v242 = vsel %vm241, %v237, 0.0
      %v243 = vrot.slane %v233, 7
      %v244 = vadd.s32 %v236, 4294967295
      %vm245 = vcmp.ge.s32.totalorder %v244, 0
      %vm246 = vcmp.lt.s32.totalorder %v244, 8
      %vm247 = vmand %vm245, %vm246
      %v248 = vsel %vm247, %v243, 0.0
      %vm249 = vcmp.ge.s32.totalorder %v236, 0
      %vm250 = vcmp.lt.s32.totalorder %v236, 8
      %vm251 = vmand %vm249, %vm250
      %v252 = vsel %vm251, %v233, 0.0
      %v253 = vrot.slane %v233, 1
      %v254 = vadd.s32 %v236, 1
      %vm255 = vcmp.ge.s32.totalorder %v254, 0
      %vm256 = vcmp.lt.s32.totalorder %v254, 8
      %vm257 = vmand %vm255, %vm256
      %v258 = vsel %vm257, %v253, 0.0
      %v259 = vrot.slane %v233, 2
      %v260 = vadd.s32 %v236, 2
      %vm261 = vcmp.ge.s32.totalorder %v260, 0
      %vm262 = vcmp.lt.s32.totalorder %v260, 8
      %vm263 = vmand %vm261, %vm262
      %v264 = vsel %vm263, %v259, 0.0
      %266 = vrot.lane.b32.xlu0 %v248, 32
      %v267 = vpop.permute.xlu0 %266
      %270 = vrot.lane.b32.xlu0 %v252, 64
      %v271 = vpop.permute.xlu0 %270
      %274 = vrot.lane.b32.xlu0 %v258, 96
      %v275 = vpop.permute.xlu0 %274
      %vm277 = vcmask 261120
      %v278 = vsel %vm277, %v242, %v267
      %vm279 = vcmask 523264
      %v280 = vsel %vm279, %v278, %v271
      %vm281 = vcmask 785408
      %v282 = vsel %vm281, %v280, %v275
      %v283 = vld [vmem:[%s3 + $0x28] sm:$0xff]
      %v284 = vld [vmem:[%s3 + $0x30] sm:$0xff]
      %v285 = vld [vmem:[%s3 + $0x38] sm:$0xff]
      %v286 = vld [vmem:[%s3 + $0x40] sm:$0xff]
      %v287 = vld [vmem:[%s3 + $0x48] sm:$0xff]
      %v288 = vld [vmem:[%s3 + $0x50] sm:$0xff]
      %v289 = vld [vmem:[%s3 + $0x58] sm:$0xff]
      %v290 = vld [vmem:[%s3 + $0x60] sm:$0xff]
      %v291 = vld [vmem:[%s3 + $0x68] sm:$0xff]
      %v292 = vld [vmem:[%s3 + $0x70] sm:$0xff]
      %v293 = vld [vmem:[%s3 + $0x78] sm:$0xff]
      %v294 = vld [vmem:[%s3 + $0x80] sm:$0xff]
      %v295 = vld [vmem:[%s3 + $0x88] sm:$0xff]
      %v296 = vld [vmem:[%s3 + $0x90] sm:$0xff]
      %v297 = vld [vmem:[%s3 + $0x98] sm:$0xff]
      %v298 = vld [vmem:[%s3 + $0xa0] sm:$0xff]
      %v299 = vld [vmem:[%s3 + $0xa8] sm:$0xff]
      %v300 = vld [vmem:[%s3 + $0xb0] sm:$0xff]
      %v301 = vld [vmem:[%s3 + $0xb8] sm:$0xff]
      %v302 = vld [vmem:[%s3 + $0xc0] sm:$0xff]
      %v303 = vld [vmem:[%s3 + $0x3b0] sm:$0x1]
      %v304 = vperm.slane %v303, 0
      %v306 = vsel %vm277, %v264, 0
      %308 = vmatpush.msra.mxu0 %v298
      %309 = vmatpush.msra.mxu0 %v297
      %310 = vmatpush.msra.mxu0 %v296
      %311 = vmatpush.msra.mxu0 %v295
      %312 = vmatpush.msra.mxu0 %v294
      %313 = vmatpush.msra.mxu0 %v293
      %314 = vmatpush.msra.mxu0 %v292
      %315 = vmatpush.msra.mxu0 %v291
      %316 = vmatpush.msra.mxu0 %v290
      %317 = vmatpush.msra.mxu0 %v289
      %318 = vmatpush.msra.mxu0 %v288
      %319 = vmatpush.msra.mxu0 %v287
      %320 = vmatpush.msra.mxu0 %v286
      %321 = vmatpush.msra.mxu0 %v285
      %322 = vmatpush.msra.mxu0 %v284
      %323 = vmatpush.msra.mxu0 %v283
      %324 = vmatmul.f32.gmra.mxu0 %v282
      %v325 = vpop.f32.mrf.mxu0
      %v326 = vadd.f32 %v304, %v325
      %327 = vdwg.mxu0
      %328 = vmatpush.msra.mxu0 0.0
      %329 = vmatpush.msra.mxu0 0.0
      %330 = vmatpush.msra.mxu0 0.0
      %331 = vmatpush.msra.mxu0 0.0
      %332 = vmatpush.msra.mxu0 0.0
      %333 = vmatpush.msra.mxu0 0.0
      %334 = vmatpush.msra.mxu0 0.0
      %335 = vmatpush.msra.mxu0 0.0
      %336 = vmatpush.msra.mxu0 0.0
      %337 = vmatpush.msra.mxu0 0.0
      %338 = vmatpush.msra.mxu0 0.0
      %339 = vmatpush.msra.mxu0 0.0
      %340 = vmatpush.msra.mxu0 %v302
      %341 = vmatpush.msra.mxu0 %v301
      %342 = vmatpush.msra.mxu0 %v300
      %343 = vmatpush.msra.mxu0 %v299
      %344 = vmatmul.f32.gmra.mxu0 %v306
      %v345 = vpop.f32.mrf.mxu0
      %v346 = vadd.f32 %v326, %v345
      %347 = vdwg.mxu0
      %v348 = vmax.f32 %v346, 0.0
      %v349 = vrot.slane %v348, 6
      %v350 = vsel %vm241, %v349, 0.0
      %v351 = vrot.slane %v348, 7
      %v352 = vsel %vm247, %v351, 0.0
      %v353 = vsel %vm251, %v348, 0.0
      %v354 = vrot.slane %v348, 1
      %v355 = vsel %vm257, %v354, 0.0
      %v356 = vrot.slane %v348, 2
      %v357 = vsel %vm263, %v356, 0.0
      %359 = vrot.lane.b32.xlu0 %v352, 32
      %v360 = vpop.permute.xlu0 %359
      %363 = vrot.lane.b32.xlu0 %v353, 64
      %v364 = vpop.permute.xlu0 %363
      %367 = vrot.lane.b32.xlu0 %v355, 96
      %v368 = vpop.permute.xlu0 %367
      %v370 = vsel %vm277, %v350, %v360
      %v371 = vsel %vm279, %v370, %v364
      %v372 = vsel %vm281, %v371, %v368
      %v373 = vld [vmem:[%s3 + $0xc8] sm:$0xff]
      %v374 = vld [vmem:[%s3 + $0xd0] sm:$0xff]
      %v375 = vld [vmem:[%s3 + $0xd8] sm:$0xff]
      %v376 = vld [vmem:[%s3 + $0xe0] sm:$0xff]
      %v377 = vld [vmem:[%s3 + $0xe8] sm:$0xff]
      %v378 = vld [vmem:[%s3 + $0xf0] sm:$0xff]
      %v379 = vld [vmem:[%s3 + $0xf8] sm:$0xff]
      %v380 = vld [vmem:[%s3 + $0x100] sm:$0xff]
      %v381 = vld [vmem:[%s3 + $0x108] sm:$0xff]
      %v382 = vld [vmem:[%s3 + $0x110] sm:$0xff]
      %v383 = vld [vmem:[%s3 + $0x118] sm:$0xff]
      %v384 = vld [vmem:[%s3 + $0x120] sm:$0xff]
      %v385 = vld [vmem:[%s3 + $0x128] sm:$0xff]
      %v386 = vld [vmem:[%s3 + $0x130] sm:$0xff]
      %v387 = vld [vmem:[%s3 + $0x138] sm:$0xff]
      %v388 = vld [vmem:[%s3 + $0x140] sm:$0xff]
      %v389 = vld [vmem:[%s3 + $0x148] sm:$0xff]
      %v390 = vld [vmem:[%s3 + $0x150] sm:$0xff]
      %v391 = vld [vmem:[%s3 + $0x158] sm:$0xff]
      %v392 = vld [vmem:[%s3 + $0x160] sm:$0xff]
      %v393 = vld [vmem:[%s3 + $0x3b8] sm:$0x1]
      %v394 = vperm.slane %v393, 0
      %v396 = vsel %vm277, %v357, 0
      %398 = vmatpush.msra.mxu0 %v388
      %399 = vmatpush.msra.mxu0 %v387
      %400 = vmatpush.msra.mxu0 %v386
      %401 = vmatpush.msra.mxu0 %v385
      %402 = vmatpush.msra.mxu0 %v384
      %403 = vmatpush.msra.mxu0 %v383
      %404 = vmatpush.msra.mxu0 %v382
      %405 = vmatpush.msra.mxu0 %v381
      %406 = vmatpush.msra.mxu0 %v380
      %407 = vmatpush.msra.mxu0 %v379
      %408 = vmatpush.msra.mxu0 %v378
      %409 = vmatpush.msra.mxu0 %v377
      %410 = vmatpush.msra.mxu0 %v376
      %411 = vmatpush.msra.mxu0 %v375
      %412 = vmatpush.msra.mxu0 %v374
      %413 = vmatpush.msra.mxu0 %v373
      %414 = vmatmul.f32.gmra.mxu0 %v372
      %v415 = vpop.f32.mrf.mxu0
      %v416 = vadd.f32 %v394, %v415
      %417 = vdwg.mxu0
      %418 = vmatpush.msra.mxu0 0.0
      %419 = vmatpush.msra.mxu0 0.0
      %420 = vmatpush.msra.mxu0 0.0
      %421 = vmatpush.msra.mxu0 0.0
      %422 = vmatpush.msra.mxu0 0.0
      %423 = vmatpush.msra.mxu0 0.0
      %424 = vmatpush.msra.mxu0 0.0
      %425 = vmatpush.msra.mxu0 0.0
      %426 = vmatpush.msra.mxu0 0.0
      %427 = vmatpush.msra.mxu0 0.0
      %428 = vmatpush.msra.mxu0 0.0
      %429 = vmatpush.msra.mxu0 0.0
      %430 = vmatpush.msra.mxu0 %v392
      %431 = vmatpush.msra.mxu0 %v391
      %432 = vmatpush.msra.mxu0 %v390
      %433 = vmatpush.msra.mxu0 %v389
      %434 = vmatmul.f32.gmra.mxu0 %v396
      %v435 = vpop.f32.mrf.mxu0
      %v436 = vadd.f32 %v416, %v435
      %437 = vdwg.mxu0
      %v438 = vmax.f32 %v436, 0.0
      %v439 = vrot.slane %v438, 6
      %v440 = vsel %vm241, %v439, 0.0
      %v441 = vrot.slane %v438, 7
      %v442 = vsel %vm247, %v441, 0.0
      %v443 = vsel %vm251, %v438, 0.0
      %v444 = vrot.slane %v438, 1
      %v445 = vsel %vm257, %v444, 0.0
      %v446 = vrot.slane %v438, 2
      %v447 = vsel %vm263, %v446, 0.0
      %449 = vrot.lane.b32.xlu0 %v442, 32
      %v450 = vpop.permute.xlu0 %449
      %453 = vrot.lane.b32.xlu0 %v443, 64
      %v454 = vpop.permute.xlu0 %453
      %457 = vrot.lane.b32.xlu0 %v445, 96
      %v458 = vpop.permute.xlu0 %457
      %v460 = vsel %vm277, %v440, %v450
      %v461 = vsel %vm279, %v460, %v454
      %v462 = vsel %vm281, %v461, %v458
      %v463 = vld [vmem:[%s3 + $0x168] sm:$0xff]
      %v464 = vld [vmem:[%s3 + $0x170] sm:$0xff]
      %v465 = vld [vmem:[%s3 + $0x178] sm:$0xff]
      %v466 = vld [vmem:[%s3 + $0x180] sm:$0xff]
      %v467 = vld [vmem:[%s3 + $0x188] sm:$0xff]
      %v468 = vld [vmem:[%s3 + $0x190] sm:$0xff]
      %v469 = vld [vmem:[%s3 + $0x198] sm:$0xff]
      %v470 = vld [vmem:[%s3 + $0x1a0] sm:$0xff]
      %v471 = vld [vmem:[%s3 + $0x1a8] sm:$0xff]
      %v472 = vld [vmem:[%s3 + $0x1b0] sm:$0xff]
      %v473 = vld [vmem:[%s3 + $0x1b8] sm:$0xff]
      %v474 = vld [vmem:[%s3 + $0x1c0] sm:$0xff]
      %v475 = vld [vmem:[%s3 + $0x1c8] sm:$0xff]
      %v476 = vld [vmem:[%s3 + $0x1d0] sm:$0xff]
      %v477 = vld [vmem:[%s3 + $0x1d8] sm:$0xff]
      %v478 = vld [vmem:[%s3 + $0x1e0] sm:$0xff]
      %v479 = vld [vmem:[%s3 + $0x1e8] sm:$0xff]
      %v480 = vld [vmem:[%s3 + $0x1f0] sm:$0xff]
      %v481 = vld [vmem:[%s3 + $0x1f8] sm:$0xff]
      %v482 = vld [vmem:[%s3 + $0x200] sm:$0xff]
      %v483 = vld [vmem:[%s3 + $0x3c0] sm:$0x1]
      %v484 = vperm.slane %v483, 0
      %v486 = vsel %vm277, %v447, 0
      %488 = vmatpush.msra.mxu0 %v478
      %489 = vmatpush.msra.mxu0 %v477
      %490 = vmatpush.msra.mxu0 %v476
      %491 = vmatpush.msra.mxu0 %v475
      %492 = vmatpush.msra.mxu0 %v474
      %493 = vmatpush.msra.mxu0 %v473
      %494 = vmatpush.msra.mxu0 %v472
      %495 = vmatpush.msra.mxu0 %v471
      %496 = vmatpush.msra.mxu0 %v470
      %497 = vmatpush.msra.mxu0 %v469
      %498 = vmatpush.msra.mxu0 %v468
      %499 = vmatpush.msra.mxu0 %v467
      %500 = vmatpush.msra.mxu0 %v466
      %501 = vmatpush.msra.mxu0 %v465
      %502 = vmatpush.msra.mxu0 %v464
      %503 = vmatpush.msra.mxu0 %v463
      %504 = vmatmul.f32.gmra.mxu0 %v462
      %v505 = vpop.f32.mrf.mxu0
      %v506 = vadd.f32 %v484, %v505
      %507 = vdwg.mxu0
      %508 = vmatpush.msra.mxu0 0.0
      %509 = vmatpush.msra.mxu0 0.0
      %510 = vmatpush.msra.mxu0 0.0
      %511 = vmatpush.msra.mxu0 0.0
      %512 = vmatpush.msra.mxu0 0.0
      %513 = vmatpush.msra.mxu0 0.0
      %514 = vmatpush.msra.mxu0 0.0
      %515 = vmatpush.msra.mxu0 0.0
      %516 = vmatpush.msra.mxu0 0.0
      %517 = vmatpush.msra.mxu0 0.0
      %518 = vmatpush.msra.mxu0 0.0
      %519 = vmatpush.msra.mxu0 0.0
      %520 = vmatpush.msra.mxu0 %v482
      %521 = vmatpush.msra.mxu0 %v481
      %522 = vmatpush.msra.mxu0 %v480
      %523 = vmatpush.msra.mxu0 %v479
      %524 = vmatmul.f32.gmra.mxu0 %v486
      %v525 = vpop.f32.mrf.mxu0
      %v526 = vadd.f32 %v506, %v525
      %527 = vdwg.mxu0
      %v528 = vmax.f32 %v526, 0.0
      %v529 = vld [vmem:[%s3 + $0x348] sm:$0xff]
      %v530 = vld [vmem:[%s3 + $0x350] sm:$0xff]
      %v531 = vld [vmem:[%s3 + $0x358] sm:$0xff]
      %v532 = vld [vmem:[%s3 + $0x360] sm:$0xff]
      %v533 = vld [vmem:[%s3 + $0x3d8] sm:$0x1]
      %v534 = vperm.slane %v533, 0
      %v536 = vsel %vm277, %v528, 0
      %538 = vmatpush.msra.mxu0 0.0
      %539 = vmatpush.msra.mxu0 0.0
      %540 = vmatpush.msra.mxu0 0.0
      %541 = vmatpush.msra.mxu0 0.0
      %542 = vmatpush.msra.mxu0 0.0
      %543 = vmatpush.msra.mxu0 0.0
      %544 = vmatpush.msra.mxu0 0.0
      %545 = vmatpush.msra.mxu0 0.0
      %546 = vmatpush.msra.mxu0 0.0
      %547 = vmatpush.msra.mxu0 0.0
      %548 = vmatpush.msra.mxu0 0.0
      %549 = vmatpush.msra.mxu0 0.0
      %550 = vmatpush.msra.mxu0 %v532
      %551 = vmatpush.msra.mxu0 %v531
      %552 = vmatpush.msra.mxu0 %v530
      %553 = vmatpush.msra.mxu0 %v529
      %554 = vmatmul.f32.gmra.mxu0 %v536
      %v555 = vpop.f32.mrf.mxu0
      %v556 = vadd.f32 %v534, %v555
      %557 = vdwg.mxu0
      %v558 = vtanh.pop %v556
      %v559 = vld [vmem:[%s191] sm:$0xff]
      %v560 = vld [vmem:[%s191 + $0x8] sm:$0xff]
      %v561 = vadd.s32 %v236, 8
      %v562 = vrot.slane %v559, 6
      %v563 = vrot.slane %v560, 6
      %vm564 = vcmp.lt.s32.totalorder %v236, 2
      %v565 = vsel %vm564, %v562, %v563
      %v566 = vsel %vm564, %v563, %v562
      %v567 = vadd.s32 %v561, 4294967294
      %vm568 = vcmp.ge.s32.totalorder %v567, 0
      %vm569 = vcmp.lt.s32.totalorder %v238, 16
      %vm570 = vcmp.lt.s32.totalorder %v567, 16
      %vm571 = vmand %vm239, %vm569
      %vm572 = vmand %vm568, %vm570
      %v573 = vsel %vm571, %v566, 0.0
      %v574 = vsel %vm572, %v565, 0.0
      %v575 = vrot.slane %v559, 7
      %v576 = vrot.slane %v560, 7
      %vm577 = vcmp.lt.s32.totalorder %v236, 1
      %v578 = vsel %vm577, %v575, %v576
      %v579 = vsel %vm577, %v576, %v575
      %v580 = vadd.s32 %v561, 4294967295
      %vm581 = vcmp.ge.s32.totalorder %v580, 0
      %vm582 = vcmp.lt.s32.totalorder %v244, 16
      %vm583 = vcmp.lt.s32.totalorder %v580, 16
      %vm584 = vmand %vm245, %vm582
      %vm585 = vmand %vm581, %vm583
      %v586 = vsel %vm584, %v579, 0.0
      %v587 = vsel %vm585, %v578, 0.0
      %vm588 = vcmp.ge.s32.totalorder %v561, 0
      %vm589 = vcmp.lt.s32.totalorder %v236, 16
      %vm590 = vcmp.lt.s32.totalorder %v561, 16
      %vm591 = vmand %vm249, %vm589
      %vm592 = vmand %vm588, %vm590
      %v593 = vsel %vm591, %v559, 0.0
      %v594 = vsel %vm592, %v560, 0.0
      %v595 = vrot.slane %v559, 1
      %v596 = vrot.slane %v560, 1
      %vm597 = vcmp.lt.s32.totalorder %v236, 7
      %v598 = vsel %vm597, %v595, %v596
      %v599 = vsel %vm597, %v596, %v595
      %v600 = vadd.s32 %v561, 1
      %vm601 = vcmp.ge.s32.totalorder %v600, 0
      %vm602 = vcmp.lt.s32.totalorder %v254, 16
      %vm603 = vcmp.lt.s32.totalorder %v600, 16
      %vm604 = vmand %vm255, %vm602
      %vm605 = vmand %vm601, %vm603
      %v606 = vsel %vm604, %v598, 0.0
      %v607 = vsel %vm605, %v599, 0.0
      %v608 = vrot.slane %v559, 2
      %v609 = vrot.slane %v560, 2
      %vm610 = vcmp.lt.s32.totalorder %v236, 6
      %v611 = vsel %vm610, %v608, %v609
      %v612 = vsel %vm610, %v609, %v608
      %v613 = vadd.s32 %v561, 2
      %vm614 = vcmp.ge.s32.totalorder %v613, 0
      %vm615 = vcmp.lt.s32.totalorder %v260, 16
      %vm616 = vcmp.lt.s32.totalorder %v613, 16
      %vm617 = vmand %vm261, %vm615
      %vm618 = vmand %vm614, %vm616
      %v619 = vsel %vm617, %v611, 0.0
      %v620 = vsel %vm618, %v612, 0.0
      %623 = vrot.lane.b32.xlu0 %v586, 32
      %v624 = vpop.permute.xlu0 %623
      %625 = vrot.lane.b32.xlu0 %v587, 32
      %v626 = vpop.permute.xlu0 %625
      %631 = vrot.lane.b32.xlu0 %v593, 64
      %v632 = vpop.permute.xlu0 %631
      %633 = vrot.lane.b32.xlu0 %v594, 64
      %v634 = vpop.permute.xlu0 %633
      %639 = vrot.lane.b32.xlu0 %v606, 96
      %v640 = vpop.permute.xlu0 %639
      %641 = vrot.lane.b32.xlu0 %v607, 96
      %v642 = vpop.permute.xlu0 %641
      %v645 = vsel %vm277, %v573, %v624
      %v646 = vsel %vm277, %v574, %v626
      %v647 = vsel %vm279, %v645, %v632
      %v648 = vsel %vm279, %v646, %v634
      %v649 = vsel %vm281, %v647, %v640
      %v650 = vsel %vm281, %v648, %v642
      %v651 = vld [vmem:[%s3 + $0x208] sm:$0xff]
      %v652 = vld [vmem:[%s3 + $0x210] sm:$0xff]
      %v653 = vld [vmem:[%s3 + $0x218] sm:$0xff]
      %v654 = vld [vmem:[%s3 + $0x220] sm:$0xff]
      %v655 = vld [vmem:[%s3 + $0x228] sm:$0xff]
      %v656 = vld [vmem:[%s3 + $0x230] sm:$0xff]
      %v657 = vld [vmem:[%s3 + $0x238] sm:$0xff]
      %v658 = vld [vmem:[%s3 + $0x240] sm:$0xff]
      %v659 = vld [vmem:[%s3 + $0x248] sm:$0xff]
      %v660 = vld [vmem:[%s3 + $0x250] sm:$0xff]
      %v661 = vld [vmem:[%s3 + $0x258] sm:$0xff]
      %v662 = vld [vmem:[%s3 + $0x260] sm:$0xff]
      %v663 = vld [vmem:[%s3 + $0x268] sm:$0xff]
      %v664 = vld [vmem:[%s3 + $0x270] sm:$0xff]
      %v665 = vld [vmem:[%s3 + $0x278] sm:$0xff]
      %v666 = vld [vmem:[%s3 + $0x280] sm:$0xff]
      %v667 = vld [vmem:[%s3 + $0x288] sm:$0xff]
      %v668 = vld [vmem:[%s3 + $0x290] sm:$0xff]
      %v669 = vld [vmem:[%s3 + $0x298] sm:$0xff]
      %v670 = vld [vmem:[%s3 + $0x2a0] sm:$0xff]
      %v671 = vld [vmem:[%s3 + $0x3c8] sm:$0x1]
      %v672 = vperm.slane %v671, 0
      %v674 = vsel %vm277, %v619, 0
      %v677 = vsel %vm277, %v620, 0
      %679 = vmatpush.msra.mxu0 %v666
      %680 = vmatpush.msra.mxu0 %v665
      %681 = vmatpush.msra.mxu0 %v664
      %682 = vmatpush.msra.mxu0 %v663
      %683 = vmatpush.msra.mxu0 %v662
      %684 = vmatpush.msra.mxu0 %v661
      %685 = vmatpush.msra.mxu0 %v660
      %686 = vmatpush.msra.mxu0 %v659
      %687 = vmatpush.msra.mxu0 %v658
      %688 = vmatpush.msra.mxu0 %v657
      %689 = vmatpush.msra.mxu0 %v656
      %690 = vmatpush.msra.mxu0 %v655
      %691 = vmatpush.msra.mxu0 %v654
      %692 = vmatpush.msra.mxu0 %v653
      %693 = vmatpush.msra.mxu0 %v652
      %694 = vmatpush.msra.mxu0 %v651
      %695 = vmatmul.f32.gmra.mxu0 %v649
      %v696 = vpop.f32.mrf.mxu0
      %v697 = vadd.f32 %v672, %v696
      %698 = vmatmul.f32.gmra.mxu0 %v650
      %v699 = vpop.f32.mrf.mxu0
      %v700 = vadd.f32 %v672, %v699
      %701 = vdwg.mxu0
      %702 = vmatpush.msra.mxu0 0.0
      %703 = vmatpush.msra.mxu0 0.0
      %704 = vmatpush.msra.mxu0 0.0
      %705 = vmatpush.msra.mxu0 0.0
      %706 = vmatpush.msra.mxu0 0.0
      %707 = vmatpush.msra.mxu0 0.0
      %708 = vmatpush.msra.mxu0 0.0
      %709 = vmatpush.msra.mxu0 0.0
      %710 = vmatpush.msra.mxu0 0.0
      %711 = vmatpush.msra.mxu0 0.0
      %712 = vmatpush.msra.mxu0 0.0
      %713 = vmatpush.msra.mxu0 0.0
      %714 = vmatpush.msra.mxu0 %v670
      %715 = vmatpush.msra.mxu0 %v669
      %716 = vmatpush.msra.mxu0 %v668
      %717 = vmatpush.msra.mxu0 %v667
      %718 = vmatmul.f32.gmra.mxu0 %v674
      %v719 = vpop.f32.mrf.mxu0
      %v720 = vadd.f32 %v697, %v719
      %721 = vmatmul.f32.gmra.mxu0 %v677
      %v722 = vpop.f32.mrf.mxu0
      %v723 = vadd.f32 %v700, %v722
      %724 = vdwg.mxu0
      %v725 = vmax.f32 %v720, 0.0
      %v726 = vmax.f32 %v723, 0.0
      %v727 = vrot.slane %v725, 6
      %v728 = vrot.slane %v726, 6
      %v729 = vsel %vm564, %v727, %v728
      %v730 = vsel %vm564, %v728, %v727
      %v731 = vsel %vm571, %v730, 0.0
      %v732 = vsel %vm572, %v729, 0.0
      %v733 = vrot.slane %v725, 7
      %v734 = vrot.slane %v726, 7
      %v735 = vsel %vm577, %v733, %v734
      %v736 = vsel %vm577, %v734, %v733
      %v737 = vsel %vm584, %v736, 0.0
      %v738 = vsel %vm585, %v735, 0.0
      %v739 = vsel %vm591, %v725, 0.0
      %v740 = vsel %vm592, %v726, 0.0
      %v741 = vrot.slane %v725, 1
      %v742 = vrot.slane %v726, 1
      %v743 = vsel %vm597, %v741, %v742
      %v744 = vsel %vm597, %v742, %v741
      %v745 = vsel %vm604, %v743, 0.0
      %v746 = vsel %vm605, %v744, 0.0
      %v747 = vrot.slane %v725, 2
      %v748 = vrot.slane %v726, 2
      %v749 = vsel %vm610, %v747, %v748
      %v750 = vsel %vm610, %v748, %v747
      %v751 = vsel %vm617, %v749, 0.0
      %v752 = vsel %vm618, %v750, 0.0
      %755 = vrot.lane.b32.xlu0 %v737, 32
      %v756 = vpop.permute.xlu0 %755
      %757 = vrot.lane.b32.xlu0 %v738, 32
      %v758 = vpop.permute.xlu0 %757
      %763 = vrot.lane.b32.xlu0 %v739, 64
      %v764 = vpop.permute.xlu0 %763
      %765 = vrot.lane.b32.xlu0 %v740, 64
      %v766 = vpop.permute.xlu0 %765
      %771 = vrot.lane.b32.xlu0 %v745, 96
      %v772 = vpop.permute.xlu0 %771
      %773 = vrot.lane.b32.xlu0 %v746, 96
      %v774 = vpop.permute.xlu0 %773
      %v777 = vsel %vm277, %v731, %v756
      %v778 = vsel %vm277, %v732, %v758
      %v779 = vsel %vm279, %v777, %v764
      %v780 = vsel %vm279, %v778, %v766
      %v781 = vsel %vm281, %v779, %v772
      %v782 = vsel %vm281, %v780, %v774
      %v783 = vld [vmem:[%s3 + $0x2a8] sm:$0xff]
      %v784 = vld [vmem:[%s3 + $0x2b0] sm:$0xff]
      %v785 = vld [vmem:[%s3 + $0x2b8] sm:$0xff]
      %v786 = vld [vmem:[%s3 + $0x2c0] sm:$0xff]
      %v787 = vld [vmem:[%s3 + $0x2c8] sm:$0xff]
      %v788 = vld [vmem:[%s3 + $0x2d0] sm:$0xff]
      %v789 = vld [vmem:[%s3 + $0x2d8] sm:$0xff]
      %v790 = vld [vmem:[%s3 + $0x2e0] sm:$0xff]
      %v791 = vld [vmem:[%s3 + $0x2e8] sm:$0xff]
      %v792 = vld [vmem:[%s3 + $0x2f0] sm:$0xff]
      %v793 = vld [vmem:[%s3 + $0x2f8] sm:$0xff]
      %v794 = vld [vmem:[%s3 + $0x300] sm:$0xff]
      %v795 = vld [vmem:[%s3 + $0x308] sm:$0xff]
      %v796 = vld [vmem:[%s3 + $0x310] sm:$0xff]
      %v797 = vld [vmem:[%s3 + $0x318] sm:$0xff]
      %v798 = vld [vmem:[%s3 + $0x320] sm:$0xff]
      %v799 = vld [vmem:[%s3 + $0x328] sm:$0xff]
      %v800 = vld [vmem:[%s3 + $0x330] sm:$0xff]
      %v801 = vld [vmem:[%s3 + $0x338] sm:$0xff]
      %v802 = vld [vmem:[%s3 + $0x340] sm:$0xff]
      %v803 = vld [vmem:[%s3 + $0x3d0] sm:$0x1]
      %v804 = vperm.slane %v803, 0
      %v806 = vsel %vm277, %v751, 0
      %v809 = vsel %vm277, %v752, 0
      %811 = vmatpush.msra.mxu0 %v798
      %812 = vmatpush.msra.mxu0 %v797
      %813 = vmatpush.msra.mxu0 %v796
      %814 = vmatpush.msra.mxu0 %v795
      %815 = vmatpush.msra.mxu0 %v794
      %816 = vmatpush.msra.mxu0 %v793
      %817 = vmatpush.msra.mxu0 %v792
      %818 = vmatpush.msra.mxu0 %v791
      %819 = vmatpush.msra.mxu0 %v790
      %820 = vmatpush.msra.mxu0 %v789
      %821 = vmatpush.msra.mxu0 %v788
      %822 = vmatpush.msra.mxu0 %v787
      %823 = vmatpush.msra.mxu0 %v786
      %824 = vmatpush.msra.mxu0 %v785
      %825 = vmatpush.msra.mxu0 %v784
      %826 = vmatpush.msra.mxu0 %v783
      %827 = vmatmul.f32.gmra.mxu0 %v781
      %v828 = vpop.f32.mrf.mxu0
      %v829 = vadd.f32 %v804, %v828
      %830 = vmatmul.f32.gmra.mxu0 %v782
      %v831 = vpop.f32.mrf.mxu0
      %v832 = vadd.f32 %v804, %v831
      %833 = vdwg.mxu0
      %834 = vmatpush.msra.mxu0 0.0
      %835 = vmatpush.msra.mxu0 0.0
      %836 = vmatpush.msra.mxu0 0.0
      %837 = vmatpush.msra.mxu0 0.0
      %838 = vmatpush.msra.mxu0 0.0
      %839 = vmatpush.msra.mxu0 0.0
      %840 = vmatpush.msra.mxu0 0.0
      %841 = vmatpush.msra.mxu0 0.0
      %842 = vmatpush.msra.mxu0 0.0
      %843 = vmatpush.msra.mxu0 0.0
      %844 = vmatpush.msra.mxu0 0.0
      %845 = vmatpush.msra.mxu0 0.0
      %846 = vmatpush.msra.mxu0 %v802
      %847 = vmatpush.msra.mxu0 %v801
      %848 = vmatpush.msra.mxu0 %v800
      %849 = vmatpush.msra.mxu0 %v799
      %850 = vmatmul.f32.gmra.mxu0 %v806
      %v851 = vpop.f32.mrf.mxu0
      %v852 = vadd.f32 %v829, %v851
      %853 = vmatmul.f32.gmra.mxu0 %v809
      %v854 = vpop.f32.mrf.mxu0
      %v855 = vadd.f32 %v832, %v854
      %856 = vdwg.mxu0
      %v857 = vmax.f32 %v852, 0.0
      %v858 = vmax.f32 %v855, 0.0
      %v859 = vld [vmem:[%s3 + $0x368] sm:$0xff]
      %v860 = vld [vmem:[%s3 + $0x370] sm:$0xff]
      %v861 = vld [vmem:[%s3 + $0x378] sm:$0xff]
      %v862 = vld [vmem:[%s3 + $0x380] sm:$0xff]
      %v863 = vld [vmem:[%s3 + $0x3e0] sm:$0x1]
      %v864 = vperm.slane %v863, 0
      %v866 = vsel %vm277, %v857, 0
      %v869 = vsel %vm277, %v858, 0
      %871 = vmatpush.msra.mxu0 0.0
      %872 = vmatpush.msra.mxu0 0.0
      %873 = vmatpush.msra.mxu0 0.0
      %874 = vmatpush.msra.mxu0 0.0
      %875 = vmatpush.msra.mxu0 0.0
      %876 = vmatpush.msra.mxu0 0.0
      %877 = vmatpush.msra.mxu0 0.0
      %878 = vmatpush.msra.mxu0 0.0
      %879 = vmatpush.msra.mxu0 0.0
      %880 = vmatpush.msra.mxu0 0.0
      %881 = vmatpush.msra.mxu0 0.0
      %882 = vmatpush.msra.mxu0 0.0
      %883 = vmatpush.msra.mxu0 %v862
      %884 = vmatpush.msra.mxu0 %v861
      %885 = vmatpush.msra.mxu0 %v860
      %886 = vmatpush.msra.mxu0 %v859
      %887 = vmatmul.f32.gmra.mxu0 %v866
      %v888 = vpop.f32.mrf.mxu0
      %v889 = vadd.f32 %v864, %v888
      %890 = vmatmul.f32.gmra.mxu0 %v869
      %v891 = vpop.f32.mrf.mxu0
      %v892 = vadd.f32 %v864, %v891
      %893 = vdwg.mxu0
      %v894 = vtanh.pop %v889
      %v895 = vtanh.pop %v892
      %v896 = vld [vmem:[%s3 + $0x3f8] sm:$0xff]
      %v897 = vld [vmem:[%s3 + $0x400] sm:$0xff]
      %v898 = vld [vmem:[%s3 + $0x408] sm:$0x1]
      %v899 = vadd.f32 %v894, %v896
      %v900 = vadd.f32 %v895, %v897
      %v901 = vadd.f32 %v898, 0.0
      %v902 = vld [vmem:[%s3 + $0x388] sm:$0xff]
      %v903 = vld [vmem:[%s3 + $0x390] sm:$0xff]
      %v904 = vld [vmem:[%s3 + $0x398] sm:$0xff]
      %v905 = vld [vmem:[%s3 + $0x3a0] sm:$0xff]
      %v906 = vld [vmem:[%s3 + $0x3e8] sm:$0x1]
      %v907 = vperm.slane %v906, 0
      %v909 = vsel %vm277, %v899, 0
      %v912 = vsel %vm277, %v900, 0
      %v915 = vsel %vm277, %v901, 0
      %917 = vmatpush.msra.mxu0 0.0
      %918 = vmatpush.msra.mxu0 0.0
      %919 = vmatpush.msra.mxu0 0.0
      %920 = vmatpush.msra.mxu0 0.0
      %921 = vmatpush.msra.mxu0 0.0
      %922 = vmatpush.msra.mxu0 0.0
      %923 = vmatpush.msra.mxu0 0.0
      %924 = vmatpush.msra.mxu0 0.0
      %925 = vmatpush.msra.mxu0 0.0
      %926 = vmatpush.msra.mxu0 0.0
      %927 = vmatpush.msra.mxu0 0.0
      %928 = vmatpush.msra.mxu0 0.0
      %929 = vmatpush.msra.mxu0 %v905
      %930 = vmatpush.msra.mxu0 %v904
      %931 = vmatpush.msra.mxu0 %v903
      %932 = vmatpush.msra.mxu0 %v902
      %933 = vmatmul.f32.gmra.mxu0 %v909
      %v934 = vpop.f32.mrf.mxu0
      %v935 = vadd.f32 %v907, %v934
      %936 = vmatmul.f32.gmra.mxu0 %v912
      %v937 = vpop.f32.mrf.mxu0
      %v938 = vadd.f32 %v907, %v937
      %939 = vmatmul.f32.gmra.mxu0 %v915
      %v940 = vpop.f32.mrf.mxu0
      %v941 = vadd.f32 %v907, %v940
      %942 = vdwg.mxu0
      %v943 = vld [vmem:[%s3 + $0x3a8] sm:$0x1]
      %v944 = vld [vmem:[%s3 + $0x3f0] sm:$0x1]
      %v945 = vperm.slane %v943, 0
      %v946 = vmul.f32 %v558, %v945
      %v947 = vmul.f32 %v945, 0.0
      %v948 = vsel %vm277, %v946, 0.0
      %949 = vadd.xlane.f32.xlu0 %v948
      %v950 = vpop.xlane.xlu0 %949
      %vm951 = vcmask 253952
      %v952 = vsel %vm951, %v947, 0.0
      %953 = vadd.xlane.f32.xlu0 %v952
      %v954 = vpop.xlane.xlu0 %953
      %v955 = vperm.slane %v944, 0
      %v956 = vadd.f32 %v950, %v955
      %v957 = vadd.f32 %v954, %v955
      %v958 = vmax.f32 %v956, 0.0
      %v959 = vmax.f32 %v957, 0.0
      %vm960 = vcmp.le.s32.totalorder %v199, %v236
      %vm961 = vcmp.le.s32.totalorder %v199, %v561
      %v962 = vsel %vm960, 1, 0
      %v963 = vsel %vm961, 1, 0
      %v964 = vcvt.s32.f32 %v962
      %v965 = vcvt.s32.f32 %v963
      %vm966 = vcmask 72704
      %v968 = vsel %vm966, %v964, 0
      %v971 = vsel %vm966, %v965, 0
      %vm973 = vcmask 1040384
      %v975 = vsel %vm973, %v959, 0
      %977 = vmatpush.msra.mxu0 0.0
      %978 = vmatpush.msra.mxu0 0.0
      %979 = vmatpush.msra.mxu0 0.0
      %980 = vmatpush.msra.mxu0 0.0
      %981 = vmatpush.msra.mxu0 0.0
      %982 = vmatpush.msra.mxu0 0.0
      %983 = vmatpush.msra.mxu0 0.0
      %984 = vmatpush.msra.mxu0 0.0
      %985 = vmatpush.msra.mxu0 0.0
      %986 = vmatpush.msra.mxu0 0.0
      %987 = vmatpush.msra.mxu0 0.0
      %988 = vmatpush.msra.mxu0 0.0
      %989 = vmatpush.msra.mxu0 0.0
      %990 = vmatpush.msra.mxu0 0.0
      %991 = vmatpush.msra.mxu0 %v975
      %992 = vmatpush.msra.mxu0 %v958
      %993 = vmatmul.f32.gmra.mxu0 %v968
      %v994 = vpop.f32.mrf.mxu0
      %v995 = vadd.f32 0.0, %v994
      %996 = vmatmul.f32.gmra.mxu0 %v971
      %v997 = vpop.f32.mrf.mxu0
      %v998 = vadd.f32 0.0, %v997
      %999 = vdwg.mxu0
      %s1000 = sld [smem:[#allocation3 + %s23]]
      %s1001 = ssub.s32 %s1000, 1
      %v1002 = vstv %s1001
      %vm1003 = vcmp.eq.s32.totalorder %v236, %v1002
      %vm1004 = vcmp.eq.s32.totalorder %v561, %v1002
      %v1005 = vsel %vm1003, 1, 0
      %v1006 = vsel %vm1004, 1, 0
      %v1007 = vcvt.s32.f32 %v1005
      %v1008 = vcvt.s32.f32 %v1006
      %v1009 = vmul.f32 %v995, %v1007
      %v1010 = vmul.f32 %v998, %v1008
      %vm1011 = vcmask 7168
      %v1012 = vsel %vm1011, %v1009, 0.0
      %vm1013 = vcmask 0
      %v1014 = vsel %vm1013, %v1010, 0.0
      %v1015 = vadd.f32 %v1012, %v1014
      %1016 = vadd.xlane.f32.xlu0 %v1015
      %v1017 = vpop.xlane.xlu0 %1016
      %v1018 = vrot.slane %v1017, 4
      %v1019 = vadd.f32 %v1017, %v1018
      %v1020 = vrot.slane %v1019, 2
      %v1021 = vadd.f32 %v1019, %v1020
      %v1022 = vrot.slane %v1021, 1
      %v1023 = vadd.f32 %v1021, %v1022
      %s1024 = vtos %v1023
      %v1025 = vstv %s1024
      %1028 = vrot.lane.b32.xlu0 %v995, 32
      %v1029 = vpop.permute.xlu0 %1028
      %1030 = vrot.lane.b32.xlu0 %v998, 32
      %v1031 = vpop.permute.xlu0 %1030
      %v1034 = vsel %vm277, %v558, %v1029
      %v1035 = vsel %vm277, 0.0, %v1031
      %vm1036 = vcmask 269312
      %v1037 = vsel %vm1036, %v1034, %v1025
      %v1038 = vsel %vm1036, %v1035, %v1025
      %vm1039 = vcmask 277504
      %v1040 = vsel %vm1039, %v1037, 0.0
      %v1041 = vsel %vm1039, %v1038, 0.0
      %v1042 = vsel %vm973, %v1041, 0.0
      %1046 = vrot.lane.b32.xlu0 %v935, 32
      %v1047 = vpop.permute.xlu0 %1046
      %1048 = vrot.lane.b32.xlu0 %v938, 32
      %v1049 = vpop.permute.xlu0 %1048
      %1050 = vrot.lane.b32.xlu0 %v941, 32
      %v1051 = vpop.permute.xlu0 %1050
      %v1055 = vsel %vm277, %v894, %v1047
      %v1056 = vsel %vm277, %v895, %v1049
      %v1057 = vsel %vm277, 0.0, %v1051
      %vm1058 = vcmask 392192
      %v1059 = vsel %vm1058, %v1055, 0.0
      %v1060 = vsel %vm1058, %v1056, 0.0
      %v1061 = vsel %vm1058, %v1057, 0.0
      %v1062 = vsel %vm973, %v1061, 0.0
      %1063 = vst [vmem:[%s196] sm:$0xff] %v1040
      %1064 = vst [vmem:[%s196 + $0x8] sm:$0xff] %v1042
      %1065 = vst [vmem:[%s196 + $0x10] sm:$0xff] %v1059
      %1066 = vst [vmem:[%s196 + $0x18] sm:$0xff] %v1060
      %1067 = vst [vmem:[%s196 + $0x20] sm:$0xff] %v1062
      %p1068 = scmp.lt.s32.totalorder %s23, 1
      %s1069 = scalar_select %p1068, %s23, 1
      %s1070 = smul.addr %s1069, 5
      %s1071 = smul.addr %s1070, 8
      %s1072 = scalar_lea.vmem %s4, %s1071
      // Predicated region
      $region33: #{neufa_mep_forward.2} parent=31 // pred_check
        %p1073 = pneg %p114
      $region34: #{neufa_mep_forward.2} parent=31 // pred_check_branch
        %1075 = sbr.rel (%p1073) target = $region36
      $region35: #{neufa_mep_forward.2} parent=31 // pred_region
        _
      $region36: #{neufa_mep_forward.2} parent=31 // pred_fallthru
        _
    $region32: #{neufa_mep_forward.2} parent=5 // pred_fallthru
      _
    %p1076 = scmp.le.s32.totalorder 2, %s18
    // Predicated region
    $region37: #{neufa_mep_forward.2} parent=5 // pred_check
      %p1077 = pneg %p1076
    $region38: #{neufa_mep_forward.2} parent=5 // pred_check_branch
      %1079 = sbr.rel (%p1077) target = $region40
    $region39: #{neufa_mep_forward.2} parent=5 // pred_region
      %s1080 = ssub.s32 %s18, 2
      // Predicated region
      $region41: #{neufa_mep_forward.2} parent=39 // pred_check
        %p1081 = pneg %p120
      $region42: #{neufa_mep_forward.2} parent=39 // pred_check_branch
        %1083 = sbr.rel (%p1081) target = $region44
      $region43: #{neufa_mep_forward.2} parent=39 // pred_region
        %p1084 = scmp.lt.s32.totalorder %s24, 1
        %s1085 = scalar_select %p1084, %s24, 1
        %s1086 = smul.addr %s1085, 5
        %s1087 = smul.addr %s1086, 8
        %s1088 = scalar_lea.vmem %s4, %s1087
      $region44: #{neufa_mep_forward.2} parent=39 // pred_fallthru
        _
    $region40: #{neufa_mep_forward.2} parent=5 // pred_fallthru
      _
  $region6: #{neufa_mep_forward.2} parent=0 // loop_footer
    %s22 = sadd.s32 1, %s18
  $region7: #{neufa_mep_forward.2} parent=0 // loop_footer_branch
    %17 = sbr.rel target = $region3
  $region8: #{neufa_mep_forward.2} parent=0 // loop_exit
    _

// kernel: neufa_mep_forward.3
$region0: #{neufa_mep_forward.3}
  #allocation0 [shape = 'u32[]', space=smem, size = 0x4, offset = 0x4, fixed_abs, tag = 'smem constant byte address 0x4 - core index']
  #allocation1 [shape = 'u32[72,128]{1,0:T(1,128)}', space=vmem, size = 0x9000, scoped, tag = 'internal scratch']
  #allocation2 [shape = 's32[1]{0}', space=sflag, size = 0x4, scoped, tag = 'scoped memory for neufa_mep_forward.3']
  #allocation3 [shape = 'u8[512]{0}', space=smem, size = 0x200, scoped, tag = 'prefetched SMEM operand 0']
  #allocation4 [shape = 'u8[512]{0}', space=smem, size = 0x200, scoped, tag = 'prefetched SMEM operand 1']
  %s0 = inlined_call_operand.vmem [shape: s32[2], index: 0, kind: input, shape index: {}]
  %s1 = inlined_call_operand.vmem [shape: s32[2], index: 1, kind: input, shape index: {}]
  %s2 = inlined_call_operand.vmem [shape: f32[2,40,128], index: 2, kind: input, shape index: {}]
  %s3 = inlined_call_operand.vmem [shape: f32[2,9,32], index: 3, kind: input, shape index: {}]
  %s4 = inlined_call_operand.vmem [shape: f32[264,64], index: 4, kind: input, shape index: {}]
  %s5 = inlined_call_operand.vmem [shape: f32[2,40,128], index: 5, kind: output, shape index: {}]
  %s6 = sld [smem:[#allocation0]]
  $region45: #{neufa_mep_forward.3} parent=0
    _
  %s8 = ssub.s32 1, %s6
  %s9 = scalar_select 0, %s8, %s6
  %s11 = sshll.u32 %s0, 4
  %s12 = int_to_ptr.vmem [resolvable:$true] %s11
  %14 = dma.vmem_to_smem %s12, 16, [#allocation3], [#allocation2]
  %s16 = sshll.u32 %s1, 4
  %s17 = int_to_ptr.vmem [resolvable:$true] %s16
  %19 = dma.vmem_to_smem %s17, 16, [#allocation4], [#allocation2]
  %21 = dma.done [#allocation2], 32
  %22 = sfence
  loop: start=0, step=1, limit=4
  $region2: #{neufa_mep_forward.3} parent=0 // loop_pre_header
    _
  $region3: #{neufa_mep_forward.3} parent=0 // loop_header
    %s24 = sphi 0, %s28
    %p25 = scmp.ge.s32.totalorder %s24, 4
    %s34 = sphi 0, %s36
    %s37 = sphi 0, %s34
    %s38 = sphi 0, %s37
    %s54 = sphi 0, %s38
    %s60 = sphi 0, %s62
    %s63 = sphi 0, %s60
    %s64 = sphi 0, %s63
    %s80 = sphi 0, %s64
    %s84 = sphi 0, %s84
    %s86 = sphi 0, %s84
    %s87 = sphi 0, %s86
    %s101 = sphi 0, %s87
    %s107 = sphi 0, %s109
    %s110 = sphi 0, %s107
    %s111 = sphi 0, %s110
    %s127 = sphi 0, %s111
  $region4: #{neufa_mep_forward.3} parent=0 // loop_header_branch
    %27 = sbr.rel (%p25) target = $region8
  $region5: #{neufa_mep_forward.3} parent=0 // loop_body
    %s29 = ssub.s32 %s24, 1
    %s30 = ssub.s32 %s24, 2
    %s31 = sadd.s32 %s24, 1
    %s32 = ssub.s32 %s24, %s31
    %p33 = scmp.eq.s32.totalorder %s32, 0
    %s35 = sadd.s32 %s34, 1
    %s36 = scalar_select %p33, %s34, %s35
    %p39 = pneg %p33
    %p40 = scmp.eq.s32.totalorder %s24, 1
    %p41 = por %p39, %p40
    %p42 = scmp.ne.s32.totalorder %s34, %s37
    %p43 = scmp.eq.s32.totalorder %s24, 0
    %p44 = por %p42, %p43
    %p45 = scmp.ne.s32.totalorder %s34, %s37
    %p46 = scmp.eq.s32.totalorder %s29, 1
    %p47 = por %p45, %p46
    %p48 = scmp.ne.s32.totalorder %s37, %s38
    %p49 = scmp.eq.s32.totalorder %s29, 0
    %p50 = por %p48, %p49
    %p51 = scmp.ne.s32.totalorder %s37, %s38
    %p52 = scmp.eq.s32.totalorder %s30, 1
    %p53 = por %p51, %p52
    %p55 = scmp.ne.s32.totalorder %s38, %s54
    %p56 = scmp.eq.s32.totalorder %s30, 0
    %p57 = por %p55, %p56
    %s58 = ssub.s32 %s24, %s31
    %p59 = scmp.eq.s32.totalorder %s58, 0
    %s61 = sadd.s32 %s60, 1
    %s62 = scalar_select %p59, %s60, %s61
    %p65 = pneg %p59
    %p66 = scmp.eq.s32.totalorder %s24, 1
    %p67 = por %p65, %p66
    %p68 = scmp.ne.s32.totalorder %s60, %s63
    %p69 = scmp.eq.s32.totalorder %s24, 0
    %p70 = por %p68, %p69
    %p71 = scmp.ne.s32.totalorder %s60, %s63
    %p72 = scmp.eq.s32.totalorder %s29, 1
    %p73 = por %p71, %p72
    %p74 = scmp.ne.s32.totalorder %s63, %s64
    %p75 = scmp.eq.s32.totalorder %s29, 0
    %p76 = por %p74, %p75
    %p77 = scmp.ne.s32.totalorder %s63, %s64
    %p78 = scmp.eq.s32.totalorder %s30, 1
    %p79 = por %p77, %p78
    %p81 = scmp.ne.s32.totalorder %s64, %s80
    %p82 = scmp.eq.s32.totalorder %s30, 0
    %p83 = por %p81, %p82
    %s85 = sadd.s32 %s84, 1
    %p88 = scmp.eq.s32.totalorder %s24, 1
    %p89 = scmp.ne.s32.totalorder %s84, %s86
    %p90 = scmp.eq.s32.totalorder %s24, 0
    %p91 = por %p89, %p90
    %p92 = scmp.ne.s32.totalorder %s84, %s86
    %p93 = scmp.eq.s32.totalorder %s29, 1
    %p94 = por %p92, %p93
    %p95 = scmp.ne.s32.totalorder %s86, %s87
    %p96 = scmp.eq.s32.totalorder %s29, 0
    %p97 = por %p95, %p96
    %p98 = scmp.ne.s32.totalorder %s86, %s87
    %p99 = scmp.eq.s32.totalorder %s30, 1
    %p100 = por %p98, %p99
    %p102 = scmp.ne.s32.totalorder %s87, %s101
    %p103 = scmp.eq.s32.totalorder %s30, 0
    %p104 = por %p102, %p103
    %s105 = ssub.s32 %s24, %s31
    %p106 = scmp.eq.s32.totalorder %s105, 0
    %s108 = sadd.s32 %s107, 1
    %s109 = scalar_select %p106, %s107, %s108
    %p112 = pneg %p106
    %p113 = scmp.eq.s32.totalorder %s24, 1
    %p114 = por %p112, %p113
    %p115 = scmp.ne.s32.totalorder %s107, %s110
    %p116 = scmp.eq.s32.totalorder %s24, 0
    %p117 = por %p115, %p116
    %p118 = scmp.ne.s32.totalorder %s107, %s110
    %p119 = scmp.eq.s32.totalorder %s29, 1
    %p120 = por %p118, %p119
    %p121 = scmp.ne.s32.totalorder %s110, %s111
    %p122 = scmp.eq.s32.totalorder %s29, 0
    %p123 = por %p121, %p122
    %p124 = scmp.ne.s32.totalorder %s110, %s111
    %p125 = scmp.eq.s32.totalorder %s30, 1
    %p126 = por %p124, %p125
    %p128 = scmp.ne.s32.totalorder %s111, %s127
    %p129 = scmp.eq.s32.totalorder %s30, 0
    %p130 = por %p128, %p129
    %p131 = scmp.le.s32.totalorder 1, %s24
    %p132 = scmp.lt.s32.totalorder %s24, 3
    %p133 = pnand %p131, %p132
    %p134 = pneg %p133
    // Predicated region
    $region9: #{neufa_mep_forward.3} parent=5 // pred_check
      _
    $region10: #{neufa_mep_forward.3} parent=5 // pred_check_branch
      %136 = sbr.rel (%p133) target = $region12
    $region11: #{neufa_mep_forward.3} parent=5 // pred_region
      %s137 = ssub.s32 %s24, 1
      // Predicated region
      $region13: #{neufa_mep_forward.3} parent=11 // pred_check
        %p138 = pneg %p97
      $region14: #{neufa_mep_forward.3} parent=11 // pred_check_branch
        %140 = sbr.rel (%p138) target = $region16
      $region15: #{neufa_mep_forward.3} parent=11 // pred_region
        _
      $region16: #{neufa_mep_forward.3} parent=11 // pred_fallthru
        _
    $region12: #{neufa_mep_forward.3} parent=5 // pred_fallthru
      _
    %p141 = scmp.lt.s32.totalorder %s24, 2
    // Predicated region
    $region17: #{neufa_mep_forward.3} parent=5 // pred_check
      %p142 = pneg %p141
    $region18: #{neufa_mep_forward.3} parent=5 // pred_check_branch
      %144 = sbr.rel (%p142) target = $region20
    $region19: #{neufa_mep_forward.3} parent=5 // pred_region
      // Predicated region
      $region21: #{neufa_mep_forward.3} parent=19 // pred_check
        %p145 = pneg %p44
      $region22: #{neufa_mep_forward.3} parent=19 // pred_check_branch
        %147 = sbr.rel (%p145) target = $region24
      $region23: #{neufa_mep_forward.3} parent=19 // pred_region
        %p148 = scmp.lt.s32.totalorder %s24, 1
        %s149 = scalar_select %p148, %s24, 1
        %s150 = smul.addr %s149, 5
        %s151 = smul.addr %s150, 8
        %s152 = scalar_lea.vmem %s2, %s151
      $region24: #{neufa_mep_forward.3} parent=19 // pred_fallthru
        _
      // Predicated region
      $region25: #{neufa_mep_forward.3} parent=19 // pred_check
        %p153 = pneg %p70
      $region26: #{neufa_mep_forward.3} parent=19 // pred_check_branch
        %155 = sbr.rel (%p153) target = $region28
      $region27: #{neufa_mep_forward.3} parent=19 // pred_region
        %p156 = scmp.lt.s32.totalorder %s24, 1
        %s157 = scalar_select %p156, %s24, 1
        %s158 = smul.addr %s157, 2
        %s159 = smul.addr %s158, 8
        %s160 = scalar_lea.vmem %s3, %s159
      $region28: #{neufa_mep_forward.3} parent=19 // pred_fallthru
        _
    $region20: #{neufa_mep_forward.3} parent=5 // pred_fallthru
      _
    %p161 = scmp.le.s32.totalorder 1, %s24
    %p162 = scmp.lt.s32.totalorder %s24, 3
    %p163 = pnand %p161, %p162
    %p164 = pneg %p163
    // Predicated region
    $region29: #{neufa_mep_forward.3} parent=5 // pred_check
      _
    $region30: #{neufa_mep_forward.3} parent=5 // pred_check_branch
      %166 = sbr.rel (%p163) target = $region32
    $region31: #{neufa_mep_forward.3} parent=5 // pred_region
      %s167 = ssub.s32 %s24, 1
      %p168 = scmp.lt.s32.totalorder %s29, 1
      %s169 = scalar_select %p168, %s29, 1
      %s170 = smul.addr %s169, 5
      %s171 = smul.addr %s170, 8
      %s172 = scalar_lea.vmem %s2, %s171
      %p173 = pneg %p50
      %p174 = pneg %p47
      %p175 = scmp.lt.s32.totalorder %s29, 1
      %s176 = scalar_select %p175, %s29, 1
      %s177 = smul.addr %s176, 2
      %s178 = smul.addr %s177, 8
      %s179 = scalar_lea.vmem %s3, %s178
      %p180 = pneg %p76
      %p181 = pneg %p73
      %p182 = pneg %p97
      %p183 = pneg %p94
      %p184 = pneg %p123
      %p185 = pneg %p120
      %p186 = scmp.lt.s32.totalorder %s29, 1
      %s187 = scalar_select %p186, %s29, 1
      %s188 = smul.addr %s187, 5
      %s189 = smul.addr %s188, 8
      %s190 = scalar_lea.vmem %s5, %s189
      %p191 = scmp.lt.s32.totalorder %s29, 1
      %s192 = scalar_select %p191, %s29, 1
      %s193 = smul.addr %s192, 5
      %s194 = smul.addr %s193, 8
      %s195 = scalar_lea.vmem %s2, %s194
      %p196 = scmp.lt.s32.totalorder %s29, 1
      %s197 = scalar_select %p196, %s29, 1
      %s198 = smul.addr %s197, 2
      %s199 = smul.addr %s198, 8
      %s200 = scalar_lea.vmem %s3, %s199
      %p201 = scmp.lt.s32.totalorder %s29, 1
      %s202 = scalar_select %p201, %s29, 1
      %s203 = smul.addr %s202, 5
      %s204 = smul.addr %s203, 8
      %s205 = scalar_lea.vmem %s5, %s204
      %s206 = sld [smem:[#allocation3 + %s29]]
      %s207 = sld [smem:[#allocation4 + %s29]]
      %v208 = vld [vmem:[%s195] sm:$0xff]
      %v209 = vld [vmem:[%s195 + $0x8] sm:$0xff]
      %v210 = vld [vmem:[%s195 + $0x10] sm:$0xff]
      %v211 = vld [vmem:[%s195 + $0x18] sm:$0xff]
      %v212 = vld [vmem:[%s195 + $0x20] sm:$0xff]
      %v213 = vld [vmem:[%s200] sm:$0xff]
      %v214 = vld [vmem:[%s200 + $0x8] sm:$0x1]
      %v215 = vadd.f32 %v208, %v213
      %v216 = vadd.f32 %v209, %v214
      %v217 = vld [vmem:[%s4] sm:$0xff]
      %v218 = vld [vmem:[%s4 + $0x8] sm:$0xff]
      %v219 = vld [vmem:[%s4 + $0x10] sm:$0xff]
      %v220 = vld [vmem:[%s4 + $0x18] sm:$0xff]
      %v221 = vld [vmem:[%s4 + $0x20] sm:$0x1]
      %v222 = vperm.slane %v221, 0
      %vm223 = vcmask 261120
      %v225 = vsel %vm223, %v215, 0
      %v228 = vsel %vm223, %v216, 0
      %230 = vmatpush.msra.mxu0 0.0
      %231 = vmatpush.msra.mxu0 0.0
      %232 = vmatpush.msra.mxu0 0.0
      %233 = vmatpush.msra.mxu0 0.0
      %234 = vmatpush.msra.mxu0 0.0
      %235 = vmatpush.msra.mxu0 0.0
      %236 = vmatpush.msra.mxu0 0.0
      %237 = vmatpush.msra.mxu0 0.0
      %238 = vmatpush.msra.mxu0 0.0
      %239 = vmatpush.msra.mxu0 0.0
      %240 = vmatpush.msra.mxu0 0.0
      %241 = vmatpush.msra.mxu0 0.0
      %242 = vmatpush.msra.mxu0 %v220
      %243 = vmatpush.msra.mxu0 %v219
      %244 = vmatpush.msra.mxu0 %v218
      %245 = vmatpush.msra.mxu0 %v217
      %246 = vmatmul.f32.gmra.mxu0 %v225
      %v247 = vpop.f32.mrf.mxu0
      %v248 = vadd.f32 %v222, %v247
      %249 = vmatmul.f32.gmra.mxu0 %v228
      %v250 = vpop.f32.mrf.mxu0
      %v251 = vadd.f32 %v222, %v250
      %252 = vdwg.mxu0
      %v253 = vmul.f32 %v248, 0.25
      %v254 = vmul.f32 %v251, 0.25
      %258 = vrot.lane.b32.xlu0 %v210, 96
      %v259 = vpop.permute.xlu0 %258
      %260 = vrot.lane.b32.xlu0 %v211, 96
      %v261 = vpop.permute.xlu0 %260
      %262 = vrot.lane.b32.xlu0 %v212, 96
      %v263 = vpop.permute.xlu0 %262
      %vm264 = vcmask 130048
      %v266 = vsel %vm264, %v253, 0
      %v269 = vsel %vm264, %v254, 0
      %v271 = vsel %vm264, %v259, 0
      %v273 = vsel %vm264, %v261, 0
      %v275 = vsel %vm264, %v263, 0
      %277 = vmatpush.xpose.msra.mxu0 0.0
      %278 = vmatpush.xpose.msra.mxu0 0.0
      %279 = vmatpush.xpose.msra.mxu0 0.0
      %280 = vmatpush.xpose.msra.mxu0 0.0
      %281 = vmatpush.xpose.msra.mxu0 0.0
      %282 = vmatpush.xpose.msra.mxu0 0.0
      %283 = vmatpush.xpose.msra.mxu0 0.0
      %284 = vmatpush.xpose.msra.mxu0 0.0
      %285 = vmatpush.xpose.msra.mxu0 0.0
      %286 = vmatpush.xpose.msra.mxu0 0.0
      %287 = vmatpush.xpose.msra.mxu0 0.0
      %288 = vmatpush.xpose.msra.mxu0 0.0
      %289 = vmatpush.xpose.msra.mxu0 0.0
      %290 = vmatpush.xpose.msra.mxu0 %v275
      %291 = vmatpush.xpose.msra.mxu0 %v273
      %292 = vmatpush.xpose.msra.mxu0 %v271
      %293 = vmatmul.f32.gmra.mxu0 %v266
      %v294 = vpop.f32.mrf.mxu0
      %v295 = vadd.f32 0.0, %v294
      %296 = vmatmul.f32.gmra.mxu0 %v269
      %v297 = vpop.f32.mrf.mxu0
      %v298 = vadd.f32 0.0, %v297
      %299 = vdwg.mxu0
      %300 = vmatpush.xpose.msra.mxu0 0.0
      %301 = vmatpush.xpose.msra.mxu0 0.0
      %302 = vmatpush.xpose.msra.mxu0 0.0
      %303 = vmatpush.xpose.msra.mxu0 0.0
      %304 = vmatpush.xpose.msra.mxu0 0.0
      %305 = vmatpush.xpose.msra.mxu0 0.0
      %306 = vmatpush.xpose.msra.mxu0 0.0
      %307 = vmatpush.xpose.msra.mxu0 0.0
      %308 = vmatpush.xpose.msra.mxu0 0.0
      %309 = vmatpush.xpose.msra.mxu0 0.0
      %310 = vmatpush.xpose.msra.mxu0 0.0
      %311 = vmatpush.xpose.msra.mxu0 0.0
      %312 = vmatpush.xpose.msra.mxu0 0.0
      %313 = vmatpush.xpose.msra.mxu0 0.0
      %314 = vmatpush.xpose.msra.mxu0 %v269
      %315 = vmatpush.xpose.msra.mxu0 %v266
      %316 = vmatmul.f32.gmra.mxu0 %v271
      %v317 = vpop.f32.mrf.mxu0
      %v318 = vadd.f32 0.0, %v317
      %319 = vmatmul.f32.gmra.mxu0 %v273
      %v320 = vpop.f32.mrf.mxu0
      %v321 = vadd.f32 0.0, %v320
      %322 = vmatmul.f32.gmra.mxu0 %v275
      %v323 = vpop.f32.mrf.mxu0
      %v324 = vadd.f32 0.0, %v323
      %325 = vdwg.mxu0
      %v326 = vlaneseq
      %v327 = vand.u32 %v326, 127
      %v328 = vstv %s207
      %vm329 = vcmp.lt.s32.totalorder %v327, %v328
      %vm330 = vcmp.eq.s32.totalorder %v327, 16
      %vm331 = vmor %vm329, %vm330
      %v332 = vsel %vm331, %v295, -1e+09
      %v333 = vsel %vm331, %v298, -1e+09
      %vm334 = vcmask 138240
      %v335 = vsel %vm334, %v332, -inf
      %336 = vmax.xlane.f32.xlu0 %v335
      %v337 = vpop.xlane.xlu0 %336
      %vm338 = vcmask 131072
      %v339 = vsel %vm338, %v333, -inf
      %340 = vmax.xlane.f32.xlu0 %v339
      %v341 = vpop.xlane.xlu0 %340
      %v342 = vsub.f32 %v332, %v337
      %v343 = vsub.f32 %v333, %v341
      %v344 = vmul.f32 %v342, 1.442695
      %v345 = vpow.pop %v344
      %v346 = vmul.f32 %v343, 1.442695
      %v347 = vpow.pop %v346
      %v348 = vsel %vm334, %v345, 0.0
      %349 = vadd.xlane.f32.xlu0 %v348
      %v350 = vpop.xlane.xlu0 %349
      %v351 = vsel %vm338, %v347, 0.0
      %352 = vadd.xlane.f32.xlu0 %v351
      %v353 = vpop.xlane.xlu0 %352
      %v354 = vrcp.pop %v350
      %v355 = vmul.f32 %v350, %v354
      %v356 = vsub.f32 1.0, %v355
      %v357 = vmul.f32 %v354, %v356
      %v358 = vadd.f32 %v354, %v357
      %vm359 = vweird.f32 %v350
      %vm360 = vweird.f32 %v354
      %vm361 = vmor %vm359, %vm360
      %v362 = vsel %vm361, %v354, %v358
      %v363 = vand.u32 2147483647, %v350
      %vm364 = vcmp.eq.f32.partialorder %v363, 8.507059e+37
      %v365 = vand.u32 %v350, 2147483648
      %v366 = vor.u32 1.1754944e-38, %v365
      %v367 = vsel %vm364, %v366, %v362
      %v368 = vmul.f32 %v345, %v367
      %v369 = vrcp.pop %v353
      %v370 = vmul.f32 %v353, %v369
      %v371 = vsub.f32 1.0, %v370
      %v372 = vmul.f32 %v369, %v371
      %v373 = vadd.f32 %v369, %v372
      %vm374 = vweird.f32 %v353
      %vm375 = vweird.f32 %v369
      %vm376 = vmor %vm374, %vm375
      %v377 = vsel %vm376, %v369, %v373
      %v378 = vand.u32 2147483647, %v353
      %vm379 = vcmp.eq.f32.partialorder %v378, 8.507059e+37
      %v380 = vand.u32 %v353, 2147483648
      %v381 = vor.u32 1.1754944e-38, %v380
      %v382 = vsel %vm379, %v381, %v377
      %v383 = vmul.f32 %v347, %v382
      %v384 = vstv %s206
      %vm385 = vcmp.lt.s32.totalorder %v327, %v384
      %vm386 = vcmp.eq.s32.totalorder %v327, 8
      %vm387 = vmor %vm385, %vm386
      %v388 = vsel %vm387, %v318, -1e+09
      %v389 = vsel %vm387, %v321, -1e+09
      %v390 = vsel %vm387, %v324, -1e+09
      %vm391 = vcmask 72704
      %v392 = vsel %vm391, %v388, -inf
      %393 = vmax.xlane.f32.xlu0 %v392
      %v394 = vpop.xlane.xlu0 %393
      %v395 = vsel %vm391, %v389, -inf
      %396 = vmax.xlane.f32.xlu0 %v395
      %v397 = vpop.xlane.xlu0 %396
      %vm398 = vcmask 65536
      %v399 = vsel %vm398, %v390, -inf
      %400 = vmax.xlane.f32.xlu0 %v399
      %v401 = vpop.xlane.xlu0 %400
      %v402 = vsub.f32 %v388, %v394
      %v403 = vsub.f32 %v389, %v397
      %v404 = vsub.f32 %v390, %v401
      %v405 = vmul.f32 %v402, 1.442695
      %v406 = vpow.pop %v405
      %v407 = vmul.f32 %v403, 1.442695
      %v408 = vpow.pop %v407
      %v409 = vmul.f32 %v404, 1.442695
      %v410 = vpow.pop %v409
      %v411 = vsel %vm391, %v406, 0.0
      %412 = vadd.xlane.f32.xlu0 %v411
      %v413 = vpop.xlane.xlu0 %412
      %v414 = vsel %vm391, %v408, 0.0
      %415 = vadd.xlane.f32.xlu0 %v414
      %v416 = vpop.xlane.xlu0 %415
      %v417 = vsel %vm398, %v410, 0.0
      %418 = vadd.xlane.f32.xlu0 %v417
      %v419 = vpop.xlane.xlu0 %418
      %v420 = vrcp.pop %v413
      %v421 = vmul.f32 %v413, %v420
      %v422 = vsub.f32 1.0, %v421
      %v423 = vmul.f32 %v420, %v422
      %v424 = vadd.f32 %v420, %v423
      %vm425 = vweird.f32 %v413
      %vm426 = vweird.f32 %v420
      %vm427 = vmor %vm425, %vm426
      %v428 = vsel %vm427, %v420, %v424
      %v429 = vand.u32 2147483647, %v413
      %vm430 = vcmp.eq.f32.partialorder %v429, 8.507059e+37
      %v431 = vand.u32 %v413, 2147483648
      %v432 = vor.u32 1.1754944e-38, %v431
      %v433 = vsel %vm430, %v432, %v428
      %v434 = vmul.f32 %v406, %v433
      %v435 = vrcp.pop %v416
      %v436 = vmul.f32 %v416, %v435
      %v437 = vsub.f32 1.0, %v436
      %v438 = vmul.f32 %v435, %v437
      %v439 = vadd.f32 %v435, %v438
      %vm440 = vweird.f32 %v416
      %vm441 = vweird.f32 %v435
      %vm442 = vmor %vm440, %vm441
      %v443 = vsel %vm442, %v435, %v439
      %v444 = vand.u32 2147483647, %v416
      %vm445 = vcmp.eq.f32.partialorder %v444, 8.507059e+37
      %v446 = vand.u32 %v416, 2147483648
      %v447 = vor.u32 1.1754944e-38, %v446
      %v448 = vsel %vm445, %v447, %v443
      %v449 = vmul.f32 %v408, %v448
      %v450 = vrcp.pop %v419
      %v451 = vmul.f32 %v419, %v450
      %v452 = vsub.f32 1.0, %v451
      %v453 = vmul.f32 %v450, %v452
      %v454 = vadd.f32 %v450, %v453
      %vm455 = vweird.f32 %v419
      %vm456 = vweird.f32 %v450
      %vm457 = vmor %vm455, %vm456
      %v458 = vsel %vm457, %v450, %v454
      %v459 = vand.u32 2147483647, %v419
      %vm460 = vcmp.eq.f32.partialorder %v459, 8.507059e+37
      %v461 = vand.u32 %v419, 2147483648
      %v462 = vor.u32 1.1754944e-38, %v461
      %v463 = vsel %vm460, %v462, %v458
      %v464 = vmul.f32 %v410, %v463
      %v466 = vsel %vm334, %v368, 0
      %v469 = vsel %vm334, %v383, 0
      %vm471 = vcmask 1040384
      %v472 = vsel %vm471, %v212, 0
      %474 = vmatpush.msra.mxu0 0.0
      %475 = vmatpush.msra.mxu0 0.0
      %476 = vmatpush.msra.mxu0 0.0
      %477 = vmatpush.msra.mxu0 0.0
      %478 = vmatpush.msra.mxu0 0.0
      %479 = vmatpush.msra.mxu0 0.0
      %480 = vmatpush.msra.mxu0 0.0
      %481 = vmatpush.msra.mxu0 0.0
      %482 = vmatpush.msra.mxu0 0.0
      %483 = vmatpush.msra.mxu0 0.0
      %484 = vmatpush.msra.mxu0 0.0
      %485 = vmatpush.msra.mxu0 0.0
      %486 = vmatpush.msra.mxu0 0.0
      %487 = vmatpush.msra.mxu0 %v472
      %488 = vmatpush.msra.mxu0 %v211
      %489 = vmatpush.msra.mxu0 %v210
      %490 = vmatmul.f32.gmra.mxu0 %v466
      %v491 = vpop.f32.mrf.mxu0
      %v492 = vadd.f32 0.0, %v491
      %493 = vmatmul.f32.gmra.mxu0 %v469
      %v494 = vpop.f32.mrf.mxu0
      %v495 = vadd.f32 0.0, %v494
      %496 = vdwg.mxu0
      %v498 = vsel %vm391, %v434, 0
      %v501 = vsel %vm391, %v449, 0
      %v504 = vsel %vm391, %v464, 0
      %v507 = vsel %vm471, %v209, 0
      %509 = vmatpush.msra.mxu0 0.0
      %510 = vmatpush.msra.mxu0 0.0
      %511 = vmatpush.msra.mxu0 0.0
      %512 = vmatpush.msra.mxu0 0.0
      %513 = vmatpush.msra.mxu0 0.0
      %514 = vmatpush.msra.mxu0 0.0
      %515 = vmatpush.msra.mxu0 0.0
      %516 = vmatpush.msra.mxu0 0.0
      %517 = vmatpush.msra.mxu0 0.0
      %518 = vmatpush.msra.mxu0 0.0
      %519 = vmatpush.msra.mxu0 0.0
      %520 = vmatpush.msra.mxu0 0.0
      %521 = vmatpush.msra.mxu0 0.0
      %522 = vmatpush.msra.mxu0 0.0
      %523 = vmatpush.msra.mxu0 %v507
      %524 = vmatpush.msra.mxu0 %v208
      %525 = vmatmul.f32.gmra.mxu0 %v498
      %v526 = vpop.f32.mrf.mxu0
      %v527 = vadd.f32 0.0, %v526
      %528 = vmatmul.f32.gmra.mxu0 %v501
      %v529 = vpop.f32.mrf.mxu0
      %v530 = vadd.f32 0.0, %v529
      %531 = vmatmul.f32.gmra.mxu0 %v504
      %v532 = vpop.f32.mrf.mxu0
      %v533 = vadd.f32 0.0, %v532
      %534 = vdwg.mxu0
      %v535 = vld [vmem:[%s4 + $0x28] sm:$0xff]
      %v536 = vld [vmem:[%s4 + $0x30] sm:$0xff]
      %v537 = vld [vmem:[%s4 + $0x38] sm:$0xff]
      %v538 = vld [vmem:[%s4 + $0x40] sm:$0xff]
      %v539 = vld [vmem:[%s4 + $0x48] sm:$0x1]
      %v540 = vperm.slane %v539, 0
      %v542 = vsel %vm223, %v492, 0
      %v545 = vsel %vm223, %v495, 0
      %547 = vmatpush.msra.mxu0 0.0
      %548 = vmatpush.msra.mxu0 0.0
      %549 = vmatpush.msra.mxu0 0.0
      %550 = vmatpush.msra.mxu0 0.0
      %551 = vmatpush.msra.mxu0 0.0
      %552 = vmatpush.msra.mxu0 0.0
      %553 = vmatpush.msra.mxu0 0.0
      %554 = vmatpush.msra.mxu0 0.0
      %555 = vmatpush.msra.mxu0 0.0
      %556 = vmatpush.msra.mxu0 0.0
      %557 = vmatpush.msra.mxu0 0.0
      %558 = vmatpush.msra.mxu0 0.0
      %559 = vmatpush.msra.mxu0 %v538
      %560 = vmatpush.msra.mxu0 %v537
      %561 = vmatpush.msra.mxu0 %v536
      %562 = vmatpush.msra.mxu0 %v535
      %563 = vmatmul.f32.gmra.mxu0 %v542
      %v564 = vpop.f32.mrf.mxu0
      %v565 = vadd.f32 %v540, %v564
      %566 = vmatmul.f32.gmra.mxu0 %v545
      %v567 = vpop.f32.mrf.mxu0
      %v568 = vadd.f32 %v540, %v567
      %569 = vdwg.mxu0
      %v570 = vmax.f32 %v565, 0.0
      %v571 = vmax.f32 %v568, 0.0
      %v572 = vld [vmem:[%s4 + $0x50] sm:$0xff]
      %v573 = vld [vmem:[%s4 + $0x58] sm:$0xff]
      %v574 = vld [vmem:[%s4 + $0x60] sm:$0xff]
      %v575 = vld [vmem:[%s4 + $0x68] sm:$0xff]
      %v576 = vld [vmem:[%s4 + $0x70] sm:$0x1]
      %v577 = vperm.slane %v576, 0
      %v579 = vsel %vm223, %v570, 0
      %v582 = vsel %vm223, %v571, 0
      %584 = vmatpush.msra.mxu0 0.0
      %585 = vmatpush.msra.mxu0 0.0
      %586 = vmatpush.msra.mxu0 0.0
      %587 = vmatpush.msra.mxu0 0.0
      %588 = vmatpush.msra.mxu0 0.0
      %589 = vmatpush.msra.mxu0 0.0
      %590 = vmatpush.msra.mxu0 0.0
      %591 = vmatpush.msra.mxu0 0.0
      %592 = vmatpush.msra.mxu0 0.0
      %593 = vmatpush.msra.mxu0 0.0
      %594 = vmatpush.msra.mxu0 0.0
      %595 = vmatpush.msra.mxu0 0.0
      %596 = vmatpush.msra.mxu0 %v575
      %597 = vmatpush.msra.mxu0 %v574
      %598 = vmatpush.msra.mxu0 %v573
      %599 = vmatpush.msra.mxu0 %v572
      %600 = vmatmul.f32.gmra.mxu0 %v579
      %v601 = vpop.f32.mrf.mxu0
      %v602 = vadd.f32 %v577, %v601
      %603 = vmatmul.f32.gmra.mxu0 %v582
      %v604 = vpop.f32.mrf.mxu0
      %v605 = vadd.f32 %v577, %v604
      %606 = vdwg.mxu0
      %v607 = vld [vmem:[%s4 + $0x78] sm:$0xff]
      %v608 = vld [vmem:[%s4 + $0x80] sm:$0xff]
      %v609 = vld [vmem:[%s4 + $0x88] sm:$0xff]
      %v610 = vld [vmem:[%s4 + $0x90] sm:$0xff]
      %v611 = vld [vmem:[%s4 + $0x98] sm:$0x1]
      %v612 = vperm.slane %v611, 0
      %v614 = vsel %vm223, %v527, 0
      %v617 = vsel %vm223, %v530, 0
      %v620 = vsel %vm223, %v533, 0
      %622 = vmatpush.msra.mxu0 0.0
      %623 = vmatpush.msra.mxu0 0.0
      %624 = vmatpush.msra.mxu0 0.0
      %625 = vmatpush.msra.mxu0 0.0
      %626 = vmatpush.msra.mxu0 0.0
      %627 = vmatpush.msra.mxu0 0.0
      %628 = vmatpush.msra.mxu0 0.0
      %629 = vmatpush.msra.mxu0 0.0
      %630 = vmatpush.msra.mxu0 0.0
      %631 = vmatpush.msra.mxu0 0.0
      %632 = vmatpush.msra.mxu0 0.0
      %633 = vmatpush.msra.mxu0 0.0
      %634 = vmatpush.msra.mxu0 %v610
      %635 = vmatpush.msra.mxu0 %v609
      %636 = vmatpush.msra.mxu0 %v608
      %637 = vmatpush.msra.mxu0 %v607
      %638 = vmatmul.f32.gmra.mxu0 %v614
      %v639 = vpop.f32.mrf.mxu0
      %v640 = vadd.f32 %v612, %v639
      %641 = vmatmul.f32.gmra.mxu0 %v617
      %v642 = vpop.f32.mrf.mxu0
      %v643 = vadd.f32 %v612, %v642
      %644 = vmatmul.f32.gmra.mxu0 %v620
      %v645 = vpop.f32.mrf.mxu0
      %v646 = vadd.f32 %v612, %v645
      %647 = vdwg.mxu0
      %v648 = vmax.f32 %v640, 0.0
      %v649 = vmax.f32 %v643, 0.0
      %v650 = vmax.f32 %v646, 0.0
      %v651 = vld [vmem:[%s4 + $0xa0] sm:$0xff]
      %v652 = vld [vmem:[%s4 + $0xa8] sm:$0xff]
      %v653 = vld [vmem:[%s4 + $0xb0] sm:$0xff]
      %v654 = vld [vmem:[%s4 + $0xb8] sm:$0xff]
      %v655 = vld [vmem:[%s4 + $0xc0] sm:$0x1]
      %v656 = vperm.slane %v655, 0
      %v658 = vsel %vm223, %v648, 0
      %v661 = vsel %vm223, %v649, 0
      %v664 = vsel %vm223, %v650, 0
      %666 = vmatpush.msra.mxu0 0.0
      %667 = vmatpush.msra.mxu0 0.0
      %668 = vmatpush.msra.mxu0 0.0
      %669 = vmatpush.msra.mxu0 0.0
      %670 = vmatpush.msra.mxu0 0.0
      %671 = vmatpush.msra.mxu0 0.0
      %672 = vmatpush.msra.mxu0 0.0
      %673 = vmatpush.msra.mxu0 0.0
      %674 = vmatpush.msra.mxu0 0.0
      %675 = vmatpush.msra.mxu0 0.0
      %676 = vmatpush.msra.mxu0 0.0
      %677 = vmatpush.msra.mxu0 0.0
      %678 = vmatpush.msra.mxu0 %v654
      %679 = vmatpush.msra.mxu0 %v653
      %680 = vmatpush.msra.mxu0 %v652
      %681 = vmatpush.msra.mxu0 %v651
      %682 = vmatmul.f32.gmra.mxu0 %v658
      %v683 = vpop.f32.mrf.mxu0
      %v684 = vadd.f32 %v656, %v683
      %685 = vmatmul.f32.gmra.mxu0 %v661
      %v686 = vpop.f32.mrf.mxu0
      %v687 = vadd.f32 %v656, %v686
      %688 = vmatmul.f32.gmra.mxu0 %v664
      %v689 = vpop.f32.mrf.mxu0
      %v690 = vadd.f32 %v656, %v689
      %691 = vdwg.mxu0
      %v692 = vld [vmem:[%s4 + $0xf0] sm:$0xff]
      %v693 = vld [vmem:[%s4 + $0xf8] sm:$0xff]
      %v694 = vld [vmem:[%s4 + $0x100] sm:$0x1]
      %v695 = vld [vmem:[%s4 + $0xc8] sm:$0xff]
      %v696 = vld [vmem:[%s4 + $0xd0] sm:$0xff]
      %v697 = vld [vmem:[%s4 + $0xd8] sm:$0xff]
      %v698 = vld [vmem:[%s4 + $0xe0] sm:$0xff]
      %v699 = vld [vmem:[%s4 + $0xe8] sm:$0x1]
      %v700 = vperm.slane %v699, 0
      %v702 = vsel %vm223, %v208, 0
      %v704 = vsel %vm223, %v209, 0
      %706 = vmatpush.msra.mxu0 0.0
      %707 = vmatpush.msra.mxu0 0.0
      %708 = vmatpush.msra.mxu0 0.0
      %709 = vmatpush.msra.mxu0 0.0
      %710 = vmatpush.msra.mxu0 0.0
      %711 = vmatpush.msra.mxu0 0.0
      %712 = vmatpush.msra.mxu0 0.0
      %713 = vmatpush.msra.mxu0 0.0
      %714 = vmatpush.msra.mxu0 0.0
      %715 = vmatpush.msra.mxu0 0.0
      %716 = vmatpush.msra.mxu0 0.0
      %717 = vmatpush.msra.mxu0 0.0
      %718 = vmatpush.msra.mxu0 %v698
      %719 = vmatpush.msra.mxu0 %v697
      %720 = vmatpush.msra.mxu0 %v696
      %721 = vmatpush.msra.mxu0 %v695
      %722 = vmatmul.f32.gmra.mxu0 %v702
      %v723 = vpop.f32.mrf.mxu0
      %v724 = vadd.f32 %v700, %v723
      %725 = vmatmul.f32.gmra.mxu0 %v704
      %v726 = vpop.f32.mrf.mxu0
      %v727 = vadd.f32 %v700, %v726
      %728 = vdwg.mxu0
      %730 = vset.pattern.permute.xlu0 0
      %731 = vperm.xlu0 %730, %v724
      %v732 = vpop.permute.xlu0 %731
      %735 = vset.pattern.permute.xlu0 0
      %736 = vperm.xlu0 %735, %v727
      %v737 = vpop.permute.xlu0 %736
      %738 = vset.pattern.permute.xlu0 1
      %739 = vperm.xlu0 %738, %v724
      %v740 = vpop.permute.xlu0 %739
      %742 = vset.pattern.permute.xlu0 1
      %743 = vperm.xlu0 %742, %v727
      %v744 = vpop.permute.xlu0 %743
      %v745 = vsel %vm264, %v732, %v740
      %v747 = vsel %vm471, %v694, 0
      %749 = vmatpush.msra.mxu0 0.0
      %750 = vmatpush.msra.mxu0 0.0
      %751 = vmatpush.msra.mxu0 0.0
      %752 = vmatpush.msra.mxu0 0.0
      %753 = vmatpush.msra.mxu0 0.0
      %754 = vmatpush.msra.mxu0 0.0
      %755 = vmatpush.msra.mxu0 0.0
      %756 = vmatpush.msra.mxu0 0.0
      %757 = vmatpush.msra.mxu0 0.0
      %758 = vmatpush.msra.mxu0 0.0
      %759 = vmatpush.msra.mxu0 0.0
      %760 = vmatpush.msra.mxu0 0.0
      %761 = vmatpush.msra.mxu0 0.0
      %762 = vmatpush.msra.mxu0 %v747
      %763 = vmatpush.msra.mxu0 %v693
      %764 = vmatpush.msra.mxu0 %v692
      %765 = vmatmul.f32.gmra.mxu0 %v466
      %v766 = vpop.f32.mrf.mxu0
      %v767 = vadd.f32 %v745, %v766
      %768 = vmatmul.f32.gmra.mxu0 %v469
      %v769 = vpop.f32.mrf.mxu0
      %770 = vdwg.mxu0
      %v771 = vsub.f32 0.0, %v767
      %v772 = vmul.f32 %v771, 1.442695
      %v773 = vpow.pop %v772
      %v774 = vadd.f32 %v773, 1.0
      %v775 = vrcp.pop %v774
      %v776 = vmul.f32 %v774, %v775
      %v777 = vsub.f32 1.0, %v776
      %v778 = vmul.f32 %v775, %v777
      %v779 = vadd.f32 %v775, %v778
      %vm780 = vweird.f32 %v774
      %vm781 = vweird.f32 %v775
      %vm782 = vmor %vm780, %vm781
      %v783 = vsel %vm782, %v775, %v779
      %v784 = vand.u32 2147483647, %v774
      %vm785 = vcmp.eq.f32.partialorder %v784, 8.507059e+37
      %v786 = vand.u32 %v774, 2147483648
      %v787 = vor.u32 1.1754944e-38, %v786
      %v788 = vsel %vm785, %v787, %v783
      %v789 = vmul.f32 1.0, %v788
      %790 = vrot.lane.b32.xlu0 %v368, 40
      %v791 = vpop.permute.xlu0 %790
      %792 = vrot.lane.b32.xlu0 %v383, 40
      %v793 = vpop.permute.xlu0 %792
      %798 = vrot.lane.b32.xlu0 %v789, 57
      %v799 = vpop.permute.xlu0 %798
      %800 = vrot.lane.b32.xlu0 0.0, 57
      %v801 = vpop.permute.xlu0 %800
      %vm804 = vcmask 326656
      %v805 = vsel %vm804, %v602, %v791
      %v806 = vsel %vm804, %v605, %v793
      %vm807 = vcmask 465920
      %v808 = vsel %vm807, %v805, %v799
      %v809 = vsel %vm807, %v806, %v801
      %vm810 = vcmask 728064
      %v811 = vsel %vm810, %v808, 0.0
      %v812 = vsel %vm810, %v809, 0.0
      %v813 = vsel %vm471, %v812, 0.0
      %814 = vrot.lane.b32.xlu0 %v434, 20
      %v815 = vpop.permute.xlu0 %814
      %816 = vrot.lane.b32.xlu0 %v449, 20
      %v817 = vpop.permute.xlu0 %816
      %818 = vrot.lane.b32.xlu0 %v464, 20
      %v819 = vpop.permute.xlu0 %818
      %vm823 = vcmask 162816
      %v824 = vsel %vm823, %v684, %v815
      %v825 = vsel %vm823, %v687, %v817
      %v826 = vsel %vm823, %v690, %v819
      %vm827 = vcmask 236544
      %v828 = vsel %vm827, %v824, 0.0
      %v829 = vsel %vm827, %v825, 0.0
      %v830 = vsel %vm827, %v826, 0.0
      %v831 = vsel %vm471, %v830, 0.0
      %832 = vst [vmem:[%s205] sm:$0xff] %v811
      %833 = vst [vmem:[%s205 + $0x8] sm:$0xff] %v813
      %834 = vst [vmem:[%s205 + $0x10] sm:$0xff] %v828
      %835 = vst [vmem:[%s205 + $0x18] sm:$0xff] %v829
      %836 = vst [vmem:[%s205 + $0x20] sm:$0xff] %v831
      %p837 = scmp.lt.s32.totalorder %s29, 1
      %s838 = scalar_select %p837, %s29, 1
      %s839 = smul.addr %s838, 5
      %s840 = smul.addr %s839, 8
      %s841 = scalar_lea.vmem %s5, %s840
      // Predicated region
      $region33: #{neufa_mep_forward.3} parent=31 // pred_check
        %p842 = pneg %p120
      $region34: #{neufa_mep_forward.3} parent=31 // pred_check_branch
        %844 = sbr.rel (%p842) target = $region36
      $region35: #{neufa_mep_forward.3} parent=31 // pred_region
        _
      $region36: #{neufa_mep_forward.3} parent=31 // pred_fallthru
        _
    $region32: #{neufa_mep_forward.3} parent=5 // pred_fallthru
      _
    %p845 = scmp.le.s32.totalorder 2, %s24
    // Predicated region
    $region37: #{neufa_mep_forward.3} parent=5 // pred_check
      %p846 = pneg %p845
    $region38: #{neufa_mep_forward.3} parent=5 // pred_check_branch
      %848 = sbr.rel (%p846) target = $region40
    $region39: #{neufa_mep_forward.3} parent=5 // pred_region
      %s849 = ssub.s32 %s24, 2
      // Predicated region
      $region41: #{neufa_mep_forward.3} parent=39 // pred_check
        %p850 = pneg %p126
      $region42: #{neufa_mep_forward.3} parent=39 // pred_check_branch
        %852 = sbr.rel (%p850) target = $region44
      $region43: #{neufa_mep_forward.3} parent=39 // pred_region
        %p853 = scmp.lt.s32.totalorder %s30, 1
        %s854 = scalar_select %p853, %s30, 1
        %s855 = smul.addr %s854, 5
        %s856 = smul.addr %s855, 8
        %s857 = scalar_lea.vmem %s5, %s856
      $region44: #{neufa_mep_forward.3} parent=39 // pred_fallthru
        _
    $region40: #{neufa_mep_forward.3} parent=5 // pred_fallthru
      _
  $region6: #{neufa_mep_forward.3} parent=0 // loop_footer
    %s28 = sadd.s32 1, %s24
  $region7: #{neufa_mep_forward.3} parent=0 // loop_footer_branch
    %23 = sbr.rel target = $region3
  $region8: #{neufa_mep_forward.3} parent=0 // loop_exit
    _

</llo_original>
